<compile_context>
chip_gen: v5e
topology: v5e:2x2
jax: 0.10.0
libtpu: 0.0.40
codegen_flags: <defaults>
</compile_context>

<pallas_src>
import functools
import numpy as np

import jax
import jax.numpy as jnp
from jax.experimental import pallas as pl
from jax.experimental.pallas import tpu as pltpu

_SQRT_HALF = 0.7071067811865476
_LN_EPS = 1e-5
_VMEM_LIMIT = 48 * 1024 * 1024       # explicit scoped-VMEM cap (safe on v5e/v6e/v7x)

_BUFFERED1_OK = None


def _buffered1_supported():
    """Probe (once, eagerly) whether pipeline_mode=pl.Buffered(1) is supported."""
    global _BUFFERED1_OK
    if _BUFFERED1_OK is None:
        try:
            def _k(x_ref, o_ref):
                o_ref[...] = x_ref[...] + 1.0
            out = pl.pallas_call(
                _k,
                out_shape=jax.ShapeDtypeStruct((8, 128), jnp.float32),
                grid=(1,),
                in_specs=[pl.BlockSpec((8, 128), lambda i: (0, 0),
                                       pipeline_mode=pl.Buffered(1))],
                out_specs=pl.BlockSpec((8, 128), lambda i: (0, 0)),
            )(jnp.zeros((8, 128), jnp.float32))
            jax.block_until_ready(out)
            _BUFFERED1_OK = True
        except Exception:
            _BUFFERED1_OK = False
    return _BUFFERED1_OK


def _resident_spec(block_shape):
    """Spec for grid-invariant operands (weights, LN params, biases): constant index
    map, single-buffered when supported so they are not double-buffered in VMEM."""
    index_map = lambda i: (0,) * len(block_shape)
    if _buffered1_supported():
        return pl.BlockSpec(block_shape, index_map, pipeline_mode=pl.Buffered(1))
    return pl.BlockSpec(block_shape, index_map)


def _pick_row_tile(m):
    """Largest multiple-of-8 row tile dividing m, capped at 256 (scoped-VMEM safe on
    v5e/v7x), preferring >=2 grid steps so both v7x TensorCores get work."""
    for t in (256, 128, 64, 32, 16, 8):
        if t < m and m % t == 0:
            return t
    return m


# --------------------------------------------------------------------------- #
# Kernel A: fused LayerNorm -> Linear   (LN1+QKV, PatchMerging LN+reduction)
# --------------------------------------------------------------------------- #
def _ln_linear_kernel(x_ref, g_ref, b_ref, w_ref, wb_ref, o_ref, *, eps):
    x = x_ref[...]
    mu = jnp.mean(x, axis=-1, keepdims=True)
    xc = x - mu
    var = jnp.mean(xc * xc, axis=-1, keepdims=True)
    y = xc * jax.lax.rsqrt(var + eps) * g_ref[...] + b_ref[...]
    acc = (jnp.dot(y.astype(jnp.bfloat16), w_ref[...],
                   preferred_element_type=jnp.float32) + wb_ref[...])
    o_ref[...] = acc.astype(o_ref.dtype)


def fused_ln_linear(x, g, b, w, wb, out_dtype=jnp.float32, eps=_LN_EPS):
    """out = LayerNorm(x) @ w + wb ;  x:(M,K) f32, w:(K,N) bf16 (stored), wb:(N,) f32."""
    M, K = x.shape
    N = w.shape[1]
    tm = _pick_row_tile(M)
    return pl.pallas_call(
        functools.partial(_ln_linear_kernel, eps=eps),
        out_shape=jax.ShapeDtypeStruct((M, N), out_dtype),
        grid=(M // tm,),
        in_specs=[
            pl.BlockSpec((tm, K), lambda i: (i, 0)),
            _resident_spec((1, K)),
            _resident_spec((1, K)),
            _resident_spec((K, N)),
            _resident_spec((1, N)),
        ],
        out_specs=pl.BlockSpec((tm, N), lambda i: (i, 0)),
        compiler_params=pltpu.CompilerParams(
            dimension_semantics=("parallel",), vmem_limit_bytes=_VMEM_LIMIT),
    )(x, g.reshape(1, K), b.reshape(1, K), w, wb.reshape(1, N))


# --------------------------------------------------------------------------- #
# Kernel: fused Linear -> LayerNorm   (patch embedding conv-as-matmul + LN)
# --------------------------------------------------------------------------- #
def _linear_ln_kernel(x_ref, w_ref, wb_ref, g_ref, b_ref, o_ref, *, eps):
    z = (jnp.dot(x_ref[...].astype(jnp.bfloat16), w_ref[...],
                 preferred_element_type=jnp.float32) + wb_ref[...])
    mu = jnp.mean(z, axis=-1, keepdims=True)
    zc = z - mu
    var = jnp.mean(zc * zc, axis=-1, keepdims=True)
    o_ref[...] = (zc * jax.lax.rsqrt(var + eps) * g_ref[...] + b_ref[...]).astype(o_ref.dtype)


def fused_linear_ln(x, w, wb, g, b, eps=_LN_EPS):
    """y = LayerNorm(x @ w + wb) ;  x:(M,K) f32, w:(K,N) bf16 (stored)."""
    M, K = x.shape
    N = w.shape[1]
    tm = _pick_row_tile(M)
    return pl.pallas_call(
        functools.partial(_linear_ln_kernel, eps=eps),
        out_shape=jax.ShapeDtypeStruct((M, N), jnp.float32),
        grid=(M // tm,),
        in_specs=[
            pl.BlockSpec((tm, K), lambda i: (i, 0)),
            _resident_spec((K, N)),
            _resident_spec((1, N)),
            _resident_spec((1, N)),
            _resident_spec((1, N)),
        ],
        out_specs=pl.BlockSpec((tm, N), lambda i: (i, 0)),
        compiler_params=pltpu.CompilerParams(
            dimension_semantics=("parallel",), vmem_limit_bytes=_VMEM_LIMIT),
    )(x, w, wb.reshape(1, N), g.reshape(1, N), b.reshape(1, N))


# --------------------------------------------------------------------------- #
# Kernel B: window attention (all windows of one batch image per grid step)
# --------------------------------------------------------------------------- #
def _window_attn_kernel(qkv_ref, bias_ref, o_ref, *, heads):
    # qkv_ref: (1, nW, N, 3C) bf16 (q pre-scaled), bias_ref: (heads, nW, N, N) bf16
    # o_ref:   (1, nW, N, C)  bf16
    C3 = qkv_ref.shape[3]
    C = C3 // 3
    hd = C // heads

    qkv = qkv_ref[0]                                        # (nW, N, 3C) bf16
    outs = []
    for h in range(heads):                                  # small static unroll
        q = qkv[:, :, h * hd:(h + 1) * hd]
        k = qkv[:, :, C + h * hd:C + (h + 1) * hd]
        v = qkv[:, :, 2 * C + h * hd:2 * C + (h + 1) * hd]
        # window-batched QK^T, f32 accumulation; rel-pos bias (+ shift mask) resident
        s = jnp.einsum("wnd,wmd->wnm", q, k, preferred_element_type=jnp.float32)
        s = s + bias_ref[h]
        s = s - jnp.max(s, axis=-1, keepdims=True)
        p = jnp.exp(s)
        p = p * pl.reciprocal(jnp.sum(p, axis=-1, keepdims=True), approx=True)
        outs.append(jnp.einsum("wnm,wmd->wnd", p.astype(jnp.bfloat16), v,
                               preferred_element_type=jnp.float32))
    # head merge along lanes -> ONE lane-dense (nW, N, C) slab store
    o_ref[0] = jnp.concatenate(outs, axis=-1).astype(o_ref.dtype)


def pallas_window_attention(qkv_win, attn_bias, heads):
    """qkv_win: (B, nW, N, 3C) bf16, attn_bias: (heads, nW, N, N) bf16 -> (B,nW,N,C) bf16."""
    B, nW, N, C3 = qkv_win.shape
    C = C3 // 3
    return pl.pallas_call(
        functools.partial(_window_attn_kernel, heads=heads),
        out_shape=jax.ShapeDtypeStruct((B, nW, N, C), jnp.bfloat16),
        grid=(B,),
        in_specs=[
            pl.BlockSpec((1, nW, N, C3), lambda b: (b, 0, 0, 0)),
            _resident_spec((heads, nW, N, N)),
        ],
        out_specs=pl.BlockSpec((1, nW, N, C), lambda b: (b, 0, 0, 0)),
        compiler_params=pltpu.CompilerParams(
            dimension_semantics=("parallel",), vmem_limit_bytes=_VMEM_LIMIT),
    )(qkv_win, attn_bias)


# --------------------------------------------------------------------------- #
# Kernel C: proj + residual + LayerNorm2 + MLP(GELU) + residual, all fused
# --------------------------------------------------------------------------- #
def _block_tail_kernel(short_ref, attn_ref, pw_ref, pb_ref, g2_ref, b2_ref,
                       w1_ref, b1_ref, w2_ref, c2_ref, o_ref, *, eps):
    proj = (jnp.dot(attn_ref[...], pw_ref[...],
                    preferred_element_type=jnp.float32) + pb_ref[...])
    x1 = short_ref[...] + proj                              # residual 1 (fused)
    mu = jnp.mean(x1, axis=-1, keepdims=True)
    xc = x1 - mu
    var = jnp.mean(xc * xc, axis=-1, keepdims=True)
    y = xc * jax.lax.rsqrt(var + eps) * g2_ref[...] + b2_ref[...]
    h = (jnp.dot(y.astype(jnp.bfloat16), w1_ref[...],
                 preferred_element_type=jnp.float32) + b1_ref[...])
    h = 0.5 * h * (1.0 + jax.lax.erf(h * _SQRT_HALF))       # exact (erf) GELU
    o_ref[...] = x1 + (jnp.dot(h.astype(jnp.bfloat16), w2_ref[...],
                               preferred_element_type=jnp.float32) + c2_ref[...])


def fused_block_tail(shortcut, attn, p):
    """shortcut: (M,C) f32, attn: (M,C) bf16 -> (M,C) f32."""
    M, C = shortcut.shape
    Hd = p["fc1_w"].shape[1]
    tm = _pick_row_tile(M)
    row = pl.BlockSpec((tm, C), lambda i: (i, 0))
    return pl.pallas_call(
        functools.partial(_block_tail_kernel, eps=_LN_EPS),
        out_shape=jax.ShapeDtypeStruct((M, C), jnp.float32),
        grid=(M // tm,),
        in_specs=[
            row, row,
            _resident_spec((C, C)), _resident_spec((1, C)),
            _resident_spec((1, C)), _resident_spec((1, C)),
            _resident_spec((C, Hd)), _resident_spec((1, Hd)),
            _resident_spec((Hd, C)), _resident_spec((1, C)),
        ],
        out_specs=row,
        compiler_params=pltpu.CompilerParams(
            dimension_semantics=("parallel",), vmem_limit_bytes=_VMEM_LIMIT),
    )(shortcut, attn,
      p["proj_w"], p["proj_b"].reshape(1, C),
      p["norm2_g"].reshape(1, C), p["norm2_b"].reshape(1, C),
      p["fc1_w"], p["fc1_b"].reshape(1, Hd),
      p["fc2_w"], p["fc2_b"].reshape(1, C))


# --------------------------------------------------------------------------- #
# Parameter construction (deterministic, synthetic)
# --------------------------------------------------------------------------- #
class KeyGen:
    def __init__(self, seed):
        self._key = jax.random.PRNGKey(seed)

    def __call__(self):
        self._key, sub = jax.random.split(self._key)
        return sub


def _w(kg, shape):
    return 0.02 * jax.random.normal(kg(), shape, dtype=jnp.float32)


def relative_position_index(ws):
    coords = np.stack(np.meshgrid(np.arange(ws), np.arange(ws), indexing="ij"))
    flat = coords.reshape(2, -1)
    rel = (flat[:, :, None] - flat[:, None, :]).transpose(1, 2, 0).astype(np.int64)
    rel[:, :, 0] += ws - 1
    rel[:, :, 1] += ws - 1
    rel[:, :, 0] *= 2 * ws - 1
    return rel.sum(-1)                      # (N, N)


def compute_shift_mask(H, W, ws, shift):
    """Standard Swin SW-MSA attention mask, (nW, N, N) or None."""
    if shift == 0:
        return None
    img_mask = np.zeros((1, H, W, 1), dtype=np.float32)
    cnt = 0
    for hs in (slice(0, -ws), slice(-ws, -shift), slice(-shift, None)):
        for ws_ in (slice(0, -ws), slice(-ws, -shift), slice(-shift, None)):
            img_mask[:, hs, ws_, :] = cnt
            cnt += 1
    mw = img_mask.reshape(1, H // ws, ws, W // ws, ws, 1)
    mw = mw.transpose(0, 1, 3, 2, 4, 5).reshape(-1, ws * ws)
    attn_mask = mw[:, None, :] - mw[:, :, None]
    attn_mask = np.where(attn_mask != 0, -100.0, 0.0).astype(np.float32)
    return jnp.asarray(attn_mask)


def init_params(seed=0, in_chans=3, embed_dim=32, depths=(2, 2), num_heads=(2, 4),
                patch_size=4, window_size=2, mlp_ratio=2.0, img_size=16):
    kg = KeyGen(seed)
    conv_w = _w(kg, (embed_dim, in_chans, patch_size, patch_size))
    params = {
        "patch_embed": {
            # Conv2d(k=p, s=p) as im2col matmul: weight stored pre-reshaped, bf16
            "proj_w": conv_w.reshape(embed_dim, -1).T.astype(jnp.bfloat16),
            "proj_b": jnp.zeros((embed_dim,), jnp.float32),
            "norm_g": jnp.ones((embed_dim,), jnp.float32),
            "norm_b": jnp.zeros((embed_dim,), jnp.float32),
        },
        "embed_dim": embed_dim,
        "patch_size": patch_size,
    }
    layers = []
    res = img_size // patch_size
    for li, depth in enumerate(depths):
        dim = embed_dim * (2 ** li)
        heads = num_heads[li]
        ws = min(window_size, res)
        hidden = int(dim * mlp_ratio)
        N = ws * ws
        nW = (res // ws) ** 2
        hd = dim // heads
        scale = hd ** (-0.5)
        blocks = []
        for bi in range(depth):
            shift = 0 if (bi % 2 == 0) else window_size // 2
            if res <= window_size:
                shift = 0
            # rel-pos bias (+ shift mask) pre-combined, (heads, nW, N, N), bf16 resident
            table = _w(kg, ((2 * ws - 1) ** 2, heads))
            idx = relative_position_index(ws)
            rel_bias = table[idx.reshape(-1)].reshape(N, N, heads).transpose(2, 0, 1)
            mask = compute_shift_mask(res, res, ws, shift)
            if mask is not None:
                full = rel_bias[:, None, :, :] + mask[None, :, :, :]
            else:
                full = jnp.broadcast_to(rel_bias[:, None, :, :], (heads, nW, N, N))
            # fold the attention scale into the q columns of the qkv projection
            qkv_w = _w(kg, (dim, 3 * dim))
            qkv_b = jnp.zeros((3 * dim,), jnp.float32)
            col_scale = jnp.concatenate(
                [jnp.full((dim,), scale, jnp.float32),
                 jnp.ones((2 * dim,), jnp.float32)])
            blocks.append({
                "norm1_g": jnp.ones((dim,), jnp.float32),
                "norm1_b": jnp.zeros((dim,), jnp.float32),
                "qkv_w": (qkv_w * col_scale[None, :]).astype(jnp.bfloat16),
                "qkv_b": qkv_b * col_scale,
                "attn_bias": full.astype(jnp.bfloat16),
                "proj_w": _w(kg, (dim, dim)).astype(jnp.bfloat16),
                "proj_b": jnp.zeros((dim,), jnp.float32),
                "norm2_g": jnp.ones((dim,), jnp.float32),
                "norm2_b": jnp.zeros((dim,), jnp.float32),
                "fc1_w": _w(kg, (dim, hidden)).astype(jnp.bfloat16),
                "fc1_b": jnp.zeros((hidden,), jnp.float32),
                "fc2_w": _w(kg, (hidden, dim)).astype(jnp.bfloat16),
                "fc2_b": jnp.zeros((dim,), jnp.float32),
                "shift": shift, "window": ws, "heads": heads, "nW": nW,
            })
        layer = {"blocks": blocks, "resolution": res}
        if li < len(depths) - 1:
            layer["downsample"] = {
                "norm_g": jnp.ones((4 * dim,), jnp.float32),
                "norm_b": jnp.zeros((4 * dim,), jnp.float32),
                "red_w": _w(kg, (4 * dim, 2 * dim)).astype(jnp.bfloat16),  # bias=False
            }
            res = res // 2
        layers.append(layer)
    params["layers"] = layers
    return params


# --------------------------------------------------------------------------- #
# Forward pass (layout glue in JAX, all compute in fused Pallas kernels)
# --------------------------------------------------------------------------- #
def swin_block_forward(x, p, H, W):
    B, L, C = x.shape
    ws, shift, heads, nW = p["window"], p["shift"], p["heads"], p["nW"]
    N = ws * ws

    # layout glue on C-wide activations only: cyclic shift + window partition
    xg = x.reshape(B, H, W, C)
    if shift > 0:
        xg = jnp.roll(xg, shift=(-shift, -shift), axis=(1, 2))
    xw = xg.reshape(B, H // ws, ws, W // ws, ws, C)
    xw = xw.transpose(0, 1, 3, 2, 4, 5).reshape(B * nW * N, C)   # windowed token order

    # A) fused LN1 + QKV projection (q pre-scaled), bf16 intermediate
    qkv = fused_ln_linear(xw, p["norm1_g"], p["norm1_b"], p["qkv_w"], p["qkv_b"],
                          out_dtype=jnp.bfloat16)
    qkv = qkv.reshape(B, nW, N, 3 * C)                           # free (minor dims kept)

    # B) window attention (resident bf16 bias, single slab store), bf16 out
    attn = pallas_window_attention(qkv, p["attn_bias"], heads)   # (B, nW, N, C) bf16

    # C) fused proj + residual + LN2 + MLP(GELU) + residual (still in windowed order)
    out = fused_block_tail(xw, attn.reshape(B * nW * N, C), p)   # (B*L, C) f32

    # layout glue: window reverse + shift back
    og = out.reshape(B, H // ws, W // ws, ws, ws, C)
    og = og.transpose(0, 1, 3, 2, 4, 5).reshape(B, H, W, C)
    if shift > 0:
        og = jnp.roll(og, shift=(shift, shift), axis=(1, 2))
    return og.reshape(B, L, C)


def patch_merging_forward(x, p, H, W):
    B, L, C = x.shape
    xg = x.reshape(B, H, W, C)
    x0 = xg[:, 0::2, 0::2, :]
    x1 = xg[:, 1::2, 0::2, :]
    x2 = xg[:, 0::2, 1::2, :]
    x3 = xg[:, 1::2, 1::2, :]
    cat = jnp.concatenate([x0, x1, x2, x3], axis=-1).reshape(-1, 4 * C)
    out = fused_ln_linear(cat, p["norm_g"], p["norm_b"], p["red_w"],
                          jnp.zeros((2 * C,), jnp.float32))
    return out.reshape(B, (H // 2) * (W // 2), 2 * C)


def swin_encoder_forward(params, x):
    B, C, H, W = x.shape
    if C == 1:                                           # x = x.repeat(1, 3, 1, 1)
        x = jnp.repeat(x, 3, axis=1)
        C = 3

    # patch embedding: Conv2d(k=p, s=p) == im2col reshape + (matmul + LN fused)
    pe = params["patch_embed"]
    p_sz = params["patch_size"]
    embed_dim = params["embed_dim"]
    Hp, Wp = H // p_sz, W // p_sz
    patches = x.reshape(B, C, Hp, p_sz, Wp, p_sz)
    patches = patches.transpose(0, 2, 4, 1, 3, 5).reshape(B * Hp * Wp, C * p_sz * p_sz)
    tok = fused_linear_ln(patches, pe["proj_w"], pe["proj_b"], pe["norm_g"], pe["norm_b"])
    x = tok.reshape(B, Hp * Wp, embed_dim)

    # Swin layers
    for layer in params["layers"]:
        res = layer["resolution"]
        for blk in layer["blocks"]:
            x = swin_block_forward(x, blk, res, res)
        if "downsample" in layer:
            x = patch_merging_forward(x, layer["downsample"], res, res)
    return x


# --------------------------------------------------------------------------- #
if __name__ == "__main__":
    _buffered1_supported()            # prime the Buffered(1) capability probe eagerly

    key = jax.random.PRNGKey(0)
    # grayscale input exercises the x.repeat(1, 3, 1, 1) branch
    x = jax.random.normal(key, (2, 1, 16, 16), dtype=jnp.float32)

    params = init_params(seed=0, in_chans=3, embed_dim=32, depths=(2, 2),
                         num_heads=(2, 4), patch_size=4, window_size=2,
                         mlp_ratio=2.0, img_size=16)

    fwd = jax.jit(functools.partial(swin_encoder_forward, params))
    out = jax.block_until_ready(fwd(x))

    assert out.shape == (2, 4, 64), out.shape
    assert bool(jnp.all(jnp.isfinite(out)))
    print("KERNEL_OK")
</pallas_src>

<mosaic_0001>
module attributes {stable_mosaic.version = 11 : i64} {
  func.func @_k(%arg0: i32, %arg1: memref<8x128xf32, #tpu.memory_space<vmem>>, %arg2: memref<8x128xf32, #tpu.memory_space<vmem>>) attributes {dimension_semantics = [#tpu.dimension_semantics<arbitrary>], iteration_bounds = array<i64: 1>, scalar_prefetch = 0 : i64, scratch_operands = 0 : i64, tpu.core_type = #tpu.core_type<tc>, window_params = [{pipeline_mode = #tpu.pipeline_mode<synchronous>, transform_indices = @transform_0, window_bounds = array<i64: 8, 128>}, {pipeline_mode = #tpu.pipeline_mode<synchronous>, transform_indices = @transform_1, window_bounds = array<i64: 8, 128>}]} {
    %c0 = arith.constant 0 : index
    %c0_0 = arith.constant 0 : index
    %0 = vector.load %arg1[%c0, %c0_0] : memref<8x128xf32, #tpu.memory_space<vmem>>, vector<8x128xf32>
    %cst = arith.constant 1.000000e+00 : f32
    %1 = vector.broadcast %cst : f32 to vector<8x128xf32>
    %2 = arith.addf %0, %1 : vector<8x128xf32>
    %c0_1 = arith.constant 0 : index
    %c0_2 = arith.constant 0 : index
    %3 = vector.load %arg2[%c0_1, %c0_2] : memref<8x128xf32, #tpu.memory_space<vmem>>, vector<8x128xf32>
    tpu.vector_store %arg2[%c0_1, %c0_2], %2 {strides = array<i32>} : memref<8x128xf32, #tpu.memory_space<vmem>>, vector<8x128xf32>,
    return
  }
  func.func @transform_0(%arg0: i32) -> (i32, i32) {
    %c0_i32 = arith.constant 0 : i32
    %c0_i32_0 = arith.constant 0 : i32
    %c0_i32_1 = arith.constant 0 : i32
    return %c0_i32, %c0_i32_0 : i32, i32
  }
  func.func @transform_1(%arg0: i32) -> (i32, i32) {
    %c0_i32 = arith.constant 0 : i32
    %c0_i32_0 = arith.constant 0 : i32
    %c0_i32_1 = arith.constant 0 : i32
    return %c0_i32, %c0_i32_0 : i32, i32
  }
}

module attributes {stable_mosaic.version = 11 : i64} {
  func.func @_block_tail_kernel(%arg0: i32, %arg1: memref<16x32xf32, #tpu.memory_space<vmem>>, %arg2: memref<16x32xbf16, #tpu.memory_space<vmem>>, %arg3: memref<32x32xbf16, #tpu.memory_space<vmem>>, %arg4: memref<1x32xf32, #tpu.memory_space<vmem>>, %arg5: memref<1x32xf32, #tpu.memory_space<vmem>>, %arg6: memref<1x32xf32, #tpu.memory_space<vmem>>, %arg7: memref<32x64xbf16, #tpu.memory_space<vmem>>, %arg8: memref<1x64xf32, #tpu.memory_space<vmem>>, %arg9: memref<64x32xbf16, #tpu.memory_space<vmem>>, %arg10: memref<1x32xf32, #tpu.memory_space<vmem>>, %arg11: memref<16x32xf32, #tpu.memory_space<vmem>>) attributes {dimension_semantics = [#tpu.dimension_semantics<parallel>], iteration_bounds = array<i64: 2>, scalar_prefetch = 0 : i64, scratch_operands = 0 : i64, tpu.core_type = #tpu.core_type<tc>, window_params = [{transform_indices = @transform_0, window_bounds = array<i64: 16, 32>}, {transform_indices = @transform_1, window_bounds = array<i64: 16, 32>}, {pipeline_mode = #tpu.pipeline_mode<synchronous>, transform_indices = @transform_2, window_bounds = array<i64: 32, 32>}, {pipeline_mode = #tpu.pipeline_mode<synchronous>, transform_indices = @transform_3, window_bounds = array<i64: 1, 32>}, {pipeline_mode = #tpu.pipeline_mode<synchronous>, transform_indices = @transform_4, window_bounds = array<i64: 1, 32>}, {pipeline_mode = #tpu.pipeline_mode<synchronous>, transform_indices = @transform_5, window_bounds = array<i64: 1, 32>}, {pipeline_mode = #tpu.pipeline_mode<synchronous>, transform_indices = @transform_6, window_bounds = array<i64: 32, 64>}, {pipeline_mode = #tpu.pipeline_mode<synchronous>, transform_indices = @transform_7, window_bounds = array<i64: 1, 64>}, {pipeline_mode = #tpu.pipeline_mode<synchronous>, transform_indices = @transform_8, window_bounds = array<i64: 64, 32>}, {pipeline_mode = #tpu.pipeline_mode<synchronous>, transform_indices = @transform_9, window_bounds = array<i64: 1, 32>}, {transform_indices = @transform_10, window_bounds = array<i64: 16, 32>}]} {
    %c0 = arith.constant 0 : index
    %c0_0 = arith.constant 0 : index
    %0 = vector.load %arg2[%c0, %c0_0] : memref<16x32xbf16, #tpu.memory_space<vmem>>, vector<16x32xbf16>
    %c0_1 = arith.constant 0 : index
    %c0_2 = arith.constant 0 : index
    %1 = vector.load %arg3[%c0_1, %c0_2] : memref<32x32xbf16, #tpu.memory_space<vmem>>, vector<32x32xbf16>
    %cst = arith.constant dense<0.000000e+00> : vector<16x32xf32>
    %2 = tpu.matmul %0, %1, %cst {dimension_numbers = #tpu.dot_dimension_numbers<[1], [0], [0], [1], [0, 0, 1, 1], [], []>} : vector<16x32xbf16>, vector<32x32xbf16>, vector<16x32xf32> -> vector<16x32xf32>
    %c0_3 = arith.constant 0 : index
    %c0_4 = arith.constant 0 : index
    %3 = vector.load %arg4[%c0_3, %c0_4] : memref<1x32xf32, #tpu.memory_space<vmem>>, vector<1x32xf32>
    %4 = vector.broadcast %3 : vector<1x32xf32> to vector<16x32xf32>
    %5 = arith.addf %2, %4 : vector<16x32xf32>
    %c0_5 = arith.constant 0 : index
    %c0_6 = arith.constant 0 : index
    %6 = vector.load %arg1[%c0_5, %c0_6] : memref<16x32xf32, #tpu.memory_space<vmem>>, vector<16x32xf32>
    %7 = arith.addf %6, %5 : vector<16x32xf32>
    %cst_7 = arith.constant dense<0.000000e+00> : vector<16xf32>
    %8 = vector.multi_reduction <add>, %7, %cst_7 [1] : vector<16x32xf32> to vector<16xf32>
    %9 = vector.shape_cast %8 : vector<16xf32> to vector<16x1xf32>
    %cst_8 = arith.constant 3.200000e+01 : f32
    %10 = vector.broadcast %cst_8 : f32 to vector<16x1xf32>
    %11 = arith.divf %9, %10 : vector<16x1xf32>
    %12 = vector.broadcast %11 : vector<16x1xf32> to vector<16x32xf32>
    %13 = arith.subf %7, %12 : vector<16x32xf32>
    %14 = arith.mulf %13, %13 : vector<16x32xf32>
    %cst_9 = arith.constant dense<0.000000e+00> : vector<16xf32>
    %15 = vector.multi_reduction <add>, %14, %cst_9 [1] : vector<16x32xf32> to vector<16xf32>
    %16 = vector.shape_cast %15 : vector<16xf32> to vector<16x1xf32>
    %cst_10 = arith.constant 3.200000e+01 : f32
    %17 = vector.broadcast %cst_10 : f32 to vector<16x1xf32>
    %18 = arith.divf %16, %17 : vector<16x1xf32>
    %cst_11 = arith.constant 9.99999974E-6 : f32
    %19 = vector.broadcast %cst_11 : f32 to vector<16x1xf32>
    %20 = arith.addf %18, %19 : vector<16x1xf32>
    %21 = math.rsqrt %20 : vector<16x1xf32>
    %22 = vector.broadcast %21 : vector<16x1xf32> to vector<16x32xf32>
    %23 = arith.mulf %13, %22 : vector<16x32xf32>
    %c0_12 = arith.constant 0 : index
    %c0_13 = arith.constant 0 : index
    %24 = vector.load %arg5[%c0_12, %c0_13] : memref<1x32xf32, #tpu.memory_space<vmem>>, vector<1x32xf32>
    %25 = vector.broadcast %24 : vector<1x32xf32> to vector<16x32xf32>
    %26 = arith.mulf %23, %25 : vector<16x32xf32>
    %c0_14 = arith.constant 0 : index
    %c0_15 = arith.constant 0 : index
    %27 = vector.load %arg6[%c0_14, %c0_15] : memref<1x32xf32, #tpu.memory_space<vmem>>, vector<1x32xf32>
    %28 = vector.broadcast %27 : vector<1x32xf32> to vector<16x32xf32>
    %29 = arith.addf %26, %28 : vector<16x32xf32>
    %30 = arith.truncf %29 : vector<16x32xf32> to vector<16x32xbf16>
    %c0_16 = arith.constant 0 : index
    %c0_17 = arith.constant 0 : index
    %31 = vector.load %arg7[%c0_16, %c0_17] : memref<32x64xbf16, #tpu.memory_space<vmem>>, vector<32x64xbf16>
    %cst_18 = arith.constant dense<0.000000e+00> : vector<16x64xf32>
    %32 = tpu.matmul %30, %31, %cst_18 {dimension_numbers = #tpu.dot_dimension_numbers<[1], [0], [0], [1], [0, 0, 1, 1], [], []>} : vector<16x32xbf16>, vector<32x64xbf16>, vector<16x64xf32> -> vector<16x64xf32>
    %c0_19 = arith.constant 0 : index
    %c0_20 = arith.constant 0 : index
    %33 = vector.load %arg8[%c0_19, %c0_20] : memref<1x64xf32, #tpu.memory_space<vmem>>, vector<1x64xf32>
    %34 = vector.broadcast %33 : vector<1x64xf32> to vector<16x64xf32>
    %35 = arith.addf %32, %34 : vector<16x64xf32>
    %cst_21 = arith.constant 5.000000e-01 : f32
    %36 = vector.broadcast %cst_21 : f32 to vector<16x64xf32>
    %37 = arith.mulf %36, %35 : vector<16x64xf32>
    %cst_22 = arith.constant 0.707106769 : f32
    %38 = vector.broadcast %cst_22 : f32 to vector<16x64xf32>
    %39 = arith.mulf %35, %38 : vector<16x64xf32>
    %40 = math.erf %39 : vector<16x64xf32>
    %cst_23 = arith.constant 1.000000e+00 : f32
    %41 = vector.broadcast %cst_23 : f32 to vector<16x64xf32>
    %42 = arith.addf %41, %40 : vector<16x64xf32>
    %43 = arith.mulf %37, %42 : vector<16x64xf32>
    %44 = arith.truncf %43 : vector<16x64xf32> to vector<16x64xbf16>
    %c0_24 = arith.constant 0 : index
    %c0_25 = arith.constant 0 : index
    %45 = vector.load %arg9[%c0_24, %c0_25] : memref<64x32xbf16, #tpu.memory_space<vmem>>, vector<64x32xbf16>
    %cst_26 = arith.constant dense<0.000000e+00> : vector<16x32xf32>
    %46 = tpu.matmul %44, %45, %cst_26 {dimension_numbers = #tpu.dot_dimension_numbers<[1], [0], [0], [1], [0, 0, 1, 1], [], []>} : vector<16x64xbf16>, vector<64x32xbf16>, vector<16x32xf32> -> vector<16x32xf32>
    %c0_27 = arith.constant 0 : index
    %c0_28 = arith.constant 0 : index
    %47 = vector.load %arg10[%c0_27, %c0_28] : memref<1x32xf32, #tpu.memory_space<vmem>>, vector<1x32xf32>
    %48 = vector.broadcast %47 : vector<1x32xf32> to vector<16x32xf32>
    %49 = arith.addf %46, %48 : vector<16x32xf32>
    %50 = arith.addf %7, %49 : vector<16x32xf32>
    %c0_29 = arith.constant 0 : index
    %c0_30 = arith.constant 0 : index
    %51 = vector.load %arg11[%c0_29, %c0_30] : memref<16x32xf32, #tpu.memory_space<vmem>>, vector<16x32xf32>
    tpu.vector_store %arg11[%c0_29, %c0_30], %50 {strides = array<i32>} : memref<16x32xf32, #tpu.memory_space<vmem>>, vector<16x32xf32>,
    return
  }
  func.func @transform_0(%arg0: i32) -> (i32, i32) {
    %c0_i32 = arith.constant 0 : i32
    %c0_i32_0 = arith.constant 0 : i32
    return %arg0, %c0_i32 : i32, i32
  }
  func.func @transform_1(%arg0: i32) -> (i32, i32) {
    %c0_i32 = arith.constant 0 : i32
    %c0_i32_0 = arith.constant 0 : i32
    return %arg0, %c0_i32 : i32, i32
  }
  func.func @transform_2(%arg0: i32) -> (i32, i32) {
    %c0_i32 = arith.constant 0 : i32
    %c0_i32_0 = arith.constant 0 : i32
    %c0_i32_1 = arith.constant 0 : i32
    return %c0_i32, %c0_i32_0 : i32, i32
  }
  func.func @transform_3(%arg0: i32) -> (i32, i32) {
    %c0_i32 = arith.constant 0 : i32
    %c0_i32_0 = arith.constant 0 : i32
    %c0_i32_1 = arith.constant 0 : i32
    return %c0_i32, %c0_i32_0 : i32, i32
  }
  func.func @transform_4(%arg0: i32) -> (i32, i32) {
    %c0_i32 = arith.constant 0 : i32
    %c0_i32_0 = arith.constant 0 : i32
    %c0_i32_1 = arith.constant 0 : i32
    return %c0_i32, %c0_i32_0 : i32, i32
  }
  func.func @transform_5(%arg0: i32) -> (i32, i32) {
    %c0_i32 = arith.constant 0 : i32
    %c0_i32_0 = arith.constant 0 : i32
    %c0_i32_1 = arith.constant 0 : i32
    return %c0_i32, %c0_i32_0 : i32, i32
  }
  func.func @transform_6(%arg0: i32) -> (i32, i32) {
    %c0_i32 = arith.constant 0 : i32
    %c0_i32_0 = arith.constant 0 : i32
    %c0_i32_1 = arith.constant 0 : i32
    return %c0_i32, %c0_i32_0 : i32, i32
  }
  func.func @transform_7(%arg0: i32) -> (i32, i32) {
    %c0_i32 = arith.constant 0 : i32
    %c0_i32_0 = arith.constant 0 : i32
    %c0_i32_1 = arith.constant 0 : i32
    return %c0_i32, %c0_i32_0 : i32, i32
  }
  func.func @transform_8(%arg0: i32) -> (i32, i32) {
    %c0_i32 = arith.constant 0 : i32
    %c0_i32_0 = arith.constant 0 : i32
    %c0_i32_1 = arith.constant 0 : i32
    return %c0_i32, %c0_i32_0 : i32, i32
  }
  func.func @transform_9(%arg0: i32) -> (i32, i32) {
    %c0_i32 = arith.constant 0 : i32
    %c0_i32_0 = arith.constant 0 : i32
    %c0_i32_1 = arith.constant 0 : i32
    return %c0_i32, %c0_i32_0 : i32, i32
  }
  func.func @transform_10(%arg0: i32) -> (i32, i32) {
    %c0_i32 = arith.constant 0 : i32
    %c0_i32_0 = arith.constant 0 : i32
    return %arg0, %c0_i32 : i32, i32
  }
}

module attributes {stable_mosaic.version = 11 : i64} {
  func.func @_ln_linear_kernel(%arg0: i32, %arg1: memref<16x32xf32, #tpu.memory_space<vmem>>, %arg2: memref<1x32xf32, #tpu.memory_space<vmem>>, %arg3: memref<1x32xf32, #tpu.memory_space<vmem>>, %arg4: memref<32x96xbf16, #tpu.memory_space<vmem>>, %arg5: memref<1x96xf32, #tpu.memory_space<vmem>>, %arg6: memref<16x96xbf16, #tpu.memory_space<vmem>>) attributes {dimension_semantics = [#tpu.dimension_semantics<parallel>], iteration_bounds = array<i64: 2>, scalar_prefetch = 0 : i64, scratch_operands = 0 : i64, tpu.core_type = #tpu.core_type<tc>, window_params = [{transform_indices = @transform_0, window_bounds = array<i64: 16, 32>}, {pipeline_mode = #tpu.pipeline_mode<synchronous>, transform_indices = @transform_1, window_bounds = array<i64: 1, 32>}, {pipeline_mode = #tpu.pipeline_mode<synchronous>, transform_indices = @transform_2, window_bounds = array<i64: 1, 32>}, {pipeline_mode = #tpu.pipeline_mode<synchronous>, transform_indices = @transform_3, window_bounds = array<i64: 32, 96>}, {pipeline_mode = #tpu.pipeline_mode<synchronous>, transform_indices = @transform_4, window_bounds = array<i64: 1, 96>}, {transform_indices = @transform_5, window_bounds = array<i64: 16, 96>}]} {
    %c0 = arith.constant 0 : index
    %c0_0 = arith.constant 0 : index
    %0 = vector.load %arg1[%c0, %c0_0] : memref<16x32xf32, #tpu.memory_space<vmem>>, vector<16x32xf32>
    %cst = arith.constant dense<0.000000e+00> : vector<16xf32>
    %1 = vector.multi_reduction <add>, %0, %cst [1] : vector<16x32xf32> to vector<16xf32>
    %2 = vector.shape_cast %1 : vector<16xf32> to vector<16x1xf32>
    %cst_1 = arith.constant 3.200000e+01 : f32
    %3 = vector.broadcast %cst_1 : f32 to vector<16x1xf32>
    %4 = arith.divf %2, %3 : vector<16x1xf32>
    %5 = vector.broadcast %4 : vector<16x1xf32> to vector<16x32xf32>
    %6 = arith.subf %0, %5 : vector<16x32xf32>
    %7 = arith.mulf %6, %6 : vector<16x32xf32>
    %cst_2 = arith.constant dense<0.000000e+00> : vector<16xf32>
    %8 = vector.multi_reduction <add>, %7, %cst_2 [1] : vector<16x32xf32> to vector<16xf32>
    %9 = vector.shape_cast %8 : vector<16xf32> to vector<16x1xf32>
    %cst_3 = arith.constant 3.200000e+01 : f32
    %10 = vector.broadcast %cst_3 : f32 to vector<16x1xf32>
    %11 = arith.divf %9, %10 : vector<16x1xf32>
    %cst_4 = arith.constant 9.99999974E-6 : f32
    %12 = vector.broadcast %cst_4 : f32 to vector<16x1xf32>
    %13 = arith.addf %11, %12 : vector<16x1xf32>
    %14 = math.rsqrt %13 : vector<16x1xf32>
    %15 = vector.broadcast %14 : vector<16x1xf32> to vector<16x32xf32>
    %16 = arith.mulf %6, %15 : vector<16x32xf32>
    %c0_5 = arith.constant 0 : index
    %c0_6 = arith.constant 0 : index
    %17 = vector.load %arg2[%c0_5, %c0_6] : memref<1x32xf32, #tpu.memory_space<vmem>>, vector<1x32xf32>
    %18 = vector.broadcast %17 : vector<1x32xf32> to vector<16x32xf32>
    %19 = arith.mulf %16, %18 : vector<16x32xf32>
    %c0_7 = arith.constant 0 : index
    %c0_8 = arith.constant 0 : index
    %20 = vector.load %arg3[%c0_7, %c0_8] : memref<1x32xf32, #tpu.memory_space<vmem>>, vector<1x32xf32>
    %21 = vector.broadcast %20 : vector<1x32xf32> to vector<16x32xf32>
    %22 = arith.addf %19, %21 : vector<16x32xf32>
    %23 = arith.truncf %22 : vector<16x32xf32> to vector<16x32xbf16>
    %c0_9 = arith.constant 0 : index
    %c0_10 = arith.constant 0 : index
    %24 = vector.load %arg4[%c0_9, %c0_10] : memref<32x96xbf16, #tpu.memory_space<vmem>>, vector<32x96xbf16>
    %cst_11 = arith.constant dense<0.000000e+00> : vector<16x96xf32>
    %25 = tpu.matmul %23, %24, %cst_11 {dimension_numbers = #tpu.dot_dimension_numbers<[1], [0], [0], [1], [0, 0, 1, 1], [], []>} : vector<16x32xbf16>, vector<32x96xbf16>, vector<16x96xf32> -> vector<16x96xf32>
    %c0_12 = arith.constant 0 : index
    %c0_13 = arith.constant 0 : index
    %26 = vector.load %arg5[%c0_12, %c0_13] : memref<1x96xf32, #tpu.memory_space<vmem>>, vector<1x96xf32>
    %27 = vector.broadcast %26 : vector<1x96xf32> to vector<16x96xf32>
    %28 = arith.addf %25, %27 : vector<16x96xf32>
    %29 = arith.truncf %28 : vector<16x96xf32> to vector<16x96xbf16>
    %c0_14 = arith.constant 0 : index
    %c0_15 = arith.constant 0 : index
    %30 = vector.load %arg6[%c0_14, %c0_15] : memref<16x96xbf16, #tpu.memory_space<vmem>>, vector<16x96xbf16>
    tpu.vector_store %arg6[%c0_14, %c0_15], %29 {strides = array<i32>} : memref<16x96xbf16, #tpu.memory_space<vmem>>, vector<16x96xbf16>,
    return
  }
  func.func @transform_0(%arg0: i32) -> (i32, i32) {
    %c0_i32 = arith.constant 0 : i32
    %c0_i32_0 = arith.constant 0 : i32
    return %arg0, %c0_i32 : i32, i32
  }
  func.func @transform_1(%arg0: i32) -> (i32, i32) {
    %c0_i32 = arith.constant 0 : i32
    %c0_i32_0 = arith.constant 0 : i32
    %c0_i32_1 = arith.constant 0 : i32
    return %c0_i32, %c0_i32_0 : i32, i32
  }
  func.func @transform_2(%arg0: i32) -> (i32, i32) {
    %c0_i32 = arith.constant 0 : i32
    %c0_i32_0 = arith.constant 0 : i32
    %c0_i32_1 = arith.constant 0 : i32
    return %c0_i32, %c0_i32_0 : i32, i32
  }
  func.func @transform_3(%arg0: i32) -> (i32, i32) {
    %c0_i32 = arith.constant 0 : i32
    %c0_i32_0 = arith.constant 0 : i32
    %c0_i32_1 = arith.constant 0 : i32
    return %c0_i32, %c0_i32_0 : i32, i32
  }
  func.func @transform_4(%arg0: i32) -> (i32, i32) {
    %c0_i32 = arith.constant 0 : i32
    %c0_i32_0 = arith.constant 0 : i32
    %c0_i32_1 = arith.constant 0 : i32
    return %c0_i32, %c0_i32_0 : i32, i32
  }
  func.func @transform_5(%arg0: i32) -> (i32, i32) {
    %c0_i32 = arith.constant 0 : i32
    %c0_i32_0 = arith.constant 0 : i32
    return %arg0, %c0_i32 : i32, i32
  }
}

module attributes {stable_mosaic.version = 11 : i64} {
  func.func @_window_attn_kernel(%arg0: i32, %arg1: memref<1x4x4x96xbf16, #tpu.memory_space<vmem>>, %arg2: memref<2x4x4x4xbf16, #tpu.memory_space<vmem>>, %arg3: memref<1x4x4x32xbf16, #tpu.memory_space<vmem>>) attributes {dimension_semantics = [#tpu.dimension_semantics<parallel>], iteration_bounds = array<i64: 2>, scalar_prefetch = 0 : i64, scratch_operands = 0 : i64, tpu.core_type = #tpu.core_type<tc>, window_params = [{transform_indices = @transform_0, window_bounds = array<i64: 1, 4, 4, 96>}, {pipeline_mode = #tpu.pipeline_mode<synchronous>, transform_indices = @transform_1, window_bounds = array<i64: 2, 4, 4, 4>}, {transform_indices = @transform_2, window_bounds = array<i64: 1, 4, 4, 32>}]} {
    %c0 = arith.constant 0 : index
    %c0_0 = arith.constant 0 : index
    %c0_1 = arith.constant 0 : index
    %c0_2 = arith.constant 0 : index
    %0 = vector.load %arg1[%c0, %c0_0, %c0_1, %c0_2] : memref<1x4x4x96xbf16, #tpu.memory_space<vmem>>, vector<1x4x4x96xbf16>
    %1 = vector.shape_cast %0 : vector<1x4x4x96xbf16> to vector<4x4x96xbf16>
    %2 = vector.extract_strided_slice %1 {offsets = [0, 0, 0], sizes = [4, 4, 16], strides = [1, 1, 1]} : vector<4x4x96xbf16> to vector<4x4x16xbf16>
    %3 = vector.extract_strided_slice %1 {offsets = [0, 0, 32], sizes = [4, 4, 16], strides = [1, 1, 1]} : vector<4x4x96xbf16> to vector<4x4x16xbf16>
    %4 = vector.extract_strided_slice %1 {offsets = [0, 0, 64], sizes = [4, 4, 16], strides = [1, 1, 1]} : vector<4x4x96xbf16> to vector<4x4x16xbf16>
    "tpu.trace_start"() <{level = 10 : i32, message = "wnd,wmd->wnm"}> : () -> ()
    %cst = arith.constant dense<0.000000e+00> : vector<4x4x4xf32>
    %5 = tpu.matmul %2, %3, %cst {dimension_numbers = #tpu.dot_dimension_numbers<[2], [2], [1], [1], [0, 0, 0, 1, 1, 1], [0], [0]>} : vector<4x4x16xbf16>, vector<4x4x16xbf16>, vector<4x4x4xf32> -> vector<4x4x4xf32>
    "tpu.trace_stop"() : () -> ()
    %c0_3 = arith.constant 0 : index
    %c0_4 = arith.constant 0 : index
    %c0_5 = arith.constant 0 : index
    %c0_6 = arith.constant 0 : index
    %6 = vector.load %arg2[%c0_3, %c0_4, %c0_5, %c0_6] : memref<2x4x4x4xbf16, #tpu.memory_space<vmem>>, vector<1x4x4x4xbf16>
    %7 = vector.shape_cast %6 : vector<1x4x4x4xbf16> to vector<4x4x4xbf16>
    %8 = arith.extf %7 : vector<4x4x4xbf16> to vector<4x4x4xf32>
    %9 = arith.addf %5, %8 : vector<4x4x4xf32>
    %cst_7 = arith.constant dense<0xFF800000> : vector<4x4xf32>
    %10 = vector.multi_reduction <maximumf>, %9, %cst_7 [2] : vector<4x4x4xf32> to vector<4x4xf32>
    %11 = vector.shape_cast %10 : vector<4x4xf32> to vector<4x4x1xf32>
    %12 = vector.broadcast %11 : vector<4x4x1xf32> to vector<4x4x4xf32>
    %13 = arith.subf %9, %12 : vector<4x4x4xf32>
    %14 = math.exp %13 : vector<4x4x4xf32>
    %cst_8 = arith.constant dense<0.000000e+00> : vector<4x4xf32>
    %15 = vector.multi_reduction <add>, %14, %cst_8 [2] : vector<4x4x4xf32> to vector<4x4xf32>
    %16 = vector.shape_cast %15 : vector<4x4xf32> to vector<4x4x1xf32>
    %17 = tpu.reciprocal %16 {approx = true} : vector<4x4x1xf32> -> vector<4x4x1xf32>
    %18 = vector.broadcast %17 : vector<4x4x1xf32> to vector<4x4x4xf32>
    %19 = arith.mulf %14, %18 : vector<4x4x4xf32>
    %20 = arith.truncf %19 : vector<4x4x4xf32> to vector<4x4x4xbf16>
    "tpu.trace_start"() <{level = 10 : i32, message = "wnm,wmd->wnd"}> : () -> ()
    %cst_9 = arith.constant dense<0.000000e+00> : vector<4x4x16xf32>
    %21 = tpu.matmul %20, %4, %cst_9 {dimension_numbers = #tpu.dot_dimension_numbers<[2], [1], [1], [2], [0, 0, 0, 1, 1, 2], [0], [0]>} : vector<4x4x4xbf16>, vector<4x4x16xbf16>, vector<4x4x16xf32> -> vector<4x4x16xf32>
    "tpu.trace_stop"() : () -> ()
    %22 = vector.extract_strided_slice %1 {offsets = [0, 0, 16], sizes = [4, 4, 16], strides = [1, 1, 1]} : vector<4x4x96xbf16> to vector<4x4x16xbf16>
    %23 = vector.extract_strided_slice %1 {offsets = [0, 0, 48], sizes = [4, 4, 16], strides = [1, 1, 1]} : vector<4x4x96xbf16> to vector<4x4x16xbf16>
    %24 = vector.extract_strided_slice %1 {offsets = [0, 0, 80], sizes = [4, 4, 16], strides = [1, 1, 1]} : vector<4x4x96xbf16> to vector<4x4x16xbf16>
    "tpu.trace_start"() <{level = 10 : i32, message = "wnd,wmd->wnm"}> : () -> ()
    %cst_10 = arith.constant dense<0.000000e+00> : vector<4x4x4xf32>
    %25 = tpu.matmul %22, %23, %cst_10 {dimension_numbers = #tpu.dot_dimension_numbers<[2], [2], [1], [1], [0, 0, 0, 1, 1, 1], [0], [0]>} : vector<4x4x16xbf16>, vector<4x4x16xbf16>, vector<4x4x4xf32> -> vector<4x4x4xf32>
    "tpu.trace_stop"() : () -> ()
    %c1 = arith.constant 1 : index
    %c0_11 = arith.constant 0 : index
    %c0_12 = arith.constant 0 : index
    %c0_13 = arith.constant 0 : index
    %26 = vector.load %arg2[%c1, %c0_11, %c0_12, %c0_13] : memref<2x4x4x4xbf16, #tpu.memory_space<vmem>>, vector<1x4x4x4xbf16>
    %27 = vector.shape_cast %26 : vector<1x4x4x4xbf16> to vector<4x4x4xbf16>
    %28 = arith.extf %27 : vector<4x4x4xbf16> to vector<4x4x4xf32>
    %29 = arith.addf %25, %28 : vector<4x4x4xf32>
    %cst_14 = arith.constant dense<0xFF800000> : vector<4x4xf32>
    %30 = vector.multi_reduction <maximumf>, %29, %cst_14 [2] : vector<4x4x4xf32> to vector<4x4xf32>
    %31 = vector.shape_cast %30 : vector<4x4xf32> to vector<4x4x1xf32>
    %32 = vector.broadcast %31 : vector<4x4x1xf32> to vector<4x4x4xf32>
    %33 = arith.subf %29, %32 : vector<4x4x4xf32>
    %34 = math.exp %33 : vector<4x4x4xf32>
    %cst_15 = arith.constant dense<0.000000e+00> : vector<4x4xf32>
    %35 = vector.multi_reduction <add>, %34, %cst_15 [2] : vector<4x4x4xf32> to vector<4x4xf32>
    %36 = vector.shape_cast %35 : vector<4x4xf32> to vector<4x4x1xf32>
    %37 = tpu.reciprocal %36 {approx = true} : vector<4x4x1xf32> -> vector<4x4x1xf32>
    %38 = vector.broadcast %37 : vector<4x4x1xf32> to vector<4x4x4xf32>
    %39 = arith.mulf %34, %38 : vector<4x4x4xf32>
    %40 = arith.truncf %39 : vector<4x4x4xf32> to vector<4x4x4xbf16>
    "tpu.trace_start"() <{level = 10 : i32, message = "wnm,wmd->wnd"}> : () -> ()
    %cst_16 = arith.constant dense<0.000000e+00> : vector<4x4x16xf32>
    %41 = tpu.matmul %40, %24, %cst_16 {dimension_numbers = #tpu.dot_dimension_numbers<[2], [1], [1], [2], [0, 0, 0, 1, 1, 2], [0], [0]>} : vector<4x4x4xbf16>, vector<4x4x16xbf16>, vector<4x4x16xf32> -> vector<4x4x16xf32>
    "tpu.trace_stop"() : () -> ()
    %42 = tpu.concatenate %21, %41 in 2 : vector<4x4x16xf32>, vector<4x4x16xf32> -> vector<4x4x32xf32>
    %43 = arith.truncf %42 : vector<4x4x32xf32> to vector<4x4x32xbf16>
    %c0_17 = arith.constant 0 : index
    %c0_18 = arith.constant 0 : index
    %c0_19 = arith.constant 0 : index
    %c0_20 = arith.constant 0 : index
    %44 = vector.load %arg3[%c0_17, %c0_18, %c0_19, %c0_20] : memref<1x4x4x32xbf16, #tpu.memory_space<vmem>>, vector<1x4x4x32xbf16>
    %45 = vector.shape_cast %44 : vector<1x4x4x32xbf16> to vector<4x4x32xbf16>
    %46 = vector.shape_cast %43 : vector<4x4x32xbf16> to vector<1x4x4x32xbf16>
    tpu.vector_store %arg3[%c0_17, %c0_18, %c0_19, %c0_20], %46 {strides = array<i32>} : memref<1x4x4x32xbf16, #tpu.memory_space<vmem>>, vector<1x4x4x32xbf16>,
    return
  }
  func.func @transform_0(%arg0: i32) -> (i32, i32, i32, i32) {
    %c0_i32 = arith.constant 0 : i32
    %c0_i32_0 = arith.constant 0 : i32
    %c0_i32_1 = arith.constant 0 : i32
    %c0_i32_2 = arith.constant 0 : i32
    return %arg0, %c0_i32, %c0_i32_0, %c0_i32_1 : i32, i32, i32, i32
  }
  func.func @transform_1(%arg0: i32) -> (i32, i32, i32, i32) {
    %c0_i32 = arith.constant 0 : i32
    %c0_i32_0 = arith.constant 0 : i32
    %c0_i32_1 = arith.constant 0 : i32
    %c0_i32_2 = arith.constant 0 : i32
    %c0_i32_3 = arith.constant 0 : i32
    return %c0_i32, %c0_i32_0, %c0_i32_1, %c0_i32_2 : i32, i32, i32, i32
  }
  func.func @transform_2(%arg0: i32) -> (i32, i32, i32, i32) {
    %c0_i32 = arith.constant 0 : i32
    %c0_i32_0 = arith.constant 0 : i32
    %c0_i32_1 = arith.constant 0 : i32
    %c0_i32_2 = arith.constant 0 : i32
    return %arg0, %c0_i32, %c0_i32_0, %c0_i32_1 : i32, i32, i32, i32
  }
}

module attributes {stable_mosaic.version = 11 : i64} {
  func.func @_linear_ln_kernel(%arg0: i32, %arg1: memref<16x48xf32, #tpu.memory_space<vmem>>, %arg2: memref<48x32xbf16, #tpu.memory_space<vmem>>, %arg3: memref<1x32xf32, #tpu.memory_space<vmem>>, %arg4: memref<1x32xf32, #tpu.memory_space<vmem>>, %arg5: memref<1x32xf32, #tpu.memory_space<vmem>>, %arg6: memref<16x32xf32, #tpu.memory_space<vmem>>) attributes {dimension_semantics = [#tpu.dimension_semantics<parallel>], iteration_bounds = array<i64: 2>, scalar_prefetch = 0 : i64, scratch_operands = 0 : i64, tpu.core_type = #tpu.core_type<tc>, window_params = [{transform_indices = @transform_0, window_bounds = array<i64: 16, 48>}, {pipeline_mode = #tpu.pipeline_mode<synchronous>, transform_indices = @transform_1, window_bounds = array<i64: 48, 32>}, {pipeline_mode = #tpu.pipeline_mode<synchronous>, transform_indices = @transform_2, window_bounds = array<i64: 1, 32>}, {pipeline_mode = #tpu.pipeline_mode<synchronous>, transform_indices = @transform_3, window_bounds = array<i64: 1, 32>}, {pipeline_mode = #tpu.pipeline_mode<synchronous>, transform_indices = @transform_4, window_bounds = array<i64: 1, 32>}, {transform_indices = @transform_5, window_bounds = array<i64: 16, 32>}]} {
    %c0 = arith.constant 0 : index
    %c0_0 = arith.constant 0 : index
    %0 = vector.load %arg1[%c0, %c0_0] : memref<16x48xf32, #tpu.memory_space<vmem>>, vector<16x48xf32>
    %1 = arith.truncf %0 : vector<16x48xf32> to vector<16x48xbf16>
    %c0_1 = arith.constant 0 : index
    %c0_2 = arith.constant 0 : index
    %2 = vector.load %arg2[%c0_1, %c0_2] : memref<48x32xbf16, #tpu.memory_space<vmem>>, vector<48x32xbf16>
    %cst = arith.constant dense<0.000000e+00> : vector<16x32xf32>
    %3 = tpu.matmul %1, %2, %cst {dimension_numbers = #tpu.dot_dimension_numbers<[1], [0], [0], [1], [0, 0, 1, 1], [], []>} : vector<16x48xbf16>, vector<48x32xbf16>, vector<16x32xf32> -> vector<16x32xf32>
    %c0_3 = arith.constant 0 : index
    %c0_4 = arith.constant 0 : index
    %4 = vector.load %arg3[%c0_3, %c0_4] : memref<1x32xf32, #tpu.memory_space<vmem>>, vector<1x32xf32>
    %5 = vector.broadcast %4 : vector<1x32xf32> to vector<16x32xf32>
    %6 = arith.addf %3, %5 : vector<16x32xf32>
    %cst_5 = arith.constant dense<0.000000e+00> : vector<16xf32>
    %7 = vector.multi_reduction <add>, %6, %cst_5 [1] : vector<16x32xf32> to vector<16xf32>
    %8 = vector.shape_cast %7 : vector<16xf32> to vector<16x1xf32>
    %cst_6 = arith.constant 3.200000e+01 : f32
    %9 = vector.broadcast %cst_6 : f32 to vector<16x1xf32>
    %10 = arith.divf %8, %9 : vector<16x1xf32>
    %11 = vector.broadcast %10 : vector<16x1xf32> to vector<16x32xf32>
    %12 = arith.subf %6, %11 : vector<16x32xf32>
    %13 = arith.mulf %12, %12 : vector<16x32xf32>
    %cst_7 = arith.constant dense<0.000000e+00> : vector<16xf32>
    %14 = vector.multi_reduction <add>, %13, %cst_7 [1] : vector<16x32xf32> to vector<16xf32>
    %15 = vector.shape_cast %14 : vector<16xf32> to vector<16x1xf32>
    %cst_8 = arith.constant 3.200000e+01 : f32
    %16 = vector.broadcast %cst_8 : f32 to vector<16x1xf32>
    %17 = arith.divf %15, %16 : vector<16x1xf32>
    %cst_9 = arith.constant 9.99999974E-6 : f32
    %18 = vector.broadcast %cst_9 : f32 to vector<16x1xf32>
    %19 = arith.addf %17, %18 : vector<16x1xf32>
    %20 = math.rsqrt %19 : vector<16x1xf32>
    %21 = vector.broadcast %20 : vector<16x1xf32> to vector<16x32xf32>
    %22 = arith.mulf %12, %21 : vector<16x32xf32>
    %c0_10 = arith.constant 0 : index
    %c0_11 = arith.constant 0 : index
    %23 = vector.load %arg4[%c0_10, %c0_11] : memref<1x32xf32, #tpu.memory_space<vmem>>, vector<1x32xf32>
    %24 = vector.broadcast %23 : vector<1x32xf32> to vector<16x32xf32>
    %25 = arith.mulf %22, %24 : vector<16x32xf32>
    %c0_12 = arith.constant 0 : index
    %c0_13 = arith.constant 0 : index
    %26 = vector.load %arg5[%c0_12, %c0_13] : memref<1x32xf32, #tpu.memory_space<vmem>>, vector<1x32xf32>
    %27 = vector.broadcast %26 : vector<1x32xf32> to vector<16x32xf32>
    %28 = arith.addf %25, %27 : vector<16x32xf32>
    %c0_14 = arith.constant 0 : index
    %c0_15 = arith.constant 0 : index
    %29 = vector.load %arg6[%c0_14, %c0_15] : memref<16x32xf32, #tpu.memory_space<vmem>>, vector<16x32xf32>
    tpu.vector_store %arg6[%c0_14, %c0_15], %28 {strides = array<i32>} : memref<16x32xf32, #tpu.memory_space<vmem>>, vector<16x32xf32>,
    return
  }
  func.func @transform_0(%arg0: i32) -> (i32, i32) {
    %c0_i32 = arith.constant 0 : i32
    %c0_i32_0 = arith.constant 0 : i32
    return %arg0, %c0_i32 : i32, i32
  }
  func.func @transform_1(%arg0: i32) -> (i32, i32) {
    %c0_i32 = arith.constant 0 : i32
    %c0_i32_0 = arith.constant 0 : i32
    %c0_i32_1 = arith.constant 0 : i32
    return %c0_i32, %c0_i32_0 : i32, i32
  }
  func.func @transform_2(%arg0: i32) -> (i32, i32) {
    %c0_i32 = arith.constant 0 : i32
    %c0_i32_0 = arith.constant 0 : i32
    %c0_i32_1 = arith.constant 0 : i32
    return %c0_i32, %c0_i32_0 : i32, i32
  }
  func.func @transform_3(%arg0: i32) -> (i32, i32) {
    %c0_i32 = arith.constant 0 : i32
    %c0_i32_0 = arith.constant 0 : i32
    %c0_i32_1 = arith.constant 0 : i32
    return %c0_i32, %c0_i32_0 : i32, i32
  }
  func.func @transform_4(%arg0: i32) -> (i32, i32) {
    %c0_i32 = arith.constant 0 : i32
    %c0_i32_0 = arith.constant 0 : i32
    %c0_i32_1 = arith.constant 0 : i32
    return %c0_i32, %c0_i32_0 : i32, i32
  }
  func.func @transform_5(%arg0: i32) -> (i32, i32) {
    %c0_i32 = arith.constant 0 : i32
    %c0_i32_0 = arith.constant 0 : i32
    return %arg0, %c0_i32 : i32, i32
  }
}

module attributes {stable_mosaic.version = 11 : i64} {
  func.func @_block_tail_kernel(%arg0: i32, %arg1: memref<8x64xf32, #tpu.memory_space<vmem>>, %arg2: memref<8x64xbf16, #tpu.memory_space<vmem>>, %arg3: memref<64x64xbf16, #tpu.memory_space<vmem>>, %arg4: memref<1x64xf32, #tpu.memory_space<vmem>>, %arg5: memref<1x64xf32, #tpu.memory_space<vmem>>, %arg6: memref<1x64xf32, #tpu.memory_space<vmem>>, %arg7: memref<64x128xbf16, #tpu.memory_space<vmem>>, %arg8: memref<1x128xf32, #tpu.memory_space<vmem>>, %arg9: memref<128x64xbf16, #tpu.memory_space<vmem>>, %arg10: memref<1x64xf32, #tpu.memory_space<vmem>>, %arg11: memref<8x64xf32, #tpu.memory_space<vmem>>) attributes {dimension_semantics = [#tpu.dimension_semantics<parallel>], iteration_bounds = array<i64: 1>, scalar_prefetch = 0 : i64, scratch_operands = 0 : i64, tpu.core_type = #tpu.core_type<tc>, window_params = [{transform_indices = @transform_0, window_bounds = array<i64: 8, 64>}, {transform_indices = @transform_1, window_bounds = array<i64: 8, 64>}, {pipeline_mode = #tpu.pipeline_mode<synchronous>, transform_indices = @transform_2, window_bounds = array<i64: 64, 64>}, {pipeline_mode = #tpu.pipeline_mode<synchronous>, transform_indices = @transform_3, window_bounds = array<i64: 1, 64>}, {pipeline_mode = #tpu.pipeline_mode<synchronous>, transform_indices = @transform_4, window_bounds = array<i64: 1, 64>}, {pipeline_mode = #tpu.pipeline_mode<synchronous>, transform_indices = @transform_5, window_bounds = array<i64: 1, 64>}, {pipeline_mode = #tpu.pipeline_mode<synchronous>, transform_indices = @transform_6, window_bounds = array<i64: 64, 128>}, {pipeline_mode = #tpu.pipeline_mode<synchronous>, transform_indices = @transform_7, window_bounds = array<i64: 1, 128>}, {pipeline_mode = #tpu.pipeline_mode<synchronous>, transform_indices = @transform_8, window_bounds = array<i64: 128, 64>}, {pipeline_mode = #tpu.pipeline_mode<synchronous>, transform_indices = @transform_9, window_bounds = array<i64: 1, 64>}, {transform_indices = @transform_10, window_bounds = array<i64: 8, 64>}]} {
    %c0 = arith.constant 0 : index
    %c0_0 = arith.constant 0 : index
    %0 = vector.load %arg2[%c0, %c0_0] : memref<8x64xbf16, #tpu.memory_space<vmem>>, vector<8x64xbf16>
    %c0_1 = arith.constant 0 : index
    %c0_2 = arith.constant 0 : index
    %1 = vector.load %arg3[%c0_1, %c0_2] : memref<64x64xbf16, #tpu.memory_space<vmem>>, vector<64x64xbf16>
    %cst = arith.constant dense<0.000000e+00> : vector<8x64xf32>
    %2 = tpu.matmul %0, %1, %cst {dimension_numbers = #tpu.dot_dimension_numbers<[1], [0], [0], [1], [0, 0, 1, 1], [], []>} : vector<8x64xbf16>, vector<64x64xbf16>, vector<8x64xf32> -> vector<8x64xf32>
    %c0_3 = arith.constant 0 : index
    %c0_4 = arith.constant 0 : index
    %3 = vector.load %arg4[%c0_3, %c0_4] : memref<1x64xf32, #tpu.memory_space<vmem>>, vector<1x64xf32>
    %4 = vector.broadcast %3 : vector<1x64xf32> to vector<8x64xf32>
    %5 = arith.addf %2, %4 : vector<8x64xf32>
    %c0_5 = arith.constant 0 : index
    %c0_6 = arith.constant 0 : index
    %6 = vector.load %arg1[%c0_5, %c0_6] : memref<8x64xf32, #tpu.memory_space<vmem>>, vector<8x64xf32>
    %7 = arith.addf %6, %5 : vector<8x64xf32>
    %cst_7 = arith.constant dense<0.000000e+00> : vector<8xf32>
    %8 = vector.multi_reduction <add>, %7, %cst_7 [1] : vector<8x64xf32> to vector<8xf32>
    %9 = vector.shape_cast %8 : vector<8xf32> to vector<8x1xf32>
    %cst_8 = arith.constant 6.400000e+01 : f32
    %10 = vector.broadcast %cst_8 : f32 to vector<8x1xf32>
    %11 = arith.divf %9, %10 : vector<8x1xf32>
    %12 = vector.broadcast %11 : vector<8x1xf32> to vector<8x64xf32>
    %13 = arith.subf %7, %12 : vector<8x64xf32>
    %14 = arith.mulf %13, %13 : vector<8x64xf32>
    %cst_9 = arith.constant dense<0.000000e+00> : vector<8xf32>
    %15 = vector.multi_reduction <add>, %14, %cst_9 [1] : vector<8x64xf32> to vector<8xf32>
    %16 = vector.shape_cast %15 : vector<8xf32> to vector<8x1xf32>
    %cst_10 = arith.constant 6.400000e+01 : f32
    %17 = vector.broadcast %cst_10 : f32 to vector<8x1xf32>
    %18 = arith.divf %16, %17 : vector<8x1xf32>
    %cst_11 = arith.constant 9.99999974E-6 : f32
    %19 = vector.broadcast %cst_11 : f32 to vector<8x1xf32>
    %20 = arith.addf %18, %19 : vector<8x1xf32>
    %21 = math.rsqrt %20 : vector<8x1xf32>
    %22 = vector.broadcast %21 : vector<8x1xf32> to vector<8x64xf32>
    %23 = arith.mulf %13, %22 : vector<8x64xf32>
    %c0_12 = arith.constant 0 : index
    %c0_13 = arith.constant 0 : index
    %24 = vector.load %arg5[%c0_12, %c0_13] : memref<1x64xf32, #tpu.memory_space<vmem>>, vector<1x64xf32>
    %25 = vector.broadcast %24 : vector<1x64xf32> to vector<8x64xf32>
    %26 = arith.mulf %23, %25 : vector<8x64xf32>
    %c0_14 = arith.constant 0 : index
    %c0_15 = arith.constant 0 : index
    %27 = vector.load %arg6[%c0_14, %c0_15] : memref<1x64xf32, #tpu.memory_space<vmem>>, vector<1x64xf32>
    %28 = vector.broadcast %27 : vector<1x64xf32> to vector<8x64xf32>
    %29 = arith.addf %26, %28 : vector<8x64xf32>
    %30 = arith.truncf %29 : vector<8x64xf32> to vector<8x64xbf16>
    %c0_16 = arith.constant 0 : index
    %c0_17 = arith.constant 0 : index
    %31 = vector.load %arg7[%c0_16, %c0_17] : memref<64x128xbf16, #tpu.memory_space<vmem>>, vector<64x128xbf16>
    %cst_18 = arith.constant dense<0.000000e+00> : vector<8x128xf32>
    %32 = tpu.matmul %30, %31, %cst_18 {dimension_numbers = #tpu.dot_dimension_numbers<[1], [0], [0], [1], [0, 0, 1, 1], [], []>} : vector<8x64xbf16>, vector<64x128xbf16>, vector<8x128xf32> -> vector<8x128xf32>
    %c0_19 = arith.constant 0 : index
    %c0_20 = arith.constant 0 : index
    %33 = vector.load %arg8[%c0_19, %c0_20] : memref<1x128xf32, #tpu.memory_space<vmem>>, vector<1x128xf32>
    %34 = vector.broadcast %33 : vector<1x128xf32> to vector<8x128xf32>
    %35 = arith.addf %32, %34 : vector<8x128xf32>
    %cst_21 = arith.constant 5.000000e-01 : f32
    %36 = vector.broadcast %cst_21 : f32 to vector<8x128xf32>
    %37 = arith.mulf %36, %35 : vector<8x128xf32>
    %cst_22 = arith.constant 0.707106769 : f32
    %38 = vector.broadcast %cst_22 : f32 to vector<8x128xf32>
    %39 = arith.mulf %35, %38 : vector<8x128xf32>
    %40 = math.erf %39 : vector<8x128xf32>
    %cst_23 = arith.constant 1.000000e+00 : f32
    %41 = vector.broadcast %cst_23 : f32 to vector<8x128xf32>
    %42 = arith.addf %41, %40 : vector<8x128xf32>
    %43 = arith.mulf %37, %42 : vector<8x128xf32>
    %44 = arith.truncf %43 : vector<8x128xf32> to vector<8x128xbf16>
    %c0_24 = arith.constant 0 : index
    %c0_25 = arith.constant 0 : index
    %45 = vector.load %arg9[%c0_24, %c0_25] : memref<128x64xbf16, #tpu.memory_space<vmem>>, vector<128x64xbf16>
    %cst_26 = arith.constant dense<0.000000e+00> : vector<8x64xf32>
    %46 = tpu.matmul %44, %45, %cst_26 {dimension_numbers = #tpu.dot_dimension_numbers<[1], [0], [0], [1], [0, 0, 1, 1], [], []>} : vector<8x128xbf16>, vector<128x64xbf16>, vector<8x64xf32> -> vector<8x64xf32>
    %c0_27 = arith.constant 0 : index
    %c0_28 = arith.constant 0 : index
    %47 = vector.load %arg10[%c0_27, %c0_28] : memref<1x64xf32, #tpu.memory_space<vmem>>, vector<1x64xf32>
    %48 = vector.broadcast %47 : vector<1x64xf32> to vector<8x64xf32>
    %49 = arith.addf %46, %48 : vector<8x64xf32>
    %50 = arith.addf %7, %49 : vector<8x64xf32>
    %c0_29 = arith.constant 0 : index
    %c0_30 = arith.constant 0 : index
    %51 = vector.load %arg11[%c0_29, %c0_30] : memref<8x64xf32, #tpu.memory_space<vmem>>, vector<8x64xf32>
    tpu.vector_store %arg11[%c0_29, %c0_30], %50 {strides = array<i32>} : memref<8x64xf32, #tpu.memory_space<vmem>>, vector<8x64xf32>,
    return
  }
  func.func @transform_0(%arg0: i32) -> (i32, i32) {
    %c0_i32 = arith.constant 0 : i32
    %c0_i32_0 = arith.constant 0 : i32
    return %arg0, %c0_i32 : i32, i32
  }
  func.func @transform_1(%arg0: i32) -> (i32, i32) {
    %c0_i32 = arith.constant 0 : i32
    %c0_i32_0 = arith.constant 0 : i32
    return %arg0, %c0_i32 : i32, i32
  }
  func.func @transform_2(%arg0: i32) -> (i32, i32) {
    %c0_i32 = arith.constant 0 : i32
    %c0_i32_0 = arith.constant 0 : i32
    %c0_i32_1 = arith.constant 0 : i32
    return %c0_i32, %c0_i32_0 : i32, i32
  }
  func.func @transform_3(%arg0: i32) -> (i32, i32) {
    %c0_i32 = arith.constant 0 : i32
    %c0_i32_0 = arith.constant 0 : i32
    %c0_i32_1 = arith.constant 0 : i32
    return %c0_i32, %c0_i32_0 : i32, i32
  }
  func.func @transform_4(%arg0: i32) -> (i32, i32) {
    %c0_i32 = arith.constant 0 : i32
    %c0_i32_0 = arith.constant 0 : i32
    %c0_i32_1 = arith.constant 0 : i32
    return %c0_i32, %c0_i32_0 : i32, i32
  }
  func.func @transform_5(%arg0: i32) -> (i32, i32) {
    %c0_i32 = arith.constant 0 : i32
    %c0_i32_0 = arith.constant 0 : i32
    %c0_i32_1 = arith.constant 0 : i32
    return %c0_i32, %c0_i32_0 : i32, i32
  }
  func.func @transform_6(%arg0: i32) -> (i32, i32) {
    %c0_i32 = arith.constant 0 : i32
    %c0_i32_0 = arith.constant 0 : i32
    %c0_i32_1 = arith.constant 0 : i32
    return %c0_i32, %c0_i32_0 : i32, i32
  }
  func.func @transform_7(%arg0: i32) -> (i32, i32) {
    %c0_i32 = arith.constant 0 : i32
    %c0_i32_0 = arith.constant 0 : i32
    %c0_i32_1 = arith.constant 0 : i32
    return %c0_i32, %c0_i32_0 : i32, i32
  }
  func.func @transform_8(%arg0: i32) -> (i32, i32) {
    %c0_i32 = arith.constant 0 : i32
    %c0_i32_0 = arith.constant 0 : i32
    %c0_i32_1 = arith.constant 0 : i32
    return %c0_i32, %c0_i32_0 : i32, i32
  }
  func.func @transform_9(%arg0: i32) -> (i32, i32) {
    %c0_i32 = arith.constant 0 : i32
    %c0_i32_0 = arith.constant 0 : i32
    %c0_i32_1 = arith.constant 0 : i32
    return %c0_i32, %c0_i32_0 : i32, i32
  }
  func.func @transform_10(%arg0: i32) -> (i32, i32) {
    %c0_i32 = arith.constant 0 : i32
    %c0_i32_0 = arith.constant 0 : i32
    return %arg0, %c0_i32 : i32, i32
  }
}

module attributes {stable_mosaic.version = 11 : i64} {
  func.func @_ln_linear_kernel(%arg0: i32, %arg1: memref<8x64xf32, #tpu.memory_space<vmem>>, %arg2: memref<1x64xf32, #tpu.memory_space<vmem>>, %arg3: memref<1x64xf32, #tpu.memory_space<vmem>>, %arg4: memref<64x192xbf16, #tpu.memory_space<vmem>>, %arg5: memref<1x192xf32, #tpu.memory_space<vmem>>, %arg6: memref<8x192xbf16, #tpu.memory_space<vmem>>) attributes {dimension_semantics = [#tpu.dimension_semantics<parallel>], iteration_bounds = array<i64: 1>, scalar_prefetch = 0 : i64, scratch_operands = 0 : i64, tpu.core_type = #tpu.core_type<tc>, window_params = [{transform_indices = @transform_0, window_bounds = array<i64: 8, 64>}, {pipeline_mode = #tpu.pipeline_mode<synchronous>, transform_indices = @transform_1, window_bounds = array<i64: 1, 64>}, {pipeline_mode = #tpu.pipeline_mode<synchronous>, transform_indices = @transform_2, window_bounds = array<i64: 1, 64>}, {pipeline_mode = #tpu.pipeline_mode<synchronous>, transform_indices = @transform_3, window_bounds = array<i64: 64, 192>}, {pipeline_mode = #tpu.pipeline_mode<synchronous>, transform_indices = @transform_4, window_bounds = array<i64: 1, 192>}, {transform_indices = @transform_5, window_bounds = array<i64: 8, 192>}]} {
    %c0 = arith.constant 0 : index
    %c0_0 = arith.constant 0 : index
    %0 = vector.load %arg1[%c0, %c0_0] : memref<8x64xf32, #tpu.memory_space<vmem>>, vector<8x64xf32>
    %cst = arith.constant dense<0.000000e+00> : vector<8xf32>
    %1 = vector.multi_reduction <add>, %0, %cst [1] : vector<8x64xf32> to vector<8xf32>
    %2 = vector.shape_cast %1 : vector<8xf32> to vector<8x1xf32>
    %cst_1 = arith.constant 6.400000e+01 : f32
    %3 = vector.broadcast %cst_1 : f32 to vector<8x1xf32>
    %4 = arith.divf %2, %3 : vector<8x1xf32>
    %5 = vector.broadcast %4 : vector<8x1xf32> to vector<8x64xf32>
    %6 = arith.subf %0, %5 : vector<8x64xf32>
    %7 = arith.mulf %6, %6 : vector<8x64xf32>
    %cst_2 = arith.constant dense<0.000000e+00> : vector<8xf32>
    %8 = vector.multi_reduction <add>, %7, %cst_2 [1] : vector<8x64xf32> to vector<8xf32>
    %9 = vector.shape_cast %8 : vector<8xf32> to vector<8x1xf32>
    %cst_3 = arith.constant 6.400000e+01 : f32
    %10 = vector.broadcast %cst_3 : f32 to vector<8x1xf32>
    %11 = arith.divf %9, %10 : vector<8x1xf32>
    %cst_4 = arith.constant 9.99999974E-6 : f32
    %12 = vector.broadcast %cst_4 : f32 to vector<8x1xf32>
    %13 = arith.addf %11, %12 : vector<8x1xf32>
    %14 = math.rsqrt %13 : vector<8x1xf32>
    %15 = vector.broadcast %14 : vector<8x1xf32> to vector<8x64xf32>
    %16 = arith.mulf %6, %15 : vector<8x64xf32>
    %c0_5 = arith.constant 0 : index
    %c0_6 = arith.constant 0 : index
    %17 = vector.load %arg2[%c0_5, %c0_6] : memref<1x64xf32, #tpu.memory_space<vmem>>, vector<1x64xf32>
    %18 = vector.broadcast %17 : vector<1x64xf32> to vector<8x64xf32>
    %19 = arith.mulf %16, %18 : vector<8x64xf32>
    %c0_7 = arith.constant 0 : index
    %c0_8 = arith.constant 0 : index
    %20 = vector.load %arg3[%c0_7, %c0_8] : memref<1x64xf32, #tpu.memory_space<vmem>>, vector<1x64xf32>
    %21 = vector.broadcast %20 : vector<1x64xf32> to vector<8x64xf32>
    %22 = arith.addf %19, %21 : vector<8x64xf32>
    %23 = arith.truncf %22 : vector<8x64xf32> to vector<8x64xbf16>
    %c0_9 = arith.constant 0 : index
    %c0_10 = arith.constant 0 : index
    %24 = vector.load %arg4[%c0_9, %c0_10] : memref<64x192xbf16, #tpu.memory_space<vmem>>, vector<64x192xbf16>
    %cst_11 = arith.constant dense<0.000000e+00> : vector<8x192xf32>
    %25 = tpu.matmul %23, %24, %cst_11 {dimension_numbers = #tpu.dot_dimension_numbers<[1], [0], [0], [1], [0, 0, 1, 1], [], []>} : vector<8x64xbf16>, vector<64x192xbf16>, vector<8x192xf32> -> vector<8x192xf32>
    %c0_12 = arith.constant 0 : index
    %c0_13 = arith.constant 0 : index
    %26 = vector.load %arg5[%c0_12, %c0_13] : memref<1x192xf32, #tpu.memory_space<vmem>>, vector<1x192xf32>
    %27 = vector.broadcast %26 : vector<1x192xf32> to vector<8x192xf32>
    %28 = arith.addf %25, %27 : vector<8x192xf32>
    %29 = arith.truncf %28 : vector<8x192xf32> to vector<8x192xbf16>
    %c0_14 = arith.constant 0 : index
    %c0_15 = arith.constant 0 : index
    %30 = vector.load %arg6[%c0_14, %c0_15] : memref<8x192xbf16, #tpu.memory_space<vmem>>, vector<8x192xbf16>
    tpu.vector_store %arg6[%c0_14, %c0_15], %29 {strides = array<i32>} : memref<8x192xbf16, #tpu.memory_space<vmem>>, vector<8x192xbf16>,
    return
  }
  func.func @transform_0(%arg0: i32) -> (i32, i32) {
    %c0_i32 = arith.constant 0 : i32
    %c0_i32_0 = arith.constant 0 : i32
    return %arg0, %c0_i32 : i32, i32
  }
  func.func @transform_1(%arg0: i32) -> (i32, i32) {
    %c0_i32 = arith.constant 0 : i32
    %c0_i32_0 = arith.constant 0 : i32
    %c0_i32_1 = arith.constant 0 : i32
    return %c0_i32, %c0_i32_0 : i32, i32
  }
  func.func @transform_2(%arg0: i32) -> (i32, i32) {
    %c0_i32 = arith.constant 0 : i32
    %c0_i32_0 = arith.constant 0 : i32
    %c0_i32_1 = arith.constant 0 : i32
    return %c0_i32, %c0_i32_0 : i32, i32
  }
  func.func @transform_3(%arg0: i32) -> (i32, i32) {
    %c0_i32 = arith.constant 0 : i32
    %c0_i32_0 = arith.constant 0 : i32
    %c0_i32_1 = arith.constant 0 : i32
    return %c0_i32, %c0_i32_0 : i32, i32
  }
  func.func @transform_4(%arg0: i32) -> (i32, i32) {
    %c0_i32 = arith.constant 0 : i32
    %c0_i32_0 = arith.constant 0 : i32
    %c0_i32_1 = arith.constant 0 : i32
    return %c0_i32, %c0_i32_0 : i32, i32
  }
  func.func @transform_5(%arg0: i32) -> (i32, i32) {
    %c0_i32 = arith.constant 0 : i32
    %c0_i32_0 = arith.constant 0 : i32
    return %arg0, %c0_i32 : i32, i32
  }
}

module attributes {stable_mosaic.version = 11 : i64} {
  func.func @_ln_linear_kernel(%arg0: i32, %arg1: memref<8x128xf32, #tpu.memory_space<vmem>>, %arg2: memref<1x128xf32, #tpu.memory_space<vmem>>, %arg3: memref<1x128xf32, #tpu.memory_space<vmem>>, %arg4: memref<128x64xbf16, #tpu.memory_space<vmem>>, %arg5: memref<1x64xf32, #tpu.memory_space<vmem>>, %arg6: memref<8x64xf32, #tpu.memory_space<vmem>>) attributes {dimension_semantics = [#tpu.dimension_semantics<parallel>], iteration_bounds = array<i64: 1>, scalar_prefetch = 0 : i64, scratch_operands = 0 : i64, tpu.core_type = #tpu.core_type<tc>, window_params = [{transform_indices = @transform_0, window_bounds = array<i64: 8, 128>}, {pipeline_mode = #tpu.pipeline_mode<synchronous>, transform_indices = @transform_1, window_bounds = array<i64: 1, 128>}, {pipeline_mode = #tpu.pipeline_mode<synchronous>, transform_indices = @transform_2, window_bounds = array<i64: 1, 128>}, {pipeline_mode = #tpu.pipeline_mode<synchronous>, transform_indices = @transform_3, window_bounds = array<i64: 128, 64>}, {pipeline_mode = #tpu.pipeline_mode<synchronous>, transform_indices = @transform_4, window_bounds = array<i64: 1, 64>}, {transform_indices = @transform_5, window_bounds = array<i64: 8, 64>}]} {
    %c0 = arith.constant 0 : index
    %c0_0 = arith.constant 0 : index
    %0 = vector.load %arg1[%c0, %c0_0] : memref<8x128xf32, #tpu.memory_space<vmem>>, vector<8x128xf32>
    %cst = arith.constant dense<0.000000e+00> : vector<8xf32>
    %1 = vector.multi_reduction <add>, %0, %cst [1] : vector<8x128xf32> to vector<8xf32>
    %2 = vector.shape_cast %1 : vector<8xf32> to vector<8x1xf32>
    %cst_1 = arith.constant 1.280000e+02 : f32
    %3 = vector.broadcast %cst_1 : f32 to vector<8x1xf32>
    %4 = arith.divf %2, %3 : vector<8x1xf32>
    %5 = vector.broadcast %4 : vector<8x1xf32> to vector<8x128xf32>
    %6 = arith.subf %0, %5 : vector<8x128xf32>
    %7 = arith.mulf %6, %6 : vector<8x128xf32>
    %cst_2 = arith.constant dense<0.000000e+00> : vector<8xf32>
    %8 = vector.multi_reduction <add>, %7, %cst_2 [1] : vector<8x128xf32> to vector<8xf32>
    %9 = vector.shape_cast %8 : vector<8xf32> to vector<8x1xf32>
    %cst_3 = arith.constant 1.280000e+02 : f32
    %10 = vector.broadcast %cst_3 : f32 to vector<8x1xf32>
    %11 = arith.divf %9, %10 : vector<8x1xf32>
    %cst_4 = arith.constant 9.99999974E-6 : f32
    %12 = vector.broadcast %cst_4 : f32 to vector<8x1xf32>
    %13 = arith.addf %11, %12 : vector<8x1xf32>
    %14 = math.rsqrt %13 : vector<8x1xf32>
    %15 = vector.broadcast %14 : vector<8x1xf32> to vector<8x128xf32>
    %16 = arith.mulf %6, %15 : vector<8x128xf32>
    %c0_5 = arith.constant 0 : index
    %c0_6 = arith.constant 0 : index
    %17 = vector.load %arg2[%c0_5, %c0_6] : memref<1x128xf32, #tpu.memory_space<vmem>>, vector<1x128xf32>
    %18 = vector.broadcast %17 : vector<1x128xf32> to vector<8x128xf32>
    %19 = arith.mulf %16, %18 : vector<8x128xf32>
    %c0_7 = arith.constant 0 : index
    %c0_8 = arith.constant 0 : index
    %20 = vector.load %arg3[%c0_7, %c0_8] : memref<1x128xf32, #tpu.memory_space<vmem>>, vector<1x128xf32>
    %21 = vector.broadcast %20 : vector<1x128xf32> to vector<8x128xf32>
    %22 = arith.addf %19, %21 : vector<8x128xf32>
    %23 = arith.truncf %22 : vector<8x128xf32> to vector<8x128xbf16>
    %c0_9 = arith.constant 0 : index
    %c0_10 = arith.constant 0 : index
    %24 = vector.load %arg4[%c0_9, %c0_10] : memref<128x64xbf16, #tpu.memory_space<vmem>>, vector<128x64xbf16>
    %cst_11 = arith.constant dense<0.000000e+00> : vector<8x64xf32>
    %25 = tpu.matmul %23, %24, %cst_11 {dimension_numbers = #tpu.dot_dimension_numbers<[1], [0], [0], [1], [0, 0, 1, 1], [], []>} : vector<8x128xbf16>, vector<128x64xbf16>, vector<8x64xf32> -> vector<8x64xf32>
    %c0_12 = arith.constant 0 : index
    %c0_13 = arith.constant 0 : index
    %26 = vector.load %arg5[%c0_12, %c0_13] : memref<1x64xf32, #tpu.memory_space<vmem>>, vector<1x64xf32>
    %27 = vector.broadcast %26 : vector<1x64xf32> to vector<8x64xf32>
    %28 = arith.addf %25, %27 : vector<8x64xf32>
    %c0_14 = arith.constant 0 : index
    %c0_15 = arith.constant 0 : index
    %29 = vector.load %arg6[%c0_14, %c0_15] : memref<8x64xf32, #tpu.memory_space<vmem>>, vector<8x64xf32>
    tpu.vector_store %arg6[%c0_14, %c0_15], %28 {strides = array<i32>} : memref<8x64xf32, #tpu.memory_space<vmem>>, vector<8x64xf32>,
    return
  }
  func.func @transform_0(%arg0: i32) -> (i32, i32) {
    %c0_i32 = arith.constant 0 : i32
    %c0_i32_0 = arith.constant 0 : i32
    return %arg0, %c0_i32 : i32, i32
  }
  func.func @transform_1(%arg0: i32) -> (i32, i32) {
    %c0_i32 = arith.constant 0 : i32
    %c0_i32_0 = arith.constant 0 : i32
    %c0_i32_1 = arith.constant 0 : i32
    return %c0_i32, %c0_i32_0 : i32, i32
  }
  func.func @transform_2(%arg0: i32) -> (i32, i32) {
    %c0_i32 = arith.constant 0 : i32
    %c0_i32_0 = arith.constant 0 : i32
    %c0_i32_1 = arith.constant 0 : i32
    return %c0_i32, %c0_i32_0 : i32, i32
  }
  func.func @transform_3(%arg0: i32) -> (i32, i32) {
    %c0_i32 = arith.constant 0 : i32
    %c0_i32_0 = arith.constant 0 : i32
    %c0_i32_1 = arith.constant 0 : i32
    return %c0_i32, %c0_i32_0 : i32, i32
  }
  func.func @transform_4(%arg0: i32) -> (i32, i32) {
    %c0_i32 = arith.constant 0 : i32
    %c0_i32_0 = arith.constant 0 : i32
    %c0_i32_1 = arith.constant 0 : i32
    return %c0_i32, %c0_i32_0 : i32, i32
  }
  func.func @transform_5(%arg0: i32) -> (i32, i32) {
    %c0_i32 = arith.constant 0 : i32
    %c0_i32_0 = arith.constant 0 : i32
    return %arg0, %c0_i32 : i32, i32
  }
}

module attributes {stable_mosaic.version = 11 : i64} {
  func.func @_window_attn_kernel(%arg0: i32, %arg1: memref<1x1x4x192xbf16, #tpu.memory_space<vmem>>, %arg2: memref<4x1x4x4xbf16, #tpu.memory_space<vmem>>, %arg3: memref<1x1x4x64xbf16, #tpu.memory_space<vmem>>) attributes {dimension_semantics = [#tpu.dimension_semantics<parallel>], iteration_bounds = array<i64: 2>, scalar_prefetch = 0 : i64, scratch_operands = 0 : i64, tpu.core_type = #tpu.core_type<tc>, window_params = [{transform_indices = @transform_0, window_bounds = array<i64: 1, 1, 4, 192>}, {pipeline_mode = #tpu.pipeline_mode<synchronous>, transform_indices = @transform_1, window_bounds = array<i64: 4, 1, 4, 4>}, {transform_indices = @transform_2, window_bounds = array<i64: 1, 1, 4, 64>}]} {
    %c0 = arith.constant 0 : index
    %c0_0 = arith.constant 0 : index
    %c0_1 = arith.constant 0 : index
    %c0_2 = arith.constant 0 : index
    %0 = vector.load %arg1[%c0, %c0_0, %c0_1, %c0_2] : memref<1x1x4x192xbf16, #tpu.memory_space<vmem>>, vector<1x1x4x192xbf16>
    %1 = vector.shape_cast %0 : vector<1x1x4x192xbf16> to vector<1x4x192xbf16>
    %2 = vector.extract_strided_slice %1 {offsets = [0, 0, 0], sizes = [1, 4, 16], strides = [1, 1, 1]} : vector<1x4x192xbf16> to vector<1x4x16xbf16>
    %3 = vector.extract_strided_slice %1 {offsets = [0, 0, 64], sizes = [1, 4, 16], strides = [1, 1, 1]} : vector<1x4x192xbf16> to vector<1x4x16xbf16>
    %4 = vector.extract_strided_slice %1 {offsets = [0, 0, 128], sizes = [1, 4, 16], strides = [1, 1, 1]} : vector<1x4x192xbf16> to vector<1x4x16xbf16>
    "tpu.trace_start"() <{level = 10 : i32, message = "wnd,wmd->wnm"}> : () -> ()
    %cst = arith.constant dense<0.000000e+00> : vector<1x4x4xf32>
    %5 = tpu.matmul %2, %3, %cst {dimension_numbers = #tpu.dot_dimension_numbers<[2], [2], [1], [1], [0, 0, 0, 1, 1, 1], [0], [0]>} : vector<1x4x16xbf16>, vector<1x4x16xbf16>, vector<1x4x4xf32> -> vector<1x4x4xf32>
    "tpu.trace_stop"() : () -> ()
    %c0_3 = arith.constant 0 : index
    %c0_4 = arith.constant 0 : index
    %c0_5 = arith.constant 0 : index
    %c0_6 = arith.constant 0 : index
    %6 = vector.load %arg2[%c0_3, %c0_4, %c0_5, %c0_6] : memref<4x1x4x4xbf16, #tpu.memory_space<vmem>>, vector<1x1x4x4xbf16>
    %7 = vector.shape_cast %6 : vector<1x1x4x4xbf16> to vector<1x4x4xbf16>
    %8 = arith.extf %7 : vector<1x4x4xbf16> to vector<1x4x4xf32>
    %9 = arith.addf %5, %8 : vector<1x4x4xf32>
    %cst_7 = arith.constant dense<0xFF800000> : vector<1x4xf32>
    %10 = vector.multi_reduction <maximumf>, %9, %cst_7 [2] : vector<1x4x4xf32> to vector<1x4xf32>
    %11 = vector.shape_cast %10 : vector<1x4xf32> to vector<1x4x1xf32>
    %12 = vector.broadcast %11 : vector<1x4x1xf32> to vector<1x4x4xf32>
    %13 = arith.subf %9, %12 : vector<1x4x4xf32>
    %14 = math.exp %13 : vector<1x4x4xf32>
    %cst_8 = arith.constant dense<0.000000e+00> : vector<1x4xf32>
    %15 = vector.multi_reduction <add>, %14, %cst_8 [2] : vector<1x4x4xf32> to vector<1x4xf32>
    %16 = vector.shape_cast %15 : vector<1x4xf32> to vector<1x4x1xf32>
    %17 = tpu.reciprocal %16 {approx = true} : vector<1x4x1xf32> -> vector<1x4x1xf32>
    %18 = vector.broadcast %17 : vector<1x4x1xf32> to vector<1x4x4xf32>
    %19 = arith.mulf %14, %18 : vector<1x4x4xf32>
    %20 = arith.truncf %19 : vector<1x4x4xf32> to vector<1x4x4xbf16>
    "tpu.trace_start"() <{level = 10 : i32, message = "wnm,wmd->wnd"}> : () -> ()
    %cst_9 = arith.constant dense<0.000000e+00> : vector<1x4x16xf32>
    %21 = tpu.matmul %20, %4, %cst_9 {dimension_numbers = #tpu.dot_dimension_numbers<[2], [1], [1], [2], [0, 0, 0, 1, 1, 2], [0], [0]>} : vector<1x4x4xbf16>, vector<1x4x16xbf16>, vector<1x4x16xf32> -> vector<1x4x16xf32>
    "tpu.trace_stop"() : () -> ()
    %22 = vector.extract_strided_slice %1 {offsets = [0, 0, 16], sizes = [1, 4, 16], strides = [1, 1, 1]} : vector<1x4x192xbf16> to vector<1x4x16xbf16>
    %23 = vector.extract_strided_slice %1 {offsets = [0, 0, 80], sizes = [1, 4, 16], strides = [1, 1, 1]} : vector<1x4x192xbf16> to vector<1x4x16xbf16>
    %24 = vector.extract_strided_slice %1 {offsets = [0, 0, 144], sizes = [1, 4, 16], strides = [1, 1, 1]} : vector<1x4x192xbf16> to vector<1x4x16xbf16>
    "tpu.trace_start"() <{level = 10 : i32, message = "wnd,wmd->wnm"}> : () -> ()
    %cst_10 = arith.constant dense<0.000000e+00> : vector<1x4x4xf32>
    %25 = tpu.matmul %22, %23, %cst_10 {dimension_numbers = #tpu.dot_dimension_numbers<[2], [2], [1], [1], [0, 0, 0, 1, 1, 1], [0], [0]>} : vector<1x4x16xbf16>, vector<1x4x16xbf16>, vector<1x4x4xf32> -> vector<1x4x4xf32>
    "tpu.trace_stop"() : () -> ()
    %c1 = arith.constant 1 : index
    %c0_11 = arith.constant 0 : index
    %c0_12 = arith.constant 0 : index
    %c0_13 = arith.constant 0 : index
    %26 = vector.load %arg2[%c1, %c0_11, %c0_12, %c0_13] : memref<4x1x4x4xbf16, #tpu.memory_space<vmem>>, vector<1x1x4x4xbf16>
    %27 = vector.shape_cast %26 : vector<1x1x4x4xbf16> to vector<1x4x4xbf16>
    %28 = arith.extf %27 : vector<1x4x4xbf16> to vector<1x4x4xf32>
    %29 = arith.addf %25, %28 : vector<1x4x4xf32>
    %cst_14 = arith.constant dense<0xFF800000> : vector<1x4xf32>
    %30 = vector.multi_reduction <maximumf>, %29, %cst_14 [2] : vector<1x4x4xf32> to vector<1x4xf32>
    %31 = vector.shape_cast %30 : vector<1x4xf32> to vector<1x4x1xf32>
    %32 = vector.broadcast %31 : vector<1x4x1xf32> to vector<1x4x4xf32>
    %33 = arith.subf %29, %32 : vector<1x4x4xf32>
    %34 = math.exp %33 : vector<1x4x4xf32>
    %cst_15 = arith.constant dense<0.000000e+00> : vector<1x4xf32>
    %35 = vector.multi_reduction <add>, %34, %cst_15 [2] : vector<1x4x4xf32> to vector<1x4xf32>
    %36 = vector.shape_cast %35 : vector<1x4xf32> to vector<1x4x1xf32>
    %37 = tpu.reciprocal %36 {approx = true} : vector<1x4x1xf32> -> vector<1x4x1xf32>
    %38 = vector.broadcast %37 : vector<1x4x1xf32> to vector<1x4x4xf32>
    %39 = arith.mulf %34, %38 : vector<1x4x4xf32>
    %40 = arith.truncf %39 : vector<1x4x4xf32> to vector<1x4x4xbf16>
    "tpu.trace_start"() <{level = 10 : i32, message = "wnm,wmd->wnd"}> : () -> ()
    %cst_16 = arith.constant dense<0.000000e+00> : vector<1x4x16xf32>
    %41 = tpu.matmul %40, %24, %cst_16 {dimension_numbers = #tpu.dot_dimension_numbers<[2], [1], [1], [2], [0, 0, 0, 1, 1, 2], [0], [0]>} : vector<1x4x4xbf16>, vector<1x4x16xbf16>, vector<1x4x16xf32> -> vector<1x4x16xf32>
    "tpu.trace_stop"() : () -> ()
    %42 = vector.extract_strided_slice %1 {offsets = [0, 0, 32], sizes = [1, 4, 16], strides = [1, 1, 1]} : vector<1x4x192xbf16> to vector<1x4x16xbf16>
    %43 = vector.extract_strided_slice %1 {offsets = [0, 0, 96], sizes = [1, 4, 16], strides = [1, 1, 1]} : vector<1x4x192xbf16> to vector<1x4x16xbf16>
    %44 = vector.extract_strided_slice %1 {offsets = [0, 0, 160], sizes = [1, 4, 16], strides = [1, 1, 1]} : vector<1x4x192xbf16> to vector<1x4x16xbf16>
    "tpu.trace_start"() <{level = 10 : i32, message = "wnd,wmd->wnm"}> : () -> ()
    %cst_17 = arith.constant dense<0.000000e+00> : vector<1x4x4xf32>
    %45 = tpu.matmul %42, %43, %cst_17 {dimension_numbers = #tpu.dot_dimension_numbers<[2], [2], [1], [1], [0, 0, 0, 1, 1, 1], [0], [0]>} : vector<1x4x16xbf16>, vector<1x4x16xbf16>, vector<1x4x4xf32> -> vector<1x4x4xf32>
    "tpu.trace_stop"() : () -> ()
    %c2 = arith.constant 2 : index
    %c0_18 = arith.constant 0 : index
    %c0_19 = arith.constant 0 : index
    %c0_20 = arith.constant 0 : index
    %46 = vector.load %arg2[%c2, %c0_18, %c0_19, %c0_20] : memref<4x1x4x4xbf16, #tpu.memory_space<vmem>>, vector<1x1x4x4xbf16>
    %47 = vector.shape_cast %46 : vector<1x1x4x4xbf16> to vector<1x4x4xbf16>
    %48 = arith.extf %47 : vector<1x4x4xbf16> to vector<1x4x4xf32>
    %49 = arith.addf %45, %48 : vector<1x4x4xf32>
    %cst_21 = arith.constant dense<0xFF800000> : vector<1x4xf32>
    %50 = vector.multi_reduction <maximumf>, %49, %cst_21 [2] : vector<1x4x4xf32> to vector<1x4xf32>
    %51 = vector.shape_cast %50 : vector<1x4xf32> to vector<1x4x1xf32>
    %52 = vector.broadcast %51 : vector<1x4x1xf32> to vector<1x4x4xf32>
    %53 = arith.subf %49, %52 : vector<1x4x4xf32>
    %54 = math.exp %53 : vector<1x4x4xf32>
    %cst_22 = arith.constant dense<0.000000e+00> : vector<1x4xf32>
    %55 = vector.multi_reduction <add>, %54, %cst_22 [2] : vector<1x4x4xf32> to vector<1x4xf32>
    %56 = vector.shape_cast %55 : vector<1x4xf32> to vector<1x4x1xf32>
    %57 = tpu.reciprocal %56 {approx = true} : vector<1x4x1xf32> -> vector<1x4x1xf32>
    %58 = vector.broadcast %57 : vector<1x4x1xf32> to vector<1x4x4xf32>
    %59 = arith.mulf %54, %58 : vector<1x4x4xf32>
    %60 = arith.truncf %59 : vector<1x4x4xf32> to vector<1x4x4xbf16>
    "tpu.trace_start"() <{level = 10 : i32, message = "wnm,wmd->wnd"}> : () -> ()
    %cst_23 = arith.constant dense<0.000000e+00> : vector<1x4x16xf32>
    %61 = tpu.matmul %60, %44, %cst_23 {dimension_numbers = #tpu.dot_dimension_numbers<[2], [1], [1], [2], [0, 0, 0, 1, 1, 2], [0], [0]>} : vector<1x4x4xbf16>, vector<1x4x16xbf16>, vector<1x4x16xf32> -> vector<1x4x16xf32>
    "tpu.trace_stop"() : () -> ()
    %62 = vector.extract_strided_slice %1 {offsets = [0, 0, 48], sizes = [1, 4, 16], strides = [1, 1, 1]} : vector<1x4x192xbf16> to vector<1x4x16xbf16>
    %63 = vector.extract_strided_slice %1 {offsets = [0, 0, 112], sizes = [1, 4, 16], strides = [1, 1, 1]} : vector<1x4x192xbf16> to vector<1x4x16xbf16>
    %64 = vector.extract_strided_slice %1 {offsets = [0, 0, 176], sizes = [1, 4, 16], strides = [1, 1, 1]} : vector<1x4x192xbf16> to vector<1x4x16xbf16>
    "tpu.trace_start"() <{level = 10 : i32, message = "wnd,wmd->wnm"}> : () -> ()
    %cst_24 = arith.constant dense<0.000000e+00> : vector<1x4x4xf32>
    %65 = tpu.matmul %62, %63, %cst_24 {dimension_numbers = #tpu.dot_dimension_numbers<[2], [2], [1], [1], [0, 0, 0, 1, 1, 1], [0], [0]>} : vector<1x4x16xbf16>, vector<1x4x16xbf16>, vector<1x4x4xf32> -> vector<1x4x4xf32>
    "tpu.trace_stop"() : () -> ()
    %c3 = arith.constant 3 : index
    %c0_25 = arith.constant 0 : index
    %c0_26 = arith.constant 0 : index
    %c0_27 = arith.constant 0 : index
    %66 = vector.load %arg2[%c3, %c0_25, %c0_26, %c0_27] : memref<4x1x4x4xbf16, #tpu.memory_space<vmem>>, vector<1x1x4x4xbf16>
    %67 = vector.shape_cast %66 : vector<1x1x4x4xbf16> to vector<1x4x4xbf16>
    %68 = arith.extf %67 : vector<1x4x4xbf16> to vector<1x4x4xf32>
    %69 = arith.addf %65, %68 : vector<1x4x4xf32>
    %cst_28 = arith.constant dense<0xFF800000> : vector<1x4xf32>
    %70 = vector.multi_reduction <maximumf>, %69, %cst_28 [2] : vector<1x4x4xf32> to vector<1x4xf32>
    %71 = vector.shape_cast %70 : vector<1x4xf32> to vector<1x4x1xf32>
    %72 = vector.broadcast %71 : vector<1x4x1xf32> to vector<1x4x4xf32>
    %73 = arith.subf %69, %72 : vector<1x4x4xf32>
    %74 = math.exp %73 : vector<1x4x4xf32>
    %cst_29 = arith.constant dense<0.000000e+00> : vector<1x4xf32>
    %75 = vector.multi_reduction <add>, %74, %cst_29 [2] : vector<1x4x4xf32> to vector<1x4xf32>
    %76 = vector.shape_cast %75 : vector<1x4xf32> to vector<1x4x1xf32>
    %77 = tpu.reciprocal %76 {approx = true} : vector<1x4x1xf32> -> vector<1x4x1xf32>
    %78 = vector.broadcast %77 : vector<1x4x1xf32> to vector<1x4x4xf32>
    %79 = arith.mulf %74, %78 : vector<1x4x4xf32>
    %80 = arith.truncf %79 : vector<1x4x4xf32> to vector<1x4x4xbf16>
    "tpu.trace_start"() <{level = 10 : i32, message = "wnm,wmd->wnd"}> : () -> ()
    %cst_30 = arith.constant dense<0.000000e+00> : vector<1x4x16xf32>
    %81 = tpu.matmul %80, %64, %cst_30 {dimension_numbers = #tpu.dot_dimension_numbers<[2], [1], [1], [2], [0, 0, 0, 1, 1, 2], [0], [0]>} : vector<1x4x4xbf16>, vector<1x4x16xbf16>, vector<1x4x16xf32> -> vector<1x4x16xf32>
    "tpu.trace_stop"() : () -> ()
    %82 = tpu.concatenate %21, %41, %61, %81 in 2 : vector<1x4x16xf32>, vector<1x4x16xf32>, vector<1x4x16xf32>, vector<1x4x16xf32> -> vector<1x4x64xf32>
    %83 = arith.truncf %82 : vector<1x4x64xf32> to vector<1x4x64xbf16>
    %c0_31 = arith.constant 0 : index
    %c0_32 = arith.constant 0 : index
    %c0_33 = arith.constant 0 : index
    %c0_34 = arith.constant 0 : index
    %84 = vector.load %arg3[%c0_31, %c0_32, %c0_33, %c0_34] : memref<1x1x4x64xbf16, #tpu.memory_space<vmem>>, vector<1x1x4x64xbf16>
    %85 = vector.shape_cast %84 : vector<1x1x4x64xbf16> to vector<1x4x64xbf16>
    %86 = vector.shape_cast %83 : vector<1x4x64xbf16> to vector<1x1x4x64xbf16>
    tpu.vector_store %arg3[%c0_31, %c0_32, %c0_33, %c0_34], %86 {strides = array<i32>} : memref<1x1x4x64xbf16, #tpu.memory_space<vmem>>, vector<1x1x4x64xbf16>,
    return
  }
  func.func @transform_0(%arg0: i32) -> (i32, i32, i32, i32) {
    %c0_i32 = arith.constant 0 : i32
    %c0_i32_0 = arith.constant 0 : i32
    %c0_i32_1 = arith.constant 0 : i32
    %c0_i32_2 = arith.constant 0 : i32
    return %arg0, %c0_i32, %c0_i32_0, %c0_i32_1 : i32, i32, i32, i32
  }
  func.func @transform_1(%arg0: i32) -> (i32, i32, i32, i32) {
    %c0_i32 = arith.constant 0 : i32
    %c0_i32_0 = arith.constant 0 : i32
    %c0_i32_1 = arith.constant 0 : i32
    %c0_i32_2 = arith.constant 0 : i32
    %c0_i32_3 = arith.constant 0 : i32
    return %c0_i32, %c0_i32_0, %c0_i32_1, %c0_i32_2 : i32, i32, i32, i32
  }
  func.func @transform_2(%arg0: i32) -> (i32, i32, i32, i32) {
    %c0_i32 = arith.constant 0 : i32
    %c0_i32_0 = arith.constant 0 : i32
    %c0_i32_1 = arith.constant 0 : i32
    %c0_i32_2 = arith.constant 0 : i32
    return %arg0, %c0_i32, %c0_i32_0, %c0_i32_1 : i32, i32, i32, i32
  }
}

module attributes {stable_mosaic.version = 11 : i64} {
  func.func @_block_tail_kernel(%arg0: i32, %arg1: memref<8x64xf32, #tpu.memory_space<vmem>>, %arg2: memref<8x64xbf16, #tpu.memory_space<vmem>>, %arg3: memref<64x64xbf16, #tpu.memory_space<vmem>>, %arg4: memref<1x64xf32, #tpu.memory_space<vmem>>, %arg5: memref<1x64xf32, #tpu.memory_space<vmem>>, %arg6: memref<1x64xf32, #tpu.memory_space<vmem>>, %arg7: memref<64x128xbf16, #tpu.memory_space<vmem>>, %arg8: memref<1x128xf32, #tpu.memory_space<vmem>>, %arg9: memref<128x64xbf16, #tpu.memory_space<vmem>>, %arg10: memref<1x64xf32, #tpu.memory_space<vmem>>, %arg11: memref<8x64xf32, #tpu.memory_space<vmem>>) attributes {dimension_semantics = [#tpu.dimension_semantics<parallel>], iteration_bounds = array<i64: 1>, scalar_prefetch = 0 : i64, scratch_operands = 0 : i64, tpu.core_type = #tpu.core_type<tc>, window_params = [{transform_indices = @transform_0, window_bounds = array<i64: 8, 64>}, {transform_indices = @transform_1, window_bounds = array<i64: 8, 64>}, {pipeline_mode = #tpu.pipeline_mode<synchronous>, transform_indices = @transform_2, window_bounds = array<i64: 64, 64>}, {pipeline_mode = #tpu.pipeline_mode<synchronous>, transform_indices = @transform_3, window_bounds = array<i64: 1, 64>}, {pipeline_mode = #tpu.pipeline_mode<synchronous>, transform_indices = @transform_4, window_bounds = array<i64: 1, 64>}, {pipeline_mode = #tpu.pipeline_mode<synchronous>, transform_indices = @transform_5, window_bounds = array<i64: 1, 64>}, {pipeline_mode = #tpu.pipeline_mode<synchronous>, transform_indices = @transform_6, window_bounds = array<i64: 64, 128>}, {pipeline_mode = #tpu.pipeline_mode<synchronous>, transform_indices = @transform_7, window_bounds = array<i64: 1, 128>}, {pipeline_mode = #tpu.pipeline_mode<synchronous>, transform_indices = @transform_8, window_bounds = array<i64: 128, 64>}, {pipeline_mode = #tpu.pipeline_mode<synchronous>, transform_indices = @transform_9, window_bounds = array<i64: 1, 64>}, {transform_indices = @transform_10, window_bounds = array<i64: 8, 64>}]} {
    %c0 = arith.constant 0 : index
    %c0_0 = arith.constant 0 : index
    %0 = vector.load %arg2[%c0, %c0_0] : memref<8x64xbf16, #tpu.memory_space<vmem>>, vector<8x64xbf16>
    %c0_1 = arith.constant 0 : index
    %c0_2 = arith.constant 0 : index
    %1 = vector.load %arg3[%c0_1, %c0_2] : memref<64x64xbf16, #tpu.memory_space<vmem>>, vector<64x64xbf16>
    %cst = arith.constant dense<0.000000e+00> : vector<8x64xf32>
    %2 = tpu.matmul %0, %1, %cst {dimension_numbers = #tpu.dot_dimension_numbers<[1], [0], [0], [1], [0, 0, 1, 1], [], []>} : vector<8x64xbf16>, vector<64x64xbf16>, vector<8x64xf32> -> vector<8x64xf32>
    %c0_3 = arith.constant 0 : index
    %c0_4 = arith.constant 0 : index
    %3 = vector.load %arg4[%c0_3, %c0_4] : memref<1x64xf32, #tpu.memory_space<vmem>>, vector<1x64xf32>
    %4 = vector.broadcast %3 : vector<1x64xf32> to vector<8x64xf32>
    %5 = arith.addf %2, %4 : vector<8x64xf32>
    %c0_5 = arith.constant 0 : index
    %c0_6 = arith.constant 0 : index
    %6 = vector.load %arg1[%c0_5, %c0_6] : memref<8x64xf32, #tpu.memory_space<vmem>>, vector<8x64xf32>
    %7 = arith.addf %6, %5 : vector<8x64xf32>
    %cst_7 = arith.constant dense<0.000000e+00> : vector<8xf32>
    %8 = vector.multi_reduction <add>, %7, %cst_7 [1] : vector<8x64xf32> to vector<8xf32>
    %9 = vector.shape_cast %8 : vector<8xf32> to vector<8x1xf32>
    %cst_8 = arith.constant 6.400000e+01 : f32
    %10 = vector.broadcast %cst_8 : f32 to vector<8x1xf32>
    %11 = arith.divf %9, %10 : vector<8x1xf32>
    %12 = vector.broadcast %11 : vector<8x1xf32> to vector<8x64xf32>
    %13 = arith.subf %7, %12 : vector<8x64xf32>
    %14 = arith.mulf %13, %13 : vector<8x64xf32>
    %cst_9 = arith.constant dense<0.000000e+00> : vector<8xf32>
    %15 = vector.multi_reduction <add>, %14, %cst_9 [1] : vector<8x64xf32> to vector<8xf32>
    %16 = vector.shape_cast %15 : vector<8xf32> to vector<8x1xf32>
    %cst_10 = arith.constant 6.400000e+01 : f32
    %17 = vector.broadcast %cst_10 : f32 to vector<8x1xf32>
    %18 = arith.divf %16, %17 : vector<8x1xf32>
    %cst_11 = arith.constant 9.99999974E-6 : f32
    %19 = vector.broadcast %cst_11 : f32 to vector<8x1xf32>
    %20 = arith.addf %18, %19 : vector<8x1xf32>
    %21 = math.rsqrt %20 : vector<8x1xf32>
    %22 = vector.broadcast %21 : vector<8x1xf32> to vector<8x64xf32>
    %23 = arith.mulf %13, %22 : vector<8x64xf32>
    %c0_12 = arith.constant 0 : index
    %c0_13 = arith.constant 0 : index
    %24 = vector.load %arg5[%c0_12, %c0_13] : memref<1x64xf32, #tpu.memory_space<vmem>>, vector<1x64xf32>
    %25 = vector.broadcast %24 : vector<1x64xf32> to vector<8x64xf32>
    %26 = arith.mulf %23, %25 : vector<8x64xf32>
    %c0_14 = arith.constant 0 : index
    %c0_15 = arith.constant 0 : index
    %27 = vector.load %arg6[%c0_14, %c0_15] : memref<1x64xf32, #tpu.memory_space<vmem>>, vector<1x64xf32>
    %28 = vector.broadcast %27 : vector<1x64xf32> to vector<8x64xf32>
    %29 = arith.addf %26, %28 : vector<8x64xf32>
    %30 = arith.truncf %29 : vector<8x64xf32> to vector<8x64xbf16>
    %c0_16 = arith.constant 0 : index
    %c0_17 = arith.constant 0 : index
    %31 = vector.load %arg7[%c0_16, %c0_17] : memref<64x128xbf16, #tpu.memory_space<vmem>>, vector<64x128xbf16>
    %cst_18 = arith.constant dense<0.000000e+00> : vector<8x128xf32>
    %32 = tpu.matmul %30, %31, %cst_18 {dimension_numbers = #tpu.dot_dimension_numbers<[1], [0], [0], [1], [0, 0, 1, 1], [], []>} : vector<8x64xbf16>, vector<64x128xbf16>, vector<8x128xf32> -> vector<8x128xf32>
    %c0_19 = arith.constant 0 : index
    %c0_20 = arith.constant 0 : index
    %33 = vector.load %arg8[%c0_19, %c0_20] : memref<1x128xf32, #tpu.memory_space<vmem>>, vector<1x128xf32>
    %34 = vector.broadcast %33 : vector<1x128xf32> to vector<8x128xf32>
    %35 = arith.addf %32, %34 : vector<8x128xf32>
    %cst_21 = arith.constant 5.000000e-01 : f32
    %36 = vector.broadcast %cst_21 : f32 to vector<8x128xf32>
    %37 = arith.mulf %36, %35 : vector<8x128xf32>
    %cst_22 = arith.constant 0.707106769 : f32
    %38 = vector.broadcast %cst_22 : f32 to vector<8x128xf32>
    %39 = arith.mulf %35, %38 : vector<8x128xf32>
    %40 = math.erf %39 : vector<8x128xf32>
    %cst_23 = arith.constant 1.000000e+00 : f32
    %41 = vector.broadcast %cst_23 : f32 to vector<8x128xf32>
    %42 = arith.addf %41, %40 : vector<8x128xf32>
    %43 = arith.mulf %37, %42 : vector<8x128xf32>
    %44 = arith.truncf %43 : vector<8x128xf32> to vector<8x128xbf16>
    %c0_24 = arith.constant 0 : index
    %c0_25 = arith.constant 0 : index
    %45 = vector.load %arg9[%c0_24, %c0_25] : memref<128x64xbf16, #tpu.memory_space<vmem>>, vector<128x64xbf16>
    %cst_26 = arith.constant dense<0.000000e+00> : vector<8x64xf32>
    %46 = tpu.matmul %44, %45, %cst_26 {dimension_numbers = #tpu.dot_dimension_numbers<[1], [0], [0], [1], [0, 0, 1, 1], [], []>} : vector<8x128xbf16>, vector<128x64xbf16>, vector<8x64xf32> -> vector<8x64xf32>
    %c0_27 = arith.constant 0 : index
    %c0_28 = arith.constant 0 : index
    %47 = vector.load %arg10[%c0_27, %c0_28] : memref<1x64xf32, #tpu.memory_space<vmem>>, vector<1x64xf32>
    %48 = vector.broadcast %47 : vector<1x64xf32> to vector<8x64xf32>
    %49 = arith.addf %46, %48 : vector<8x64xf32>
    %50 = arith.addf %7, %49 : vector<8x64xf32>
    %c0_29 = arith.constant 0 : index
    %c0_30 = arith.constant 0 : index
    %51 = vector.load %arg11[%c0_29, %c0_30] : memref<8x64xf32, #tpu.memory_space<vmem>>, vector<8x64xf32>
    tpu.vector_store %arg11[%c0_29, %c0_30], %50 {strides = array<i32>} : memref<8x64xf32, #tpu.memory_space<vmem>>, vector<8x64xf32>,
    return
  }
  func.func @transform_0(%arg0: i32) -> (i32, i32) {
    %c0_i32 = arith.constant 0 : i32
    %c0_i32_0 = arith.constant 0 : i32
    return %arg0, %c0_i32 : i32, i32
  }
  func.func @transform_1(%arg0: i32) -> (i32, i32) {
    %c0_i32 = arith.constant 0 : i32
    %c0_i32_0 = arith.constant 0 : i32
    return %arg0, %c0_i32 : i32, i32
  }
  func.func @transform_2(%arg0: i32) -> (i32, i32) {
    %c0_i32 = arith.constant 0 : i32
    %c0_i32_0 = arith.constant 0 : i32
    %c0_i32_1 = arith.constant 0 : i32
    return %c0_i32, %c0_i32_0 : i32, i32
  }
  func.func @transform_3(%arg0: i32) -> (i32, i32) {
    %c0_i32 = arith.constant 0 : i32
    %c0_i32_0 = arith.constant 0 : i32
    %c0_i32_1 = arith.constant 0 : i32
    return %c0_i32, %c0_i32_0 : i32, i32
  }
  func.func @transform_4(%arg0: i32) -> (i32, i32) {
    %c0_i32 = arith.constant 0 : i32
    %c0_i32_0 = arith.constant 0 : i32
    %c0_i32_1 = arith.constant 0 : i32
    return %c0_i32, %c0_i32_0 : i32, i32
  }
  func.func @transform_5(%arg0: i32) -> (i32, i32) {
    %c0_i32 = arith.constant 0 : i32
    %c0_i32_0 = arith.constant 0 : i32
    %c0_i32_1 = arith.constant 0 : i32
    return %c0_i32, %c0_i32_0 : i32, i32
  }
  func.func @transform_6(%arg0: i32) -> (i32, i32) {
    %c0_i32 = arith.constant 0 : i32
    %c0_i32_0 = arith.constant 0 : i32
    %c0_i32_1 = arith.constant 0 : i32
    return %c0_i32, %c0_i32_0 : i32, i32
  }
  func.func @transform_7(%arg0: i32) -> (i32, i32) {
    %c0_i32 = arith.constant 0 : i32
    %c0_i32_0 = arith.constant 0 : i32
    %c0_i32_1 = arith.constant 0 : i32
    return %c0_i32, %c0_i32_0 : i32, i32
  }
  func.func @transform_8(%arg0: i32) -> (i32, i32) {
    %c0_i32 = arith.constant 0 : i32
    %c0_i32_0 = arith.constant 0 : i32
    %c0_i32_1 = arith.constant 0 : i32
    return %c0_i32, %c0_i32_0 : i32, i32
  }
  func.func @transform_9(%arg0: i32) -> (i32, i32) {
    %c0_i32 = arith.constant 0 : i32
    %c0_i32_0 = arith.constant 0 : i32
    %c0_i32_1 = arith.constant 0 : i32
    return %c0_i32, %c0_i32_0 : i32, i32
  }
  func.func @transform_10(%arg0: i32) -> (i32, i32) {
    %c0_i32 = arith.constant 0 : i32
    %c0_i32_0 = arith.constant 0 : i32
    return %arg0, %c0_i32 : i32, i32
  }
}

</mosaic_0001>

<llo_original>
// kernel: tpu_custom_call.1
$region0: #{tpu_custom_call.1}
  #allocation0 [shape = 'u32[]', space=smem, size = 0x4, offset = 0x4, fixed_abs, tag = 'smem constant byte address 0x4 - core index']
  #allocation1 [shape = 'u32[72,128]{1,0:T(1,128)}', space=vmem, size = 0x9000, scoped, tag = 'internal scratch']
  %s0 = inlined_call_operand.hbm [shape: f32[8,128], index: 0, kind: input, shape index: {}]
  %s1 = inlined_call_operand.hbm [shape: f32[8,128], index: 1, kind: output, shape index: {}]
  %s2 = sld [smem:[#allocation0]]
  $region18: #{tpu_custom_call.1} parent=0
    _
  %s4 = ssub.s32 1, %s2
  %s5 = scalar_select 0, %s4, %s2
  $region1: #{tpu_custom_call.1} parent=0
    #allocation2 [shape = 'u8[4096]{0}', space=vmem, size = 0x1000, scoped, tag = 'input window, operand 0, single buffered']
    #allocation3 [shape = 's32[1]{0}', space=sflag, size = 0x4, scoped, tag = 'scoped memory for tpu_custom_call.1']
    #allocation4 [shape = 's32[1]{0}', space=sflag, size = 0x4, scoped, tag = 'scoped memory for tpu_custom_call.1']
    #allocation5 [shape = 'u8[4096]{0}', space=vmem, size = 0x1000, scoped, tag = 'output window, operand 0, single buffered']
    %6 = vsyncpa [#allocation3], 0
    %7 = vsyncpa [#allocation4], 0
    // Predicated region
    $region2: #{tpu_custom_call.1} parent=1 // pred_check
      _
    $region3: #{tpu_custom_call.1} parent=1 // pred_check_branch
      %9 = sbr.rel (0) target = $region5
    $region4: #{tpu_custom_call.1} parent=1 // pred_region
      %11 = vsyncadd [#allocation3], 0
      %s13 = sshll.u32 %s0, 4
      %s14 = int_to_ptr.hbm [resolvable:$true] %s13
      %s15 = sshll.u32 [#allocation2], 4
      %s16 = int_to_ptr.vmem [resolvable:$true] %s15
      %18 = dma.hbm_to_vmem [thread:$0]  %s14, 128, %s16, [#allocation3]
    $region5: #{tpu_custom_call.1} parent=1 // pred_fallthru
      _
    // Predicated region
    $region6: #{tpu_custom_call.1} parent=1 // pred_check
      _
    $region7: #{tpu_custom_call.1} parent=1 // pred_check_branch
      %20 = sbr.rel (0) target = $region9
    $region8: #{tpu_custom_call.1} parent=1 // pred_region
      %22 = dma.done [#allocation3], 128
    $region9: #{tpu_custom_call.1} parent=1 // pred_fallthru
      _
    %v23 = vld [vmem:[#allocation2] sm:$0xff]
    %v24 = vadd.f32 %v23, 1.0
    %25 = vst [vmem:[#allocation5] sm:$0xff] %v24
    // Predicated region
    $region10: #{tpu_custom_call.1} parent=1 // pred_check
      _
    $region11: #{tpu_custom_call.1} parent=1 // pred_check_branch
      %27 = sbr.rel (0) target = $region13
    $region12: #{tpu_custom_call.1} parent=1 // pred_region
      %29 = vsyncadd [#allocation4], 0
      %s31 = sshll.u32 [#allocation5], 4
      %s32 = int_to_ptr.vmem [resolvable:$true] %s31
      %s33 = sshll.u32 %s1, 4
      %s34 = int_to_ptr.hbm [resolvable:$true] %s33
      %36 = dma.vmem_to_hbm [thread:$0]  %s32, 128, %s34, [#allocation4]
    $region13: #{tpu_custom_call.1} parent=1 // pred_fallthru
      _
    // Predicated region
    $region14: #{tpu_custom_call.1} parent=1 // pred_check
      _
    $region15: #{tpu_custom_call.1} parent=1 // pred_check_branch
      %38 = sbr.rel (0) target = $region17
    $region16: #{tpu_custom_call.1} parent=1 // pred_region
      %40 = dma.done [#allocation4], 128
    $region17: #{tpu_custom_call.1} parent=1 // pred_fallthru
      _
    %41 = vsyncpa [#allocation3], 1
    %42 = vsyncpa [#allocation4], 1

// kernel: swin_encoder_forward.17
$region0: #{swin_encoder_forward.17}
  #allocation0 [shape = 'u32[]', space=smem, size = 0x4, offset = 0x4, fixed_abs, tag = 'smem constant byte address 0x4 - core index']
  #allocation1 [shape = 'u32[72,128]{1,0:T(1,128)}', space=vmem, size = 0x9000, scoped, tag = 'internal scratch']
  %s0 = inlined_call_operand.vmem [shape: f32[32,32], index: 0, kind: input, shape index: {}]
  %s1 = inlined_call_operand.vmem [shape: bf16[32,32], index: 1, kind: input, shape index: {}]
  %s2 = inlined_call_operand.vmem [shape: bf16[32,32], index: 2, kind: input, shape index: {}]
  %s3 = inlined_call_operand.vmem [shape: f32[1,32], index: 3, kind: input, shape index: {}, may-alias: {3,5,9}]
  %s4 = inlined_call_operand.vmem [shape: f32[1,32], index: 4, kind: input, shape index: {}]
  %s5 = inlined_call_operand.vmem [shape: f32[1,32], index: 5, kind: input, shape index: {}, may-alias: {3,5,9}]
  %s6 = inlined_call_operand.vmem [shape: bf16[32,64], index: 6, kind: input, shape index: {}]
  %s7 = inlined_call_operand.vmem [shape: f32[1,64], index: 7, kind: input, shape index: {}]
  %s8 = inlined_call_operand.vmem [shape: bf16[64,32], index: 8, kind: input, shape index: {}]
  %s9 = inlined_call_operand.vmem [shape: f32[1,32], index: 9, kind: input, shape index: {}, may-alias: {3,5,9}]
  %s10 = inlined_call_operand.vmem [shape: f32[32,32], index: 10, kind: output, shape index: {}]
  %s11 = sld [smem:[#allocation0]]
  $region73: #{swin_encoder_forward.17} parent=0
    _
  %s13 = ssub.s32 1, %s11
  %s14 = scalar_select 0, %s13, %s11
  loop: start=0, step=1, limit=4
  $region2: #{swin_encoder_forward.17} parent=0 // loop_pre_header
    _
  $region3: #{swin_encoder_forward.17} parent=0 // loop_header
    %s16 = sphi 0, %s20
    %p17 = scmp.ge.s32.totalorder %s16, 4
    %s26 = sphi 0, %s28
    %s29 = sphi 0, %s26
    %s30 = sphi 0, %s29
    %s46 = sphi 0, %s30
    %s52 = sphi 0, %s54
    %s55 = sphi 0, %s52
    %s56 = sphi 0, %s55
    %s72 = sphi 0, %s56
    %s76 = sphi 0, %s76
    %s78 = sphi 0, %s76
    %s79 = sphi 0, %s78
    %s93 = sphi 0, %s79
    %s97 = sphi 0, %s97
    %s99 = sphi 0, %s97
    %s100 = sphi 0, %s99
    %s114 = sphi 0, %s100
    %s118 = sphi 0, %s118
    %s120 = sphi 0, %s118
    %s121 = sphi 0, %s120
    %s135 = sphi 0, %s121
    %s139 = sphi 0, %s139
    %s141 = sphi 0, %s139
    %s142 = sphi 0, %s141
    %s156 = sphi 0, %s142
    %s160 = sphi 0, %s160
    %s162 = sphi 0, %s160
    %s163 = sphi 0, %s162
    %s177 = sphi 0, %s163
    %s181 = sphi 0, %s181
    %s183 = sphi 0, %s181
    %s184 = sphi 0, %s183
    %s198 = sphi 0, %s184
    %s202 = sphi 0, %s202
    %s204 = sphi 0, %s202
    %s205 = sphi 0, %s204
    %s219 = sphi 0, %s205
    %s223 = sphi 0, %s223
    %s225 = sphi 0, %s223
    %s226 = sphi 0, %s225
    %s240 = sphi 0, %s226
    %s246 = sphi 0, %s248
    %s249 = sphi 0, %s246
    %s250 = sphi 0, %s249
    %s266 = sphi 0, %s250
  $region4: #{swin_encoder_forward.17} parent=0 // loop_header_branch
    %19 = sbr.rel (%p17) target = $region8
  $region5: #{swin_encoder_forward.17} parent=0 // loop_body
    %s21 = ssub.s32 %s16, 1
    %s22 = ssub.s32 %s16, 2
    %s23 = sadd.s32 %s16, 1
    %s24 = ssub.s32 %s16, %s23
    %p25 = scmp.eq.s32.totalorder %s24, 0
    %s27 = sadd.s32 %s26, 1
    %s28 = scalar_select %p25, %s26, %s27
    %p31 = pneg %p25
    %p32 = scmp.eq.s32.totalorder %s16, 1
    %p33 = por %p31, %p32
    %p34 = scmp.ne.s32.totalorder %s26, %s29
    %p35 = scmp.eq.s32.totalorder %s16, 0
    %p36 = por %p34, %p35
    %p37 = scmp.ne.s32.totalorder %s26, %s29
    %p38 = scmp.eq.s32.totalorder %s21, 1
    %p39 = por %p37, %p38
    %p40 = scmp.ne.s32.totalorder %s29, %s30
    %p41 = scmp.eq.s32.totalorder %s21, 0
    %p42 = por %p40, %p41
    %p43 = scmp.ne.s32.totalorder %s29, %s30
    %p44 = scmp.eq.s32.totalorder %s22, 1
    %p45 = por %p43, %p44
    %p47 = scmp.ne.s32.totalorder %s30, %s46
    %p48 = scmp.eq.s32.totalorder %s22, 0
    %p49 = por %p47, %p48
    %s50 = ssub.s32 %s16, %s23
    %p51 = scmp.eq.s32.totalorder %s50, 0
    %s53 = sadd.s32 %s52, 1
    %s54 = scalar_select %p51, %s52, %s53
    %p57 = pneg %p51
    %p58 = scmp.eq.s32.totalorder %s16, 1
    %p59 = por %p57, %p58
    %p60 = scmp.ne.s32.totalorder %s52, %s55
    %p61 = scmp.eq.s32.totalorder %s16, 0
    %p62 = por %p60, %p61
    %p63 = scmp.ne.s32.totalorder %s52, %s55
    %p64 = scmp.eq.s32.totalorder %s21, 1
    %p65 = por %p63, %p64
    %p66 = scmp.ne.s32.totalorder %s55, %s56
    %p67 = scmp.eq.s32.totalorder %s21, 0
    %p68 = por %p66, %p67
    %p69 = scmp.ne.s32.totalorder %s55, %s56
    %p70 = scmp.eq.s32.totalorder %s22, 1
    %p71 = por %p69, %p70
    %p73 = scmp.ne.s32.totalorder %s56, %s72
    %p74 = scmp.eq.s32.totalorder %s22, 0
    %p75 = por %p73, %p74
    %s77 = sadd.s32 %s76, 1
    %p80 = scmp.eq.s32.totalorder %s16, 1
    %p81 = scmp.ne.s32.totalorder %s76, %s78
    %p82 = scmp.eq.s32.totalorder %s16, 0
    %p83 = por %p81, %p82
    %p84 = scmp.ne.s32.totalorder %s76, %s78
    %p85 = scmp.eq.s32.totalorder %s21, 1
    %p86 = por %p84, %p85
    %p87 = scmp.ne.s32.totalorder %s78, %s79
    %p88 = scmp.eq.s32.totalorder %s21, 0
    %p89 = por %p87, %p88
    %p90 = scmp.ne.s32.totalorder %s78, %s79
    %p91 = scmp.eq.s32.totalorder %s22, 1
    %p92 = por %p90, %p91
    %p94 = scmp.ne.s32.totalorder %s79, %s93
    %p95 = scmp.eq.s32.totalorder %s22, 0
    %p96 = por %p94, %p95
    %s98 = sadd.s32 %s97, 1
    %p101 = scmp.eq.s32.totalorder %s16, 1
    %p102 = scmp.ne.s32.totalorder %s97, %s99
    %p103 = scmp.eq.s32.totalorder %s16, 0
    %p104 = por %p102, %p103
    %p105 = scmp.ne.s32.totalorder %s97, %s99
    %p106 = scmp.eq.s32.totalorder %s21, 1
    %p107 = por %p105, %p106
    %p108 = scmp.ne.s32.totalorder %s99, %s100
    %p109 = scmp.eq.s32.totalorder %s21, 0
    %p110 = por %p108, %p109
    %p111 = scmp.ne.s32.totalorder %s99, %s100
    %p112 = scmp.eq.s32.totalorder %s22, 1
    %p113 = por %p111, %p112
    %p115 = scmp.ne.s32.totalorder %s100, %s114
    %p116 = scmp.eq.s32.totalorder %s22, 0
    %p117 = por %p115, %p116
    %s119 = sadd.s32 %s118, 1
    %p122 = scmp.eq.s32.totalorder %s16, 1
    %p123 = scmp.ne.s32.totalorder %s118, %s120
    %p124 = scmp.eq.s32.totalorder %s16, 0
    %p125 = por %p123, %p124
    %p126 = scmp.ne.s32.totalorder %s118, %s120
    %p127 = scmp.eq.s32.totalorder %s21, 1
    %p128 = por %p126, %p127
    %p129 = scmp.ne.s32.totalorder %s120, %s121
    %p130 = scmp.eq.s32.totalorder %s21, 0
    %p131 = por %p129, %p130
    %p132 = scmp.ne.s32.totalorder %s120, %s121
    %p133 = scmp.eq.s32.totalorder %s22, 1
    %p134 = por %p132, %p133
    %p136 = scmp.ne.s32.totalorder %s121, %s135
    %p137 = scmp.eq.s32.totalorder %s22, 0
    %p138 = por %p136, %p137
    %s140 = sadd.s32 %s139, 1
    %p143 = scmp.eq.s32.totalorder %s16, 1
    %p144 = scmp.ne.s32.totalorder %s139, %s141
    %p145 = scmp.eq.s32.totalorder %s16, 0
    %p146 = por %p144, %p145
    %p147 = scmp.ne.s32.totalorder %s139, %s141
    %p148 = scmp.eq.s32.totalorder %s21, 1
    %p149 = por %p147, %p148
    %p150 = scmp.ne.s32.totalorder %s141, %s142
    %p151 = scmp.eq.s32.totalorder %s21, 0
    %p152 = por %p150, %p151
    %p153 = scmp.ne.s32.totalorder %s141, %s142
    %p154 = scmp.eq.s32.totalorder %s22, 1
    %p155 = por %p153, %p154
    %p157 = scmp.ne.s32.totalorder %s142, %s156
    %p158 = scmp.eq.s32.totalorder %s22, 0
    %p159 = por %p157, %p158
    %s161 = sadd.s32 %s160, 1
    %p164 = scmp.eq.s32.totalorder %s16, 1
    %p165 = scmp.ne.s32.totalorder %s160, %s162
    %p166 = scmp.eq.s32.totalorder %s16, 0
    %p167 = por %p165, %p166
    %p168 = scmp.ne.s32.totalorder %s160, %s162
    %p169 = scmp.eq.s32.totalorder %s21, 1
    %p170 = por %p168, %p169
    %p171 = scmp.ne.s32.totalorder %s162, %s163
    %p172 = scmp.eq.s32.totalorder %s21, 0
    %p173 = por %p171, %p172
    %p174 = scmp.ne.s32.totalorder %s162, %s163
    %p175 = scmp.eq.s32.totalorder %s22, 1
    %p176 = por %p174, %p175
    %p178 = scmp.ne.s32.totalorder %s163, %s177
    %p179 = scmp.eq.s32.totalorder %s22, 0
    %p180 = por %p178, %p179
    %s182 = sadd.s32 %s181, 1
    %p185 = scmp.eq.s32.totalorder %s16, 1
    %p186 = scmp.ne.s32.totalorder %s181, %s183
    %p187 = scmp.eq.s32.totalorder %s16, 0
    %p188 = por %p186, %p187
    %p189 = scmp.ne.s32.totalorder %s181, %s183
    %p190 = scmp.eq.s32.totalorder %s21, 1
    %p191 = por %p189, %p190
    %p192 = scmp.ne.s32.totalorder %s183, %s184
    %p193 = scmp.eq.s32.totalorder %s21, 0
    %p194 = por %p192, %p193
    %p195 = scmp.ne.s32.totalorder %s183, %s184
    %p196 = scmp.eq.s32.totalorder %s22, 1
    %p197 = por %p195, %p196
    %p199 = scmp.ne.s32.totalorder %s184, %s198
    %p200 = scmp.eq.s32.totalorder %s22, 0
    %p201 = por %p199, %p200
    %s203 = sadd.s32 %s202, 1
    %p206 = scmp.eq.s32.totalorder %s16, 1
    %p207 = scmp.ne.s32.totalorder %s202, %s204
    %p208 = scmp.eq.s32.totalorder %s16, 0
    %p209 = por %p207, %p208
    %p210 = scmp.ne.s32.totalorder %s202, %s204
    %p211 = scmp.eq.s32.totalorder %s21, 1
    %p212 = por %p210, %p211
    %p213 = scmp.ne.s32.totalorder %s204, %s205
    %p214 = scmp.eq.s32.totalorder %s21, 0
    %p215 = por %p213, %p214
    %p216 = scmp.ne.s32.totalorder %s204, %s205
    %p217 = scmp.eq.s32.totalorder %s22, 1
    %p218 = por %p216, %p217
    %p220 = scmp.ne.s32.totalorder %s205, %s219
    %p221 = scmp.eq.s32.totalorder %s22, 0
    %p222 = por %p220, %p221
    %s224 = sadd.s32 %s223, 1
    %p227 = scmp.eq.s32.totalorder %s16, 1
    %p228 = scmp.ne.s32.totalorder %s223, %s225
    %p229 = scmp.eq.s32.totalorder %s16, 0
    %p230 = por %p228, %p229
    %p231 = scmp.ne.s32.totalorder %s223, %s225
    %p232 = scmp.eq.s32.totalorder %s21, 1
    %p233 = por %p231, %p232
    %p234 = scmp.ne.s32.totalorder %s225, %s226
    %p235 = scmp.eq.s32.totalorder %s21, 0
    %p236 = por %p234, %p235
    %p237 = scmp.ne.s32.totalorder %s225, %s226
    %p238 = scmp.eq.s32.totalorder %s22, 1
    %p239 = por %p237, %p238
    %p241 = scmp.ne.s32.totalorder %s226, %s240
    %p242 = scmp.eq.s32.totalorder %s22, 0
    %p243 = por %p241, %p242
    %s244 = ssub.s32 %s16, %s23
    %p245 = scmp.eq.s32.totalorder %s244, 0
    %s247 = sadd.s32 %s246, 1
    %s248 = scalar_select %p245, %s246, %s247
    %p251 = pneg %p245
    %p252 = scmp.eq.s32.totalorder %s16, 1
    %p253 = por %p251, %p252
    %p254 = scmp.ne.s32.totalorder %s246, %s249
    %p255 = scmp.eq.s32.totalorder %s16, 0
    %p256 = por %p254, %p255
    %p257 = scmp.ne.s32.totalorder %s246, %s249
    %p258 = scmp.eq.s32.totalorder %s21, 1
    %p259 = por %p257, %p258
    %p260 = scmp.ne.s32.totalorder %s249, %s250
    %p261 = scmp.eq.s32.totalorder %s21, 0
    %p262 = por %p260, %p261
    %p263 = scmp.ne.s32.totalorder %s249, %s250
    %p264 = scmp.eq.s32.totalorder %s22, 1
    %p265 = por %p263, %p264
    %p267 = scmp.ne.s32.totalorder %s250, %s266
    %p268 = scmp.eq.s32.totalorder %s22, 0
    %p269 = por %p267, %p268
    %p270 = scmp.le.s32.totalorder 1, %s16
    %p271 = scmp.lt.s32.totalorder %s16, 3
    %p272 = pnand %p270, %p271
    %p273 = pneg %p272
    // Predicated region
    $region9: #{swin_encoder_forward.17} parent=5 // pred_check
      _
    $region10: #{swin_encoder_forward.17} parent=5 // pred_check_branch
      %275 = sbr.rel (%p272) target = $region12
    $region11: #{swin_encoder_forward.17} parent=5 // pred_region
      %s276 = ssub.s32 %s16, 1
      // Predicated region
      $region13: #{swin_encoder_forward.17} parent=11 // pred_check
        %p277 = pneg %p89
      $region14: #{swin_encoder_forward.17} parent=11 // pred_check_branch
        %279 = sbr.rel (%p277) target = $region16
      $region15: #{swin_encoder_forward.17} parent=11 // pred_region
        _
      $region16: #{swin_encoder_forward.17} parent=11 // pred_fallthru
        _
      // Predicated region
      $region17: #{swin_encoder_forward.17} parent=11 // pred_check
        %p280 = pneg %p110
      $region18: #{swin_encoder_forward.17} parent=11 // pred_check_branch
        %282 = sbr.rel (%p280) target = $region20
      $region19: #{swin_encoder_forward.17} parent=11 // pred_region
        _
      $region20: #{swin_encoder_forward.17} parent=11 // pred_fallthru
        _
      // Predicated region
      $region21: #{swin_encoder_forward.17} parent=11 // pred_check
        %p283 = pneg %p131
      $region22: #{swin_encoder_forward.17} parent=11 // pred_check_branch
        %285 = sbr.rel (%p283) target = $region24
      $region23: #{swin_encoder_forward.17} parent=11 // pred_region
        _
      $region24: #{swin_encoder_forward.17} parent=11 // pred_fallthru
        _
      // Predicated region
      $region25: #{swin_encoder_forward.17} parent=11 // pred_check
        %p286 = pneg %p152
      $region26: #{swin_encoder_forward.17} parent=11 // pred_check_branch
        %288 = sbr.rel (%p286) target = $region28
      $region27: #{swin_encoder_forward.17} parent=11 // pred_region
        _
      $region28: #{swin_encoder_forward.17} parent=11 // pred_fallthru
        _
      // Predicated region
      $region29: #{swin_encoder_forward.17} parent=11 // pred_check
        %p289 = pneg %p173
      $region30: #{swin_encoder_forward.17} parent=11 // pred_check_branch
        %291 = sbr.rel (%p289) target = $region32
      $region31: #{swin_encoder_forward.17} parent=11 // pred_region
        _
      $region32: #{swin_encoder_forward.17} parent=11 // pred_fallthru
        _
      // Predicated region
      $region33: #{swin_encoder_forward.17} parent=11 // pred_check
        %p292 = pneg %p194
      $region34: #{swin_encoder_forward.17} parent=11 // pred_check_branch
        %294 = sbr.rel (%p292) target = $region36
      $region35: #{swin_encoder_forward.17} parent=11 // pred_region
        _
      $region36: #{swin_encoder_forward.17} parent=11 // pred_fallthru
        _
      // Predicated region
      $region37: #{swin_encoder_forward.17} parent=11 // pred_check
        %p295 = pneg %p215
      $region38: #{swin_encoder_forward.17} parent=11 // pred_check_branch
        %297 = sbr.rel (%p295) target = $region40
      $region39: #{swin_encoder_forward.17} parent=11 // pred_region
        _
      $region40: #{swin_encoder_forward.17} parent=11 // pred_fallthru
        _
      // Predicated region
      $region41: #{swin_encoder_forward.17} parent=11 // pred_check
        %p298 = pneg %p236
      $region42: #{swin_encoder_forward.17} parent=11 // pred_check_branch
        %300 = sbr.rel (%p298) target = $region44
      $region43: #{swin_encoder_forward.17} parent=11 // pred_region
        _
      $region44: #{swin_encoder_forward.17} parent=11 // pred_fallthru
        _
    $region12: #{swin_encoder_forward.17} parent=5 // pred_fallthru
      _
    %p301 = scmp.lt.s32.totalorder %s16, 2
    // Predicated region
    $region45: #{swin_encoder_forward.17} parent=5 // pred_check
      %p302 = pneg %p301
    $region46: #{swin_encoder_forward.17} parent=5 // pred_check_branch
      %304 = sbr.rel (%p302) target = $region48
    $region47: #{swin_encoder_forward.17} parent=5 // pred_region
      // Predicated region
      $region49: #{swin_encoder_forward.17} parent=47 // pred_check
        %p305 = pneg %p36
      $region50: #{swin_encoder_forward.17} parent=47 // pred_check_branch
        %307 = sbr.rel (%p305) target = $region52
      $region51: #{swin_encoder_forward.17} parent=47 // pred_region
        %s308 = smul.u32 2, %s16
        %p309 = scmp.lt.s32.totalorder %s308, 3
        %s310 = scalar_select %p309, %s308, 3
        %s311 = smul.addr %s310, 8
        %s312 = scalar_lea.vmem %s0, %s311
        %s313 = smul.u32 2, %s16
      $region52: #{swin_encoder_forward.17} parent=47 // pred_fallthru
        _
      // Predicated region
      $region53: #{swin_encoder_forward.17} parent=47 // pred_check
        %p314 = pneg %p62
      $region54: #{swin_encoder_forward.17} parent=47 // pred_check_branch
        %316 = sbr.rel (%p314) target = $region56
      $region55: #{swin_encoder_forward.17} parent=47 // pred_region
        %s317 = smul.u32 2, %s16
        %p318 = scmp.lt.s32.totalorder %s317, 3
        %s319 = scalar_select %p318, %s317, 3
        %s320 = smul.addr %s319, 4
        %s321 = scalar_lea.vmem %s1, %s320
        %s322 = smul.u32 2, %s16
      $region56: #{swin_encoder_forward.17} parent=47 // pred_fallthru
        _
    $region48: #{swin_encoder_forward.17} parent=5 // pred_fallthru
      _
    %p323 = scmp.le.s32.totalorder 1, %s16
    %p324 = scmp.lt.s32.totalorder %s16, 3
    %p325 = pnand %p323, %p324
    %p326 = pneg %p325
    // Predicated region
    $region57: #{swin_encoder_forward.17} parent=5 // pred_check
      _
    $region58: #{swin_encoder_forward.17} parent=5 // pred_check_branch
      %328 = sbr.rel (%p325) target = $region60
    $region59: #{swin_encoder_forward.17} parent=5 // pred_region
      %s329 = ssub.s32 %s16, 1
      %s330 = smul.u32 2, %s21
      %p331 = scmp.lt.s32.totalorder %s330, 3
      %s332 = scalar_select %p331, %s330, 3
      %s333 = smul.addr %s332, 8
      %s334 = scalar_lea.vmem %s0, %s333
      %p335 = pneg %p42
      %p336 = pneg %p39
      %s337 = smul.u32 2, %s21
      %p338 = scmp.lt.s32.totalorder %s337, 3
      %s339 = scalar_select %p338, %s337, 3
      %s340 = smul.addr %s339, 4
      %s341 = scalar_lea.vmem %s1, %s340
      %p342 = pneg %p68
      %p343 = pneg %p65
      %p344 = pneg %p89
      %p345 = pneg %p86
      %p346 = pneg %p110
      %p347 = pneg %p107
      %p348 = pneg %p131
      %p349 = pneg %p128
      %p350 = pneg %p152
      %p351 = pneg %p149
      %p352 = pneg %p173
      %p353 = pneg %p170
      %p354 = pneg %p194
      %p355 = pneg %p191
      %p356 = pneg %p215
      %p357 = pneg %p212
      %p358 = pneg %p236
      %p359 = pneg %p233
      %p360 = pneg %p262
      %p361 = pneg %p259
      %s362 = smul.u32 2, %s21
      %p363 = scmp.lt.s32.totalorder %s362, 3
      %s364 = scalar_select %p363, %s362, 3
      %s365 = smul.addr %s364, 8
      %s366 = scalar_lea.vmem %s10, %s365
      %s367 = smul.u32 2, %s21
      %p368 = scmp.lt.s32.totalorder %s367, 3
      %s369 = scalar_select %p368, %s367, 3
      %s370 = smul.addr %s369, 8
      %s371 = scalar_lea.vmem %s0, %s370
      %s372 = smul.u32 2, %s21
      %s373 = smul.u32 2, %s21
      %p374 = scmp.lt.s32.totalorder %s373, 3
      %s375 = scalar_select %p374, %s373, 3
      %s376 = smul.addr %s375, 4
      %s377 = scalar_lea.vmem %s1, %s376
      %s378 = smul.u32 2, %s21
      %s379 = smul.u32 2, %s21
      %p380 = scmp.lt.s32.totalorder %s379, 3
      %s381 = scalar_select %p380, %s379, 3
      %s382 = smul.addr %s381, 8
      %s383 = scalar_lea.vmem %s10, %s382
      %s384 = smul.u32 2, %s21
      %v386 = vld [vmem:[%s377] sm:$0xf]
      %v387 = vld [vmem:[%s377 + $0x4] sm:$0xf]
      %v388 = vld [vmem:[%s2] sm:$0xf]
      %v389 = vld [vmem:[%s2 + $0x4] sm:$0xf]
      %v390 = vld [vmem:[%s2 + $0x8] sm:$0xf]
      %v391 = vld [vmem:[%s2 + $0xc] sm:$0xf]
      %v392 = vld [vmem:[%s3] sm:$0x1]
      %v394 = vperm.slane %v392, 0
      %v398 = vunpack.c.l.b16 %v386
      %v399 = vunpack.c.l.b16 %v387
      %v400 = vpack.c.b16 %v399, %v398
      %v405 = vunpack.c.l.b16 %v388
      %v406 = vunpack.c.l.b16 %v389
      %v407 = vunpack.c.l.b16 %v390
      %v408 = vunpack.c.l.b16 %v391
      %v409 = vpack.c.b16 %v406, %v405
      %v410 = vpack.c.b16 %v408, %v407
      %vm413 = vcmask 261120
      %v415 = vsel %vm413, %v400, 0
      %417 = vmatpush.bf16.msra.mxu0 0
      %418 = vmatpush.bf16.msra.mxu0 0
      %419 = vmatpush.bf16.msra.mxu0 0
      %420 = vmatpush.bf16.msra.mxu0 0
      %421 = vmatpush.bf16.msra.mxu0 0
      %422 = vmatpush.bf16.msra.mxu0 0
      %423 = vmatpush.bf16.msra.mxu0 %v410
      %424 = vmatpush.bf16.msra.mxu0 %v409
      %425 = vmatmul.bf16.gmra.mxu0 %v415
      %v426 = vpop.f32.mrf.mxu0
      %v427 = vadd.f32 %v394, %v426
      %v428 = vpop.f32.mrf.mxu0
      %v429 = vadd.f32 %v394, %v428
      %430 = vdwg.mxu0
      %v431 = vld [vmem:[%s371] sm:$0xff]
      %v432 = vld [vmem:[%s371 + $0x8] sm:$0xff]
      %v433 = vadd.f32 %v431, %v427
      %v434 = vadd.f32 %v432, %v429
      %v435 = vsel %vm413, %v433, 0.0
      %436 = vadd.xlane.f32.xlu0 %v435
      %v437 = vpop.xlane.xlu0 %436
      %v438 = vsel %vm413, %v434, 0.0
      %439 = vadd.xlane.f32.xlu0 %v438
      %v440 = vpop.xlane.xlu0 %439
      %v441 = vrcp.pop 32.0
      %v442 = vmul.f32 32.0, %v441
      %v443 = vsub.f32 1.0, %v442
      %v444 = vmul.f32 %v441, %v443
      %v445 = vadd.f32 %v441, %v444
      %vm446 = vweird.f32 %v441
      %v447 = vsel %vm446, %v441, %v445
      %v448 = vmul.f32 %v437, %v447
      %v449 = vmul.f32 %v440, %v447
      %v450 = vsub.f32 %v433, %v448
      %v451 = vsub.f32 %v434, %v449
      %v452 = vmul.f32 %v450, %v450
      %v453 = vmul.f32 %v451, %v451
      %v454 = vsel %vm413, %v452, 0.0
      %455 = vadd.xlane.f32.xlu0 %v454
      %v456 = vpop.xlane.xlu0 %455
      %v457 = vsel %vm413, %v453, 0.0
      %458 = vadd.xlane.f32.xlu0 %v457
      %v459 = vpop.xlane.xlu0 %458
      %v460 = vmul.f32 %v456, %v447
      %v461 = vmul.f32 %v459, %v447
      %v462 = vadd.f32 %v460, 1e-05
      %v463 = vadd.f32 %v461, 1e-05
      %v464 = vrsqrt.pop %v462
      %v465 = vmul.f32 %v464, %v462
      %v466 = vmul.f32 %v465, %v464
      %v467 = vmul.f32 0.5, %v466
      %v468 = vsub.f32 1.5, %v467
      %v469 = vmul.f32 %v464, %v468
      %vm470 = vweird.f32 %v462
      %vm471 = vweird.f32 %v464
      %vm472 = vmor %vm470, %vm471
      %v473 = vsel %vm472, %v464, %v469
      %v474 = vrsqrt.pop %v463
      %v475 = vmul.f32 %v474, %v463
      %v476 = vmul.f32 %v475, %v474
      %v477 = vmul.f32 0.5, %v476
      %v478 = vsub.f32 1.5, %v477
      %v479 = vmul.f32 %v474, %v478
      %vm480 = vweird.f32 %v463
      %vm481 = vweird.f32 %v474
      %vm482 = vmor %vm480, %vm481
      %v483 = vsel %vm482, %v474, %v479
      %v484 = vmul.f32 %v450, %v473
      %v485 = vmul.f32 %v451, %v483
      %v486 = vld [vmem:[%s4] sm:$0x1]
      %v488 = vperm.slane %v486, 0
      %v490 = vmul.f32 %v484, %v488
      %v491 = vmul.f32 %v485, %v488
      %v492 = vld [vmem:[%s5] sm:$0x1]
      %v494 = vperm.slane %v492, 0
      %v496 = vadd.f32 %v490, %v494
      %v497 = vadd.f32 %v491, %v494
      %v498 = vpack.c.bf16 %v497, %v496
      %v499 = vld [vmem:[%s6] sm:$0xf]
      %v500 = vld [vmem:[%s6 + $0x4] sm:$0xf]
      %v501 = vld [vmem:[%s6 + $0x8] sm:$0xf]
      %v502 = vld [vmem:[%s6 + $0xc] sm:$0xf]
      %v503 = vld [vmem:[%s7] sm:$0x1]
      %v505 = vperm.slane %v503, 0
      %v511 = vunpack.c.l.b16 %v499
      %v512 = vunpack.c.l.b16 %v500
      %v513 = vunpack.c.l.b16 %v501
      %v514 = vunpack.c.l.b16 %v502
      %v515 = vpack.c.b16 %v512, %v511
      %v516 = vpack.c.b16 %v514, %v513
      %v520 = vsel %vm413, %v498, 0
      %522 = vmatpush.bf16.msra.mxu0 0
      %523 = vmatpush.bf16.msra.mxu0 0
      %524 = vmatpush.bf16.msra.mxu0 0
      %525 = vmatpush.bf16.msra.mxu0 0
      %526 = vmatpush.bf16.msra.mxu0 0
      %527 = vmatpush.bf16.msra.mxu0 0
      %528 = vmatpush.bf16.msra.mxu0 %v516
      %529 = vmatpush.bf16.msra.mxu0 %v515
      %530 = vmatmul.bf16.gmra.mxu0 %v520
      %v531 = vpop.f32.mrf.mxu0
      %v532 = vadd.f32 %v505, %v531
      %v533 = vpop.f32.mrf.mxu0
      %v534 = vadd.f32 %v505, %v533
      %535 = vdwg.mxu0
      %v536 = vmul.f32 %v532, 0.5
      %v537 = vmul.f32 %v534, 0.5
      %v538 = vmul.f32 %v532, 0.70710677
      %v539 = vmul.f32 %v534, 0.70710677
      %v540 = vmul.f32 %v538, %v538
      %v541 = vmin.f32 16.0, %v540
      %v542 = vmul.f32 %v541, 2.1237322e-06
      %v543 = vadd.f32 %v542, 0.00028619796
      %v544 = vmul.f32 %v541, %v543
      %v545 = vadd.f32 %v544, 0.0036580483
      %v546 = vmul.f32 %v541, %v545
      %v547 = vadd.f32 %v546, 0.05243302
      %v548 = vmul.f32 %v541, %v547
      %v549 = vadd.f32 %v548, 0.18741608
      %v550 = vmul.f32 %v541, %v549
      %v551 = vadd.f32 %v550, 1.1283791
      %v552 = vmul.f32 %v538, %v551
      %v553 = vmul.f32 %v541, 3.8918573e-05
      %v554 = vadd.f32 %v553, 0.001143296
      %v555 = vmul.f32 %v541, %v554
      %v556 = vadd.f32 %v555, 0.014752088
      %v557 = vmul.f32 %v541, %v556
      %v558 = vadd.f32 %v557, 0.112945676
      %v559 = vmul.f32 %v541, %v558
      %v560 = vadd.f32 %v559, 0.4994258
      %v561 = vmul.f32 %v541, %v560
      %v562 = vadd.f32 %v561, 1.0
      %v563 = vrcp.pop %v562
      %v564 = vmul.f32 %v562, %v563
      %v565 = vsub.f32 1.0, %v564
      %v566 = vmul.f32 %v563, %v565
      %v567 = vadd.f32 %v563, %v566
      %vm568 = vweird.f32 %v562
      %vm569 = vweird.f32 %v563
      %vm570 = vmor %vm568, %vm569
      %v571 = vsel %vm570, %v563, %v567
      %v572 = vand.u32 2147483647, %v562
      %vm573 = vcmp.eq.f32.partialorder %v572, 8.507059e+37
      %v574 = vand.u32 %v562, 2147483648
      %v575 = vor.u32 1.1754944e-38, %v574
      %v576 = vsel %vm573, %v575, %v571
      %v577 = vmul.f32 %v552, %v576
      %v578 = vmin.f32 %v577, 1.0
      %v579 = vmax.f32 %v578, -1.0
      %v580 = vmul.f32 %v539, %v539
      %v581 = vmin.f32 16.0, %v580
      %v582 = vmul.f32 %v581, 2.1237322e-06
      %v583 = vadd.f32 %v582, 0.00028619796
      %v584 = vmul.f32 %v581, %v583
      %v585 = vadd.f32 %v584, 0.0036580483
      %v586 = vmul.f32 %v581, %v585
      %v587 = vadd.f32 %v586, 0.05243302
      %v588 = vmul.f32 %v581, %v587
      %v589 = vadd.f32 %v588, 0.18741608
      %v590 = vmul.f32 %v581, %v589
      %v591 = vadd.f32 %v590, 1.1283791
      %v592 = vmul.f32 %v539, %v591
      %v593 = vmul.f32 %v581, 3.8918573e-05
      %v594 = vadd.f32 %v593, 0.001143296
      %v595 = vmul.f32 %v581, %v594
      %v596 = vadd.f32 %v595, 0.014752088
      %v597 = vmul.f32 %v581, %v596
      %v598 = vadd.f32 %v597, 0.112945676
      %v599 = vmul.f32 %v581, %v598
      %v600 = vadd.f32 %v599, 0.4994258
      %v601 = vmul.f32 %v581, %v600
      %v602 = vadd.f32 %v601, 1.0
      %v603 = vrcp.pop %v602
      %v604 = vmul.f32 %v602, %v603
      %v605 = vsub.f32 1.0, %v604
      %v606 = vmul.f32 %v603, %v605
      %v607 = vadd.f32 %v603, %v606
      %vm608 = vweird.f32 %v602
      %vm609 = vweird.f32 %v603
      %vm610 = vmor %vm608, %vm609
      %v611 = vsel %vm610, %v603, %v607
      %v612 = vand.u32 2147483647, %v602
      %vm613 = vcmp.eq.f32.partialorder %v612, 8.507059e+37
      %v614 = vand.u32 %v602, 2147483648
      %v615 = vor.u32 1.1754944e-38, %v614
      %v616 = vsel %vm613, %v615, %v611
      %v617 = vmul.f32 %v592, %v616
      %v618 = vmin.f32 %v617, 1.0
      %v619 = vmax.f32 %v618, -1.0
      %v620 = vadd.f32 %v579, 1.0
      %v621 = vadd.f32 %v619, 1.0
      %v622 = vmul.f32 %v536, %v620
      %v623 = vmul.f32 %v537, %v621
      %v624 = vpack.c.bf16 %v623, %v622
      %v625 = vld [vmem:[%s8] sm:$0xf]
      %v626 = vld [vmem:[%s8 + $0x4] sm:$0xf]
      %v627 = vld [vmem:[%s8 + $0x8] sm:$0xf]
      %v628 = vld [vmem:[%s8 + $0xc] sm:$0xf]
      %v629 = vld [vmem:[%s8 + $0x10] sm:$0xf]
      %v630 = vld [vmem:[%s8 + $0x14] sm:$0xf]
      %v631 = vld [vmem:[%s8 + $0x18] sm:$0xf]
      %v632 = vld [vmem:[%s8 + $0x1c] sm:$0xf]
      %v633 = vld [vmem:[%s9] sm:$0x1]
      %v635 = vperm.slane %v633, 0
      %v645 = vunpack.c.l.b16 %v625
      %v646 = vunpack.c.l.b16 %v626
      %v647 = vunpack.c.l.b16 %v627
      %v648 = vunpack.c.l.b16 %v628
      %v649 = vunpack.c.l.b16 %v629
      %v650 = vunpack.c.l.b16 %v630
      %v651 = vunpack.c.l.b16 %v631
      %v652 = vunpack.c.l.b16 %v632
      %v653 = vpack.c.b16 %v646, %v645
      %v654 = vpack.c.b16 %v648, %v647
      %v655 = vpack.c.b16 %v650, %v649
      %v656 = vpack.c.b16 %v652, %v651
      %vm661 = vcmask 523264
      %v663 = vsel %vm661, %v624, 0
      %665 = vmatpush.bf16.msra.mxu0 0
      %666 = vmatpush.bf16.msra.mxu0 0
      %667 = vmatpush.bf16.msra.mxu0 0
      %668 = vmatpush.bf16.msra.mxu0 0
      %669 = vmatpush.bf16.msra.mxu0 %v656
      %670 = vmatpush.bf16.msra.mxu0 %v655
      %671 = vmatpush.bf16.msra.mxu0 %v654
      %672 = vmatpush.bf16.msra.mxu0 %v653
      %673 = vmatmul.bf16.gmra.mxu0 %v663
      %v674 = vpop.f32.mrf.mxu0
      %v675 = vadd.f32 %v635, %v674
      %v676 = vpop.f32.mrf.mxu0
      %v677 = vadd.f32 %v635, %v676
      %678 = vdwg.mxu0
      %v679 = vadd.f32 %v433, %v675
      %v680 = vadd.f32 %v434, %v677
      %681 = vst.msk [vmem:[%s383] sm:$0xff] %vm413, %v679
      %682 = vst.msk [vmem:[%s383 + $0x8] sm:$0xff] %vm413, %v680
      %s683 = smul.u32 2, %s21
      %p684 = scmp.lt.s32.totalorder %s683, 3
      %s685 = scalar_select %p684, %s683, 3
      %s686 = smul.addr %s685, 8
      %s687 = scalar_lea.vmem %s10, %s686
      // Predicated region
      $region61: #{swin_encoder_forward.17} parent=59 // pred_check
        %p688 = pneg %p259
      $region62: #{swin_encoder_forward.17} parent=59 // pred_check_branch
        %690 = sbr.rel (%p688) target = $region64
      $region63: #{swin_encoder_forward.17} parent=59 // pred_region
        %s691 = smul.u32 2, %s21
      $region64: #{swin_encoder_forward.17} parent=59 // pred_fallthru
        _
    $region60: #{swin_encoder_forward.17} parent=5 // pred_fallthru
      _
    %p692 = scmp.le.s32.totalorder 2, %s16
    // Predicated region
    $region65: #{swin_encoder_forward.17} parent=5 // pred_check
      %p693 = pneg %p692
    $region66: #{swin_encoder_forward.17} parent=5 // pred_check_branch
      %695 = sbr.rel (%p693) target = $region68
    $region67: #{swin_encoder_forward.17} parent=5 // pred_region
      %s696 = ssub.s32 %s16, 2
      // Predicated region
      $region69: #{swin_encoder_forward.17} parent=67 // pred_check
        %p697 = pneg %p265
      $region70: #{swin_encoder_forward.17} parent=67 // pred_check_branch
        %699 = sbr.rel (%p697) target = $region72
      $region71: #{swin_encoder_forward.17} parent=67 // pred_region
        %s700 = smul.u32 2, %s22
        %p701 = scmp.lt.s32.totalorder %s700, 3
        %s702 = scalar_select %p701, %s700, 3
        %s703 = smul.addr %s702, 8
        %s704 = scalar_lea.vmem %s10, %s703
      $region72: #{swin_encoder_forward.17} parent=67 // pred_fallthru
        _
    $region68: #{swin_encoder_forward.17} parent=5 // pred_fallthru
      _
  $region6: #{swin_encoder_forward.17} parent=0 // loop_footer
    %s20 = sadd.s32 1, %s16
  $region7: #{swin_encoder_forward.17} parent=0 // loop_footer_branch
    %15 = sbr.rel target = $region3
  $region8: #{swin_encoder_forward.17} parent=0 // loop_exit
    _

// kernel: swin_encoder_forward.15
$region0: #{swin_encoder_forward.15}
  #allocation0 [shape = 'u32[]', space=smem, size = 0x4, offset = 0x4, fixed_abs, tag = 'smem constant byte address 0x4 - core index']
  #allocation1 [shape = 'u32[72,128]{1,0:T(1,128)}', space=vmem, size = 0x9000, scoped, tag = 'internal scratch']
  %s0 = inlined_call_operand.vmem [shape: f32[32,32], index: 0, kind: input, shape index: {}]
  %s1 = inlined_call_operand.vmem [shape: f32[1,32], index: 1, kind: input, shape index: {}]
  %s2 = inlined_call_operand.vmem [shape: f32[1,32], index: 2, kind: input, shape index: {}]
  %s3 = inlined_call_operand.vmem [shape: bf16[32,96], index: 3, kind: input, shape index: {}]
  %s4 = inlined_call_operand.vmem [shape: f32[1,96], index: 4, kind: input, shape index: {}]
  %s5 = inlined_call_operand.vmem [shape: bf16[32,96], index: 5, kind: output, shape index: {}]
  %s6 = sld [smem:[#allocation0]]
  $region53: #{swin_encoder_forward.15} parent=0
    _
  %s8 = ssub.s32 1, %s6
  %s9 = scalar_select 0, %s8, %s6
  loop: start=0, step=1, limit=4
  $region2: #{swin_encoder_forward.15} parent=0 // loop_pre_header
    _
  $region3: #{swin_encoder_forward.15} parent=0 // loop_header
    %s11 = sphi 0, %s15
    %p12 = scmp.ge.s32.totalorder %s11, 4
    %s21 = sphi 0, %s23
    %s24 = sphi 0, %s21
    %s25 = sphi 0, %s24
    %s41 = sphi 0, %s25
    %s45 = sphi 0, %s45
    %s47 = sphi 0, %s45
    %s48 = sphi 0, %s47
    %s62 = sphi 0, %s48
    %s66 = sphi 0, %s66
    %s68 = sphi 0, %s66
    %s69 = sphi 0, %s68
    %s83 = sphi 0, %s69
    %s87 = sphi 0, %s87
    %s89 = sphi 0, %s87
    %s90 = sphi 0, %s89
    %s104 = sphi 0, %s90
    %s108 = sphi 0, %s108
    %s110 = sphi 0, %s108
    %s111 = sphi 0, %s110
    %s125 = sphi 0, %s111
    %s131 = sphi 0, %s133
    %s134 = sphi 0, %s131
    %s135 = sphi 0, %s134
    %s151 = sphi 0, %s135
  $region4: #{swin_encoder_forward.15} parent=0 // loop_header_branch
    %14 = sbr.rel (%p12) target = $region8
  $region5: #{swin_encoder_forward.15} parent=0 // loop_body
    %s16 = ssub.s32 %s11, 1
    %s17 = ssub.s32 %s11, 2
    %s18 = sadd.s32 %s11, 1
    %s19 = ssub.s32 %s11, %s18
    %p20 = scmp.eq.s32.totalorder %s19, 0
    %s22 = sadd.s32 %s21, 1
    %s23 = scalar_select %p20, %s21, %s22
    %p26 = pneg %p20
    %p27 = scmp.eq.s32.totalorder %s11, 1
    %p28 = por %p26, %p27
    %p29 = scmp.ne.s32.totalorder %s21, %s24
    %p30 = scmp.eq.s32.totalorder %s11, 0
    %p31 = por %p29, %p30
    %p32 = scmp.ne.s32.totalorder %s21, %s24
    %p33 = scmp.eq.s32.totalorder %s16, 1
    %p34 = por %p32, %p33
    %p35 = scmp.ne.s32.totalorder %s24, %s25
    %p36 = scmp.eq.s32.totalorder %s16, 0
    %p37 = por %p35, %p36
    %p38 = scmp.ne.s32.totalorder %s24, %s25
    %p39 = scmp.eq.s32.totalorder %s17, 1
    %p40 = por %p38, %p39
    %p42 = scmp.ne.s32.totalorder %s25, %s41
    %p43 = scmp.eq.s32.totalorder %s17, 0
    %p44 = por %p42, %p43
    %s46 = sadd.s32 %s45, 1
    %p49 = scmp.eq.s32.totalorder %s11, 1
    %p50 = scmp.ne.s32.totalorder %s45, %s47
    %p51 = scmp.eq.s32.totalorder %s11, 0
    %p52 = por %p50, %p51
    %p53 = scmp.ne.s32.totalorder %s45, %s47
    %p54 = scmp.eq.s32.totalorder %s16, 1
    %p55 = por %p53, %p54
    %p56 = scmp.ne.s32.totalorder %s47, %s48
    %p57 = scmp.eq.s32.totalorder %s16, 0
    %p58 = por %p56, %p57
    %p59 = scmp.ne.s32.totalorder %s47, %s48
    %p60 = scmp.eq.s32.totalorder %s17, 1
    %p61 = por %p59, %p60
    %p63 = scmp.ne.s32.totalorder %s48, %s62
    %p64 = scmp.eq.s32.totalorder %s17, 0
    %p65 = por %p63, %p64
    %s67 = sadd.s32 %s66, 1
    %p70 = scmp.eq.s32.totalorder %s11, 1
    %p71 = scmp.ne.s32.totalorder %s66, %s68
    %p72 = scmp.eq.s32.totalorder %s11, 0
    %p73 = por %p71, %p72
    %p74 = scmp.ne.s32.totalorder %s66, %s68
    %p75 = scmp.eq.s32.totalorder %s16, 1
    %p76 = por %p74, %p75
    %p77 = scmp.ne.s32.totalorder %s68, %s69
    %p78 = scmp.eq.s32.totalorder %s16, 0
    %p79 = por %p77, %p78
    %p80 = scmp.ne.s32.totalorder %s68, %s69
    %p81 = scmp.eq.s32.totalorder %s17, 1
    %p82 = por %p80, %p81
    %p84 = scmp.ne.s32.totalorder %s69, %s83
    %p85 = scmp.eq.s32.totalorder %s17, 0
    %p86 = por %p84, %p85
    %s88 = sadd.s32 %s87, 1
    %p91 = scmp.eq.s32.totalorder %s11, 1
    %p92 = scmp.ne.s32.totalorder %s87, %s89
    %p93 = scmp.eq.s32.totalorder %s11, 0
    %p94 = por %p92, %p93
    %p95 = scmp.ne.s32.totalorder %s87, %s89
    %p96 = scmp.eq.s32.totalorder %s16, 1
    %p97 = por %p95, %p96
    %p98 = scmp.ne.s32.totalorder %s89, %s90
    %p99 = scmp.eq.s32.totalorder %s16, 0
    %p100 = por %p98, %p99
    %p101 = scmp.ne.s32.totalorder %s89, %s90
    %p102 = scmp.eq.s32.totalorder %s17, 1
    %p103 = por %p101, %p102
    %p105 = scmp.ne.s32.totalorder %s90, %s104
    %p106 = scmp.eq.s32.totalorder %s17, 0
    %p107 = por %p105, %p106
    %s109 = sadd.s32 %s108, 1
    %p112 = scmp.eq.s32.totalorder %s11, 1
    %p113 = scmp.ne.s32.totalorder %s108, %s110
    %p114 = scmp.eq.s32.totalorder %s11, 0
    %p115 = por %p113, %p114
    %p116 = scmp.ne.s32.totalorder %s108, %s110
    %p117 = scmp.eq.s32.totalorder %s16, 1
    %p118 = por %p116, %p117
    %p119 = scmp.ne.s32.totalorder %s110, %s111
    %p120 = scmp.eq.s32.totalorder %s16, 0
    %p121 = por %p119, %p120
    %p122 = scmp.ne.s32.totalorder %s110, %s111
    %p123 = scmp.eq.s32.totalorder %s17, 1
    %p124 = por %p122, %p123
    %p126 = scmp.ne.s32.totalorder %s111, %s125
    %p127 = scmp.eq.s32.totalorder %s17, 0
    %p128 = por %p126, %p127
    %s129 = ssub.s32 %s11, %s18
    %p130 = scmp.eq.s32.totalorder %s129, 0
    %s132 = sadd.s32 %s131, 1
    %s133 = scalar_select %p130, %s131, %s132
    %p136 = pneg %p130
    %p137 = scmp.eq.s32.totalorder %s11, 1
    %p138 = por %p136, %p137
    %p139 = scmp.ne.s32.totalorder %s131, %s134
    %p140 = scmp.eq.s32.totalorder %s11, 0
    %p141 = por %p139, %p140
    %p142 = scmp.ne.s32.totalorder %s131, %s134
    %p143 = scmp.eq.s32.totalorder %s16, 1
    %p144 = por %p142, %p143
    %p145 = scmp.ne.s32.totalorder %s134, %s135
    %p146 = scmp.eq.s32.totalorder %s16, 0
    %p147 = por %p145, %p146
    %p148 = scmp.ne.s32.totalorder %s134, %s135
    %p149 = scmp.eq.s32.totalorder %s17, 1
    %p150 = por %p148, %p149
    %p152 = scmp.ne.s32.totalorder %s135, %s151
    %p153 = scmp.eq.s32.totalorder %s17, 0
    %p154 = por %p152, %p153
    %p155 = scmp.le.s32.totalorder 1, %s11
    %p156 = scmp.lt.s32.totalorder %s11, 3
    %p157 = pnand %p155, %p156
    %p158 = pneg %p157
    // Predicated region
    $region9: #{swin_encoder_forward.15} parent=5 // pred_check
      _
    $region10: #{swin_encoder_forward.15} parent=5 // pred_check_branch
      %160 = sbr.rel (%p157) target = $region12
    $region11: #{swin_encoder_forward.15} parent=5 // pred_region
      %s161 = ssub.s32 %s11, 1
      // Predicated region
      $region13: #{swin_encoder_forward.15} parent=11 // pred_check
        %p162 = pneg %p58
      $region14: #{swin_encoder_forward.15} parent=11 // pred_check_branch
        %164 = sbr.rel (%p162) target = $region16
      $region15: #{swin_encoder_forward.15} parent=11 // pred_region
        _
      $region16: #{swin_encoder_forward.15} parent=11 // pred_fallthru
        _
      // Predicated region
      $region17: #{swin_encoder_forward.15} parent=11 // pred_check
        %p165 = pneg %p79
      $region18: #{swin_encoder_forward.15} parent=11 // pred_check_branch
        %167 = sbr.rel (%p165) target = $region20
      $region19: #{swin_encoder_forward.15} parent=11 // pred_region
        _
      $region20: #{swin_encoder_forward.15} parent=11 // pred_fallthru
        _
      // Predicated region
      $region21: #{swin_encoder_forward.15} parent=11 // pred_check
        %p168 = pneg %p100
      $region22: #{swin_encoder_forward.15} parent=11 // pred_check_branch
        %170 = sbr.rel (%p168) target = $region24
      $region23: #{swin_encoder_forward.15} parent=11 // pred_region
        _
      $region24: #{swin_encoder_forward.15} parent=11 // pred_fallthru
        _
      // Predicated region
      $region25: #{swin_encoder_forward.15} parent=11 // pred_check
        %p171 = pneg %p121
      $region26: #{swin_encoder_forward.15} parent=11 // pred_check_branch
        %173 = sbr.rel (%p171) target = $region28
      $region27: #{swin_encoder_forward.15} parent=11 // pred_region
        _
      $region28: #{swin_encoder_forward.15} parent=11 // pred_fallthru
        _
    $region12: #{swin_encoder_forward.15} parent=5 // pred_fallthru
      _
    %p174 = scmp.lt.s32.totalorder %s11, 2
    // Predicated region
    $region29: #{swin_encoder_forward.15} parent=5 // pred_check
      %p175 = pneg %p174
    $region30: #{swin_encoder_forward.15} parent=5 // pred_check_branch
      %177 = sbr.rel (%p175) target = $region32
    $region31: #{swin_encoder_forward.15} parent=5 // pred_region
      // Predicated region
      $region33: #{swin_encoder_forward.15} parent=31 // pred_check
        %p178 = pneg %p31
      $region34: #{swin_encoder_forward.15} parent=31 // pred_check_branch
        %180 = sbr.rel (%p178) target = $region36
      $region35: #{swin_encoder_forward.15} parent=31 // pred_region
        %s181 = smul.u32 2, %s11
        %p182 = scmp.lt.s32.totalorder %s181, 3
        %s183 = scalar_select %p182, %s181, 3
        %s184 = smul.addr %s183, 8
        %s185 = scalar_lea.vmem %s0, %s184
        %s186 = smul.u32 2, %s11
      $region36: #{swin_encoder_forward.15} parent=31 // pred_fallthru
        _
    $region32: #{swin_encoder_forward.15} parent=5 // pred_fallthru
      _
    %p187 = scmp.le.s32.totalorder 1, %s11
    %p188 = scmp.lt.s32.totalorder %s11, 3
    %p189 = pnand %p187, %p188
    %p190 = pneg %p189
    // Predicated region
    $region37: #{swin_encoder_forward.15} parent=5 // pred_check
      _
    $region38: #{swin_encoder_forward.15} parent=5 // pred_check_branch
      %192 = sbr.rel (%p189) target = $region40
    $region39: #{swin_encoder_forward.15} parent=5 // pred_region
      %s193 = ssub.s32 %s11, 1
      %s194 = smul.u32 2, %s16
      %p195 = scmp.lt.s32.totalorder %s194, 3
      %s196 = scalar_select %p195, %s194, 3
      %s197 = smul.addr %s196, 8
      %s198 = scalar_lea.vmem %s0, %s197
      %p199 = pneg %p37
      %p200 = pneg %p34
      %p201 = pneg %p58
      %p202 = pneg %p55
      %p203 = pneg %p79
      %p204 = pneg %p76
      %p205 = pneg %p100
      %p206 = pneg %p97
      %p207 = pneg %p121
      %p208 = pneg %p118
      %p209 = pneg %p147
      %p210 = pneg %p144
      %s211 = smul.u32 2, %s16
      %p212 = scmp.lt.s32.totalorder %s211, 3
      %s213 = scalar_select %p212, %s211, 3
      %s214 = smul.addr %s213, 4
      %s215 = scalar_lea.vmem %s5, %s214
      %s216 = smul.u32 2, %s16
      %p217 = scmp.lt.s32.totalorder %s216, 3
      %s218 = scalar_select %p217, %s216, 3
      %s219 = smul.addr %s218, 8
      %s220 = scalar_lea.vmem %s0, %s219
      %s221 = smul.u32 2, %s16
      %s222 = smul.u32 2, %s16
      %p223 = scmp.lt.s32.totalorder %s222, 3
      %s224 = scalar_select %p223, %s222, 3
      %s225 = smul.addr %s224, 4
      %s226 = scalar_lea.vmem %s5, %s225
      %s227 = smul.u32 2, %s16
      %v229 = vld [vmem:[%s220] sm:$0xff]
      %v230 = vld [vmem:[%s220 + $0x8] sm:$0xff]
      %vm231 = vcmask 261120
      %v232 = vsel %vm231, %v229, 0.0
      %233 = vadd.xlane.f32.xlu0 %v232
      %v234 = vpop.xlane.xlu0 %233
      %v235 = vsel %vm231, %v230, 0.0
      %236 = vadd.xlane.f32.xlu0 %v235
      %v237 = vpop.xlane.xlu0 %236
      %v238 = vrcp.pop 32.0
      %v239 = vmul.f32 32.0, %v238
      %v240 = vsub.f32 1.0, %v239
      %v241 = vmul.f32 %v238, %v240
      %v242 = vadd.f32 %v238, %v241
      %vm243 = vweird.f32 %v238
      %v244 = vsel %vm243, %v238, %v242
      %v245 = vmul.f32 %v234, %v244
      %v246 = vmul.f32 %v237, %v244
      %v247 = vsub.f32 %v229, %v245
      %v248 = vsub.f32 %v230, %v246
      %v249 = vmul.f32 %v247, %v247
      %v250 = vmul.f32 %v248, %v248
      %v251 = vsel %vm231, %v249, 0.0
      %252 = vadd.xlane.f32.xlu0 %v251
      %v253 = vpop.xlane.xlu0 %252
      %v254 = vsel %vm231, %v250, 0.0
      %255 = vadd.xlane.f32.xlu0 %v254
      %v256 = vpop.xlane.xlu0 %255
      %v257 = vmul.f32 %v253, %v244
      %v258 = vmul.f32 %v256, %v244
      %v259 = vadd.f32 %v257, 1e-05
      %v260 = vadd.f32 %v258, 1e-05
      %v261 = vrsqrt.pop %v259
      %v262 = vmul.f32 %v261, %v259
      %v263 = vmul.f32 %v262, %v261
      %v264 = vmul.f32 0.5, %v263
      %v265 = vsub.f32 1.5, %v264
      %v266 = vmul.f32 %v261, %v265
      %vm267 = vweird.f32 %v259
      %vm268 = vweird.f32 %v261
      %vm269 = vmor %vm267, %vm268
      %v270 = vsel %vm269, %v261, %v266
      %v271 = vrsqrt.pop %v260
      %v272 = vmul.f32 %v271, %v260
      %v273 = vmul.f32 %v272, %v271
      %v274 = vmul.f32 0.5, %v273
      %v275 = vsub.f32 1.5, %v274
      %v276 = vmul.f32 %v271, %v275
      %vm277 = vweird.f32 %v260
      %vm278 = vweird.f32 %v271
      %vm279 = vmor %vm277, %vm278
      %v280 = vsel %vm279, %v271, %v276
      %v281 = vmul.f32 %v247, %v270
      %v282 = vmul.f32 %v248, %v280
      %v283 = vld [vmem:[%s1] sm:$0x1]
      %v285 = vperm.slane %v283, 0
      %v287 = vmul.f32 %v281, %v285
      %v288 = vmul.f32 %v282, %v285
      %v289 = vld [vmem:[%s2] sm:$0x1]
      %v291 = vperm.slane %v289, 0
      %v293 = vadd.f32 %v287, %v291
      %v294 = vadd.f32 %v288, %v291
      %v295 = vpack.c.bf16 %v294, %v293
      %v296 = vld [vmem:[%s3] sm:$0xf]
      %v297 = vld [vmem:[%s3 + $0x4] sm:$0xf]
      %v298 = vld [vmem:[%s3 + $0x8] sm:$0xf]
      %v299 = vld [vmem:[%s3 + $0xc] sm:$0xf]
      %v300 = vld [vmem:[%s4] sm:$0x1]
      %v302 = vperm.slane %v300, 0
      %v308 = vunpack.c.l.b16 %v296
      %v309 = vunpack.c.l.b16 %v297
      %v310 = vunpack.c.l.b16 %v298
      %v311 = vunpack.c.l.b16 %v299
      %v312 = vpack.c.b16 %v309, %v308
      %v313 = vpack.c.b16 %v311, %v310
      %v317 = vsel %vm231, %v295, 0
      %319 = vmatpush.bf16.msra.mxu0 0
      %320 = vmatpush.bf16.msra.mxu0 0
      %321 = vmatpush.bf16.msra.mxu0 0
      %322 = vmatpush.bf16.msra.mxu0 0
      %323 = vmatpush.bf16.msra.mxu0 0
      %324 = vmatpush.bf16.msra.mxu0 0
      %325 = vmatpush.bf16.msra.mxu0 %v313
      %326 = vmatpush.bf16.msra.mxu0 %v312
      %327 = vmatmul.bf16.gmra.mxu0 %v317
      %v328 = vpop.f32.mrf.mxu0
      %v329 = vadd.f32 %v302, %v328
      %v330 = vpop.f32.mrf.mxu0
      %v331 = vadd.f32 %v302, %v330
      %332 = vdwg.mxu0
      %v333 = vpack.c.bf16 %v329, %v329
      %v334 = vpack.c.bf16 %v331, %v331
      %vm335 = vcmask 781312
      %336 = vst.msk [vmem:[%s226] sm:$0xf] %vm335, %v333
      %337 = vst.msk [vmem:[%s226 + $0x4] sm:$0xf] %vm335, %v334
      %s338 = smul.u32 2, %s16
      %p339 = scmp.lt.s32.totalorder %s338, 3
      %s340 = scalar_select %p339, %s338, 3
      %s341 = smul.addr %s340, 4
      %s342 = scalar_lea.vmem %s5, %s341
      // Predicated region
      $region41: #{swin_encoder_forward.15} parent=39 // pred_check
        %p343 = pneg %p144
      $region42: #{swin_encoder_forward.15} parent=39 // pred_check_branch
        %345 = sbr.rel (%p343) target = $region44
      $region43: #{swin_encoder_forward.15} parent=39 // pred_region
        %s346 = smul.u32 2, %s16
      $region44: #{swin_encoder_forward.15} parent=39 // pred_fallthru
        _
    $region40: #{swin_encoder_forward.15} parent=5 // pred_fallthru
      _
    %p347 = scmp.le.s32.totalorder 2, %s11
    // Predicated region
    $region45: #{swin_encoder_forward.15} parent=5 // pred_check
      %p348 = pneg %p347
    $region46: #{swin_encoder_forward.15} parent=5 // pred_check_branch
      %350 = sbr.rel (%p348) target = $region48
    $region47: #{swin_encoder_forward.15} parent=5 // pred_region
      %s351 = ssub.s32 %s11, 2
      // Predicated region
      $region49: #{swin_encoder_forward.15} parent=47 // pred_check
        %p352 = pneg %p150
      $region50: #{swin_encoder_forward.15} parent=47 // pred_check_branch
        %354 = sbr.rel (%p352) target = $region52
      $region51: #{swin_encoder_forward.15} parent=47 // pred_region
        %s355 = smul.u32 2, %s17
        %p356 = scmp.lt.s32.totalorder %s355, 3
        %s357 = scalar_select %p356, %s355, 3
        %s358 = smul.addr %s357, 4
        %s359 = scalar_lea.vmem %s5, %s358
      $region52: #{swin_encoder_forward.15} parent=47 // pred_fallthru
        _
    $region48: #{swin_encoder_forward.15} parent=5 // pred_fallthru
      _
  $region6: #{swin_encoder_forward.15} parent=0 // loop_footer
    %s15 = sadd.s32 1, %s11
  $region7: #{swin_encoder_forward.15} parent=0 // loop_footer_branch
    %10 = sbr.rel target = $region3
  $region8: #{swin_encoder_forward.15} parent=0 // loop_exit
    _

// kernel: swin_encoder_forward.14
$region0: #{swin_encoder_forward.14}
  #allocation0 [shape = 'u32[]', space=smem, size = 0x4, offset = 0x4, fixed_abs, tag = 'smem constant byte address 0x4 - core index']
  #allocation1 [shape = 'u32[72,128]{1,0:T(1,128)}', space=vmem, size = 0x9000, scoped, tag = 'internal scratch']
  %s0 = inlined_call_operand.vmem [shape: f32[32,48], index: 0, kind: input, shape index: {}]
  %s1 = inlined_call_operand.vmem [shape: bf16[48,32], index: 1, kind: input, shape index: {}]
  %s2 = inlined_call_operand.vmem [shape: f32[1,32], index: 2, kind: input, shape index: {}, may-alias: {2,4}]
  %s3 = inlined_call_operand.vmem [shape: f32[1,32], index: 3, kind: input, shape index: {}]
  %s4 = inlined_call_operand.vmem [shape: f32[1,32], index: 4, kind: input, shape index: {}, may-alias: {2,4}]
  %s5 = inlined_call_operand.vmem [shape: f32[32,32], index: 5, kind: output, shape index: {}]
  %s6 = sld [smem:[#allocation0]]
  $region53: #{swin_encoder_forward.14} parent=0
    _
  %s8 = ssub.s32 1, %s6
  %s9 = scalar_select 0, %s8, %s6
  loop: start=0, step=1, limit=4
  $region2: #{swin_encoder_forward.14} parent=0 // loop_pre_header
    _
  $region3: #{swin_encoder_forward.14} parent=0 // loop_header
    %s11 = sphi 0, %s15
    %p12 = scmp.ge.s32.totalorder %s11, 4
    %s21 = sphi 0, %s23
    %s24 = sphi 0, %s21
    %s25 = sphi 0, %s24
    %s41 = sphi 0, %s25
    %s45 = sphi 0, %s45
    %s47 = sphi 0, %s45
    %s48 = sphi 0, %s47
    %s62 = sphi 0, %s48
    %s66 = sphi 0, %s66
    %s68 = sphi 0, %s66
    %s69 = sphi 0, %s68
    %s83 = sphi 0, %s69
    %s87 = sphi 0, %s87
    %s89 = sphi 0, %s87
    %s90 = sphi 0, %s89
    %s104 = sphi 0, %s90
    %s108 = sphi 0, %s108
    %s110 = sphi 0, %s108
    %s111 = sphi 0, %s110
    %s125 = sphi 0, %s111
    %s131 = sphi 0, %s133
    %s134 = sphi 0, %s131
    %s135 = sphi 0, %s134
    %s151 = sphi 0, %s135
  $region4: #{swin_encoder_forward.14} parent=0 // loop_header_branch
    %14 = sbr.rel (%p12) target = $region8
  $region5: #{swin_encoder_forward.14} parent=0 // loop_body
    %s16 = ssub.s32 %s11, 1
    %s17 = ssub.s32 %s11, 2
    %s18 = sadd.s32 %s11, 1
    %s19 = ssub.s32 %s11, %s18
    %p20 = scmp.eq.s32.totalorder %s19, 0
    %s22 = sadd.s32 %s21, 1
    %s23 = scalar_select %p20, %s21, %s22
    %p26 = pneg %p20
    %p27 = scmp.eq.s32.totalorder %s11, 1
    %p28 = por %p26, %p27
    %p29 = scmp.ne.s32.totalorder %s21, %s24
    %p30 = scmp.eq.s32.totalorder %s11, 0
    %p31 = por %p29, %p30
    %p32 = scmp.ne.s32.totalorder %s21, %s24
    %p33 = scmp.eq.s32.totalorder %s16, 1
    %p34 = por %p32, %p33
    %p35 = scmp.ne.s32.totalorder %s24, %s25
    %p36 = scmp.eq.s32.totalorder %s16, 0
    %p37 = por %p35, %p36
    %p38 = scmp.ne.s32.totalorder %s24, %s25
    %p39 = scmp.eq.s32.totalorder %s17, 1
    %p40 = por %p38, %p39
    %p42 = scmp.ne.s32.totalorder %s25, %s41
    %p43 = scmp.eq.s32.totalorder %s17, 0
    %p44 = por %p42, %p43
    %s46 = sadd.s32 %s45, 1
    %p49 = scmp.eq.s32.totalorder %s11, 1
    %p50 = scmp.ne.s32.totalorder %s45, %s47
    %p51 = scmp.eq.s32.totalorder %s11, 0
    %p52 = por %p50, %p51
    %p53 = scmp.ne.s32.totalorder %s45, %s47
    %p54 = scmp.eq.s32.totalorder %s16, 1
    %p55 = por %p53, %p54
    %p56 = scmp.ne.s32.totalorder %s47, %s48
    %p57 = scmp.eq.s32.totalorder %s16, 0
    %p58 = por %p56, %p57
    %p59 = scmp.ne.s32.totalorder %s47, %s48
    %p60 = scmp.eq.s32.totalorder %s17, 1
    %p61 = por %p59, %p60
    %p63 = scmp.ne.s32.totalorder %s48, %s62
    %p64 = scmp.eq.s32.totalorder %s17, 0
    %p65 = por %p63, %p64
    %s67 = sadd.s32 %s66, 1
    %p70 = scmp.eq.s32.totalorder %s11, 1
    %p71 = scmp.ne.s32.totalorder %s66, %s68
    %p72 = scmp.eq.s32.totalorder %s11, 0
    %p73 = por %p71, %p72
    %p74 = scmp.ne.s32.totalorder %s66, %s68
    %p75 = scmp.eq.s32.totalorder %s16, 1
    %p76 = por %p74, %p75
    %p77 = scmp.ne.s32.totalorder %s68, %s69
    %p78 = scmp.eq.s32.totalorder %s16, 0
    %p79 = por %p77, %p78
    %p80 = scmp.ne.s32.totalorder %s68, %s69
    %p81 = scmp.eq.s32.totalorder %s17, 1
    %p82 = por %p80, %p81
    %p84 = scmp.ne.s32.totalorder %s69, %s83
    %p85 = scmp.eq.s32.totalorder %s17, 0
    %p86 = por %p84, %p85
    %s88 = sadd.s32 %s87, 1
    %p91 = scmp.eq.s32.totalorder %s11, 1
    %p92 = scmp.ne.s32.totalorder %s87, %s89
    %p93 = scmp.eq.s32.totalorder %s11, 0
    %p94 = por %p92, %p93
    %p95 = scmp.ne.s32.totalorder %s87, %s89
    %p96 = scmp.eq.s32.totalorder %s16, 1
    %p97 = por %p95, %p96
    %p98 = scmp.ne.s32.totalorder %s89, %s90
    %p99 = scmp.eq.s32.totalorder %s16, 0
    %p100 = por %p98, %p99
    %p101 = scmp.ne.s32.totalorder %s89, %s90
    %p102 = scmp.eq.s32.totalorder %s17, 1
    %p103 = por %p101, %p102
    %p105 = scmp.ne.s32.totalorder %s90, %s104
    %p106 = scmp.eq.s32.totalorder %s17, 0
    %p107 = por %p105, %p106
    %s109 = sadd.s32 %s108, 1
    %p112 = scmp.eq.s32.totalorder %s11, 1
    %p113 = scmp.ne.s32.totalorder %s108, %s110
    %p114 = scmp.eq.s32.totalorder %s11, 0
    %p115 = por %p113, %p114
    %p116 = scmp.ne.s32.totalorder %s108, %s110
    %p117 = scmp.eq.s32.totalorder %s16, 1
    %p118 = por %p116, %p117
    %p119 = scmp.ne.s32.totalorder %s110, %s111
    %p120 = scmp.eq.s32.totalorder %s16, 0
    %p121 = por %p119, %p120
    %p122 = scmp.ne.s32.totalorder %s110, %s111
    %p123 = scmp.eq.s32.totalorder %s17, 1
    %p124 = por %p122, %p123
    %p126 = scmp.ne.s32.totalorder %s111, %s125
    %p127 = scmp.eq.s32.totalorder %s17, 0
    %p128 = por %p126, %p127
    %s129 = ssub.s32 %s11, %s18
    %p130 = scmp.eq.s32.totalorder %s129, 0
    %s132 = sadd.s32 %s131, 1
    %s133 = scalar_select %p130, %s131, %s132
    %p136 = pneg %p130
    %p137 = scmp.eq.s32.totalorder %s11, 1
    %p138 = por %p136, %p137
    %p139 = scmp.ne.s32.totalorder %s131, %s134
    %p140 = scmp.eq.s32.totalorder %s11, 0
    %p141 = por %p139, %p140
    %p142 = scmp.ne.s32.totalorder %s131, %s134
    %p143 = scmp.eq.s32.totalorder %s16, 1
    %p144 = por %p142, %p143
    %p145 = scmp.ne.s32.totalorder %s134, %s135
    %p146 = scmp.eq.s32.totalorder %s16, 0
    %p147 = por %p145, %p146
    %p148 = scmp.ne.s32.totalorder %s134, %s135
    %p149 = scmp.eq.s32.totalorder %s17, 1
    %p150 = por %p148, %p149
    %p152 = scmp.ne.s32.totalorder %s135, %s151
    %p153 = scmp.eq.s32.totalorder %s17, 0
    %p154 = por %p152, %p153
    %p155 = scmp.le.s32.totalorder 1, %s11
    %p156 = scmp.lt.s32.totalorder %s11, 3
    %p157 = pnand %p155, %p156
    %p158 = pneg %p157
    // Predicated region
    $region9: #{swin_encoder_forward.14} parent=5 // pred_check
      _
    $region10: #{swin_encoder_forward.14} parent=5 // pred_check_branch
      %160 = sbr.rel (%p157) target = $region12
    $region11: #{swin_encoder_forward.14} parent=5 // pred_region
      %s161 = ssub.s32 %s11, 1
      // Predicated region
      $region13: #{swin_encoder_forward.14} parent=11 // pred_check
        %p162 = pneg %p58
      $region14: #{swin_encoder_forward.14} parent=11 // pred_check_branch
        %164 = sbr.rel (%p162) target = $region16
      $region15: #{swin_encoder_forward.14} parent=11 // pred_region
        _
      $region16: #{swin_encoder_forward.14} parent=11 // pred_fallthru
        _
      // Predicated region
      $region17: #{swin_encoder_forward.14} parent=11 // pred_check
        %p165 = pneg %p79
      $region18: #{swin_encoder_forward.14} parent=11 // pred_check_branch
        %167 = sbr.rel (%p165) target = $region20
      $region19: #{swin_encoder_forward.14} parent=11 // pred_region
        _
      $region20: #{swin_encoder_forward.14} parent=11 // pred_fallthru
        _
      // Predicated region
      $region21: #{swin_encoder_forward.14} parent=11 // pred_check
        %p168 = pneg %p100
      $region22: #{swin_encoder_forward.14} parent=11 // pred_check_branch
        %170 = sbr.rel (%p168) target = $region24
      $region23: #{swin_encoder_forward.14} parent=11 // pred_region
        _
      $region24: #{swin_encoder_forward.14} parent=11 // pred_fallthru
        _
      // Predicated region
      $region25: #{swin_encoder_forward.14} parent=11 // pred_check
        %p171 = pneg %p121
      $region26: #{swin_encoder_forward.14} parent=11 // pred_check_branch
        %173 = sbr.rel (%p171) target = $region28
      $region27: #{swin_encoder_forward.14} parent=11 // pred_region
        _
      $region28: #{swin_encoder_forward.14} parent=11 // pred_fallthru
        _
    $region12: #{swin_encoder_forward.14} parent=5 // pred_fallthru
      _
    %p174 = scmp.lt.s32.totalorder %s11, 2
    // Predicated region
    $region29: #{swin_encoder_forward.14} parent=5 // pred_check
      %p175 = pneg %p174
    $region30: #{swin_encoder_forward.14} parent=5 // pred_check_branch
      %177 = sbr.rel (%p175) target = $region32
    $region31: #{swin_encoder_forward.14} parent=5 // pred_region
      // Predicated region
      $region33: #{swin_encoder_forward.14} parent=31 // pred_check
        %p178 = pneg %p31
      $region34: #{swin_encoder_forward.14} parent=31 // pred_check_branch
        %180 = sbr.rel (%p178) target = $region36
      $region35: #{swin_encoder_forward.14} parent=31 // pred_region
        %s181 = smul.u32 2, %s11
        %p182 = scmp.lt.s32.totalorder %s181, 3
        %s183 = scalar_select %p182, %s181, 3
        %s184 = smul.addr %s183, 8
        %s185 = scalar_lea.vmem %s0, %s184
        %s186 = smul.u32 2, %s11
      $region36: #{swin_encoder_forward.14} parent=31 // pred_fallthru
        _
    $region32: #{swin_encoder_forward.14} parent=5 // pred_fallthru
      _
    %p187 = scmp.le.s32.totalorder 1, %s11
    %p188 = scmp.lt.s32.totalorder %s11, 3
    %p189 = pnand %p187, %p188
    %p190 = pneg %p189
    // Predicated region
    $region37: #{swin_encoder_forward.14} parent=5 // pred_check
      _
    $region38: #{swin_encoder_forward.14} parent=5 // pred_check_branch
      %192 = sbr.rel (%p189) target = $region40
    $region39: #{swin_encoder_forward.14} parent=5 // pred_region
      %s193 = ssub.s32 %s11, 1
      %s194 = smul.u32 2, %s16
      %p195 = scmp.lt.s32.totalorder %s194, 3
      %s196 = scalar_select %p195, %s194, 3
      %s197 = smul.addr %s196, 8
      %s198 = scalar_lea.vmem %s0, %s197
      %p199 = pneg %p37
      %p200 = pneg %p34
      %p201 = pneg %p58
      %p202 = pneg %p55
      %p203 = pneg %p79
      %p204 = pneg %p76
      %p205 = pneg %p100
      %p206 = pneg %p97
      %p207 = pneg %p121
      %p208 = pneg %p118
      %p209 = pneg %p147
      %p210 = pneg %p144
      %s211 = smul.u32 2, %s16
      %p212 = scmp.lt.s32.totalorder %s211, 3
      %s213 = scalar_select %p212, %s211, 3
      %s214 = smul.addr %s213, 8
      %s215 = scalar_lea.vmem %s5, %s214
      %s216 = smul.u32 2, %s16
      %p217 = scmp.lt.s32.totalorder %s216, 3
      %s218 = scalar_select %p217, %s216, 3
      %s219 = smul.addr %s218, 8
      %s220 = scalar_lea.vmem %s0, %s219
      %s221 = smul.u32 2, %s16
      %s222 = smul.u32 2, %s16
      %p223 = scmp.lt.s32.totalorder %s222, 3
      %s224 = scalar_select %p223, %s222, 3
      %s225 = smul.addr %s224, 8
      %s226 = scalar_lea.vmem %s5, %s225
      %s227 = smul.u32 2, %s16
      %v229 = vld [vmem:[%s220] sm:$0xff]
      %v230 = vld [vmem:[%s220 + $0x8] sm:$0xff]
      %v231 = vpack.c.bf16 %v230, %v229
      %v232 = vld [vmem:[%s1] sm:$0xf]
      %v233 = vld [vmem:[%s1 + $0x4] sm:$0xf]
      %v234 = vld [vmem:[%s1 + $0x8] sm:$0xf]
      %v235 = vld [vmem:[%s1 + $0xc] sm:$0xf]
      %v236 = vld [vmem:[%s1 + $0x10] sm:$0xf]
      %v237 = vld [vmem:[%s1 + $0x14] sm:$0xf]
      %v238 = vld [vmem:[%s2] sm:$0x1]
      %v240 = vperm.slane %v238, 0
      %v248 = vunpack.c.l.b16 %v232
      %v249 = vunpack.c.l.b16 %v233
      %v250 = vunpack.c.l.b16 %v234
      %v251 = vunpack.c.l.b16 %v235
      %v252 = vunpack.c.l.b16 %v236
      %v253 = vunpack.c.l.b16 %v237
      %v254 = vpack.c.b16 %v249, %v248
      %v255 = vpack.c.b16 %v251, %v250
      %v256 = vpack.c.b16 %v253, %v252
      %vm260 = vcmask 392192
      %v262 = vsel %vm260, %v231, 0
      %264 = vmatpush.bf16.msra.mxu0 0
      %265 = vmatpush.bf16.msra.mxu0 0
      %266 = vmatpush.bf16.msra.mxu0 0
      %267 = vmatpush.bf16.msra.mxu0 0
      %268 = vmatpush.bf16.msra.mxu0 0
      %269 = vmatpush.bf16.msra.mxu0 %v256
      %270 = vmatpush.bf16.msra.mxu0 %v255
      %271 = vmatpush.bf16.msra.mxu0 %v254
      %272 = vmatmul.bf16.gmra.mxu0 %v262
      %v273 = vpop.f32.mrf.mxu0
      %v274 = vadd.f32 %v240, %v273
      %v275 = vpop.f32.mrf.mxu0
      %v276 = vadd.f32 %v240, %v275
      %277 = vdwg.mxu0
      %vm278 = vcmask 261120
      %v279 = vsel %vm278, %v274, 0.0
      %280 = vadd.xlane.f32.xlu0 %v279
      %v281 = vpop.xlane.xlu0 %280
      %v282 = vsel %vm278, %v276, 0.0
      %283 = vadd.xlane.f32.xlu0 %v282
      %v284 = vpop.xlane.xlu0 %283
      %v285 = vrcp.pop 32.0
      %v286 = vmul.f32 32.0, %v285
      %v287 = vsub.f32 1.0, %v286
      %v288 = vmul.f32 %v285, %v287
      %v289 = vadd.f32 %v285, %v288
      %vm290 = vweird.f32 %v285
      %v291 = vsel %vm290, %v285, %v289
      %v292 = vmul.f32 %v281, %v291
      %v293 = vmul.f32 %v284, %v291
      %v294 = vsub.f32 %v274, %v292
      %v295 = vsub.f32 %v276, %v293
      %v296 = vmul.f32 %v294, %v294
      %v297 = vmul.f32 %v295, %v295
      %v298 = vsel %vm278, %v296, 0.0
      %299 = vadd.xlane.f32.xlu0 %v298
      %v300 = vpop.xlane.xlu0 %299
      %v301 = vsel %vm278, %v297, 0.0
      %302 = vadd.xlane.f32.xlu0 %v301
      %v303 = vpop.xlane.xlu0 %302
      %v304 = vmul.f32 %v300, %v291
      %v305 = vmul.f32 %v303, %v291
      %v306 = vadd.f32 %v304, 1e-05
      %v307 = vadd.f32 %v305, 1e-05
      %v308 = vrsqrt.pop %v306
      %v309 = vmul.f32 %v308, %v306
      %v310 = vmul.f32 %v309, %v308
      %v311 = vmul.f32 0.5, %v310
      %v312 = vsub.f32 1.5, %v311
      %v313 = vmul.f32 %v308, %v312
      %vm314 = vweird.f32 %v306
      %vm315 = vweird.f32 %v308
      %vm316 = vmor %vm314, %vm315
      %v317 = vsel %vm316, %v308, %v313
      %v318 = vrsqrt.pop %v307
      %v319 = vmul.f32 %v318, %v307
      %v320 = vmul.f32 %v319, %v318
      %v321 = vmul.f32 0.5, %v320
      %v322 = vsub.f32 1.5, %v321
      %v323 = vmul.f32 %v318, %v322
      %vm324 = vweird.f32 %v307
      %vm325 = vweird.f32 %v318
      %vm326 = vmor %vm324, %vm325
      %v327 = vsel %vm326, %v318, %v323
      %v328 = vmul.f32 %v294, %v317
      %v329 = vmul.f32 %v295, %v327
      %v330 = vld [vmem:[%s3] sm:$0x1]
      %v332 = vperm.slane %v330, 0
      %v334 = vmul.f32 %v328, %v332
      %v335 = vmul.f32 %v329, %v332
      %v336 = vld [vmem:[%s4] sm:$0x1]
      %v338 = vperm.slane %v336, 0
      %v340 = vadd.f32 %v334, %v338
      %v341 = vadd.f32 %v335, %v338
      %342 = vst.msk [vmem:[%s226] sm:$0xff] %vm278, %v340
      %343 = vst.msk [vmem:[%s226 + $0x8] sm:$0xff] %vm278, %v341
      %s344 = smul.u32 2, %s16
      %p345 = scmp.lt.s32.totalorder %s344, 3
      %s346 = scalar_select %p345, %s344, 3
      %s347 = smul.addr %s346, 8
      %s348 = scalar_lea.vmem %s5, %s347
      // Predicated region
      $region41: #{swin_encoder_forward.14} parent=39 // pred_check
        %p349 = pneg %p144
      $region42: #{swin_encoder_forward.14} parent=39 // pred_check_branch
        %351 = sbr.rel (%p349) target = $region44
      $region43: #{swin_encoder_forward.14} parent=39 // pred_region
        %s352 = smul.u32 2, %s16
      $region44: #{swin_encoder_forward.14} parent=39 // pred_fallthru
        _
    $region40: #{swin_encoder_forward.14} parent=5 // pred_fallthru
      _
    %p353 = scmp.le.s32.totalorder 2, %s11
    // Predicated region
    $region45: #{swin_encoder_forward.14} parent=5 // pred_check
      %p354 = pneg %p353
    $region46: #{swin_encoder_forward.14} parent=5 // pred_check_branch
      %356 = sbr.rel (%p354) target = $region48
    $region47: #{swin_encoder_forward.14} parent=5 // pred_region
      %s357 = ssub.s32 %s11, 2
      // Predicated region
      $region49: #{swin_encoder_forward.14} parent=47 // pred_check
        %p358 = pneg %p150
      $region50: #{swin_encoder_forward.14} parent=47 // pred_check_branch
        %360 = sbr.rel (%p358) target = $region52
      $region51: #{swin_encoder_forward.14} parent=47 // pred_region
        %s361 = smul.u32 2, %s17
        %p362 = scmp.lt.s32.totalorder %s361, 3
        %s363 = scalar_select %p362, %s361, 3
        %s364 = smul.addr %s363, 8
        %s365 = scalar_lea.vmem %s5, %s364
      $region52: #{swin_encoder_forward.14} parent=47 // pred_fallthru
        _
    $region48: #{swin_encoder_forward.14} parent=5 // pred_fallthru
      _
  $region6: #{swin_encoder_forward.14} parent=0 // loop_footer
    %s15 = sadd.s32 1, %s11
  $region7: #{swin_encoder_forward.14} parent=0 // loop_footer_branch
    %10 = sbr.rel target = $region3
  $region8: #{swin_encoder_forward.14} parent=0 // loop_exit
    _

// kernel: swin_encoder_forward.16
$region0: #{swin_encoder_forward.16}
  #allocation0 [shape = 'u32[]', space=smem, size = 0x4, offset = 0x4, fixed_abs, tag = 'smem constant byte address 0x4 - core index']
  #allocation1 [shape = 'u32[72,128]{1,0:T(1,128)}', space=vmem, size = 0x9000, scoped, tag = 'internal scratch']
  %s0 = inlined_call_operand.vmem [shape: bf16[2,4,4,96], index: 0, kind: input, shape index: {}]
  %s1 = inlined_call_operand.vmem [shape: bf16[2,4,4,4], index: 1, kind: input, shape index: {}]
  %s2 = inlined_call_operand.vmem [shape: bf16[2,4,4,32], index: 2, kind: output, shape index: {}]
  %s3 = sld [smem:[#allocation0]]
  $region41: #{swin_encoder_forward.16} parent=0
    _
  %s5 = ssub.s32 1, %s3
  %s6 = scalar_select 0, %s5, %s3
  loop: start=0, step=1, limit=4
  $region2: #{swin_encoder_forward.16} parent=0 // loop_pre_header
    _
  $region3: #{swin_encoder_forward.16} parent=0 // loop_header
    %s8 = sphi 0, %s12
    %p9 = scmp.ge.s32.totalorder %s8, 4
    %s18 = sphi 0, %s20
    %s21 = sphi 0, %s18
    %s22 = sphi 0, %s21
    %s38 = sphi 0, %s22
    %s42 = sphi 0, %s42
    %s44 = sphi 0, %s42
    %s45 = sphi 0, %s44
    %s59 = sphi 0, %s45
    %s65 = sphi 0, %s67
    %s68 = sphi 0, %s65
    %s69 = sphi 0, %s68
    %s85 = sphi 0, %s69
  $region4: #{swin_encoder_forward.16} parent=0 // loop_header_branch
    %11 = sbr.rel (%p9) target = $region8
  $region5: #{swin_encoder_forward.16} parent=0 // loop_body
    %s13 = ssub.s32 %s8, 1
    %s14 = ssub.s32 %s8, 2
    %s15 = sadd.s32 %s8, 1
    %s16 = ssub.s32 %s8, %s15
    %p17 = scmp.eq.s32.totalorder %s16, 0
    %s19 = sadd.s32 %s18, 1
    %s20 = scalar_select %p17, %s18, %s19
    %p23 = pneg %p17
    %p24 = scmp.eq.s32.totalorder %s8, 1
    %p25 = por %p23, %p24
    %p26 = scmp.ne.s32.totalorder %s18, %s21
    %p27 = scmp.eq.s32.totalorder %s8, 0
    %p28 = por %p26, %p27
    %p29 = scmp.ne.s32.totalorder %s18, %s21
    %p30 = scmp.eq.s32.totalorder %s13, 1
    %p31 = por %p29, %p30
    %p32 = scmp.ne.s32.totalorder %s21, %s22
    %p33 = scmp.eq.s32.totalorder %s13, 0
    %p34 = por %p32, %p33
    %p35 = scmp.ne.s32.totalorder %s21, %s22
    %p36 = scmp.eq.s32.totalorder %s14, 1
    %p37 = por %p35, %p36
    %p39 = scmp.ne.s32.totalorder %s22, %s38
    %p40 = scmp.eq.s32.totalorder %s14, 0
    %p41 = por %p39, %p40
    %s43 = sadd.s32 %s42, 1
    %p46 = scmp.eq.s32.totalorder %s8, 1
    %p47 = scmp.ne.s32.totalorder %s42, %s44
    %p48 = scmp.eq.s32.totalorder %s8, 0
    %p49 = por %p47, %p48
    %p50 = scmp.ne.s32.totalorder %s42, %s44
    %p51 = scmp.eq.s32.totalorder %s13, 1
    %p52 = por %p50, %p51
    %p53 = scmp.ne.s32.totalorder %s44, %s45
    %p54 = scmp.eq.s32.totalorder %s13, 0
    %p55 = por %p53, %p54
    %p56 = scmp.ne.s32.totalorder %s44, %s45
    %p57 = scmp.eq.s32.totalorder %s14, 1
    %p58 = por %p56, %p57
    %p60 = scmp.ne.s32.totalorder %s45, %s59
    %p61 = scmp.eq.s32.totalorder %s14, 0
    %p62 = por %p60, %p61
    %s63 = ssub.s32 %s8, %s15
    %p64 = scmp.eq.s32.totalorder %s63, 0
    %s66 = sadd.s32 %s65, 1
    %s67 = scalar_select %p64, %s65, %s66
    %p70 = pneg %p64
    %p71 = scmp.eq.s32.totalorder %s8, 1
    %p72 = por %p70, %p71
    %p73 = scmp.ne.s32.totalorder %s65, %s68
    %p74 = scmp.eq.s32.totalorder %s8, 0
    %p75 = por %p73, %p74
    %p76 = scmp.ne.s32.totalorder %s65, %s68
    %p77 = scmp.eq.s32.totalorder %s13, 1
    %p78 = por %p76, %p77
    %p79 = scmp.ne.s32.totalorder %s68, %s69
    %p80 = scmp.eq.s32.totalorder %s13, 0
    %p81 = por %p79, %p80
    %p82 = scmp.ne.s32.totalorder %s68, %s69
    %p83 = scmp.eq.s32.totalorder %s14, 1
    %p84 = por %p82, %p83
    %p86 = scmp.ne.s32.totalorder %s69, %s85
    %p87 = scmp.eq.s32.totalorder %s14, 0
    %p88 = por %p86, %p87
    %p89 = scmp.le.s32.totalorder 1, %s8
    %p90 = scmp.lt.s32.totalorder %s8, 3
    %p91 = pnand %p89, %p90
    %p92 = pneg %p91
    // Predicated region
    $region9: #{swin_encoder_forward.16} parent=5 // pred_check
      _
    $region10: #{swin_encoder_forward.16} parent=5 // pred_check_branch
      %94 = sbr.rel (%p91) target = $region12
    $region11: #{swin_encoder_forward.16} parent=5 // pred_region
      %s95 = ssub.s32 %s8, 1
      // Predicated region
      $region13: #{swin_encoder_forward.16} parent=11 // pred_check
        %p96 = pneg %p55
      $region14: #{swin_encoder_forward.16} parent=11 // pred_check_branch
        %98 = sbr.rel (%p96) target = $region16
      $region15: #{swin_encoder_forward.16} parent=11 // pred_region
        _
      $region16: #{swin_encoder_forward.16} parent=11 // pred_fallthru
        _
    $region12: #{swin_encoder_forward.16} parent=5 // pred_fallthru
      _
    %p99 = scmp.lt.s32.totalorder %s8, 2
    // Predicated region
    $region17: #{swin_encoder_forward.16} parent=5 // pred_check
      %p100 = pneg %p99
    $region18: #{swin_encoder_forward.16} parent=5 // pred_check_branch
      %102 = sbr.rel (%p100) target = $region20
    $region19: #{swin_encoder_forward.16} parent=5 // pred_region
      // Predicated region
      $region21: #{swin_encoder_forward.16} parent=19 // pred_check
        %p103 = pneg %p28
      $region22: #{swin_encoder_forward.16} parent=19 // pred_check_branch
        %105 = sbr.rel (%p103) target = $region24
      $region23: #{swin_encoder_forward.16} parent=19 // pred_region
        %p106 = scmp.lt.s32.totalorder %s8, 1
        %s107 = scalar_select %p106, %s8, 1
        %s108 = smul.addr %s107, 4
        %s109 = smul.addr %s108, 2
        %s110 = scalar_lea.vmem %s0, %s109
      $region24: #{swin_encoder_forward.16} parent=19 // pred_fallthru
        _
    $region20: #{swin_encoder_forward.16} parent=5 // pred_fallthru
      _
    %p111 = scmp.le.s32.totalorder 1, %s8
    %p112 = scmp.lt.s32.totalorder %s8, 3
    %p113 = pnand %p111, %p112
    %p114 = pneg %p113
    // Predicated region
    $region25: #{swin_encoder_forward.16} parent=5 // pred_check
      _
    $region26: #{swin_encoder_forward.16} parent=5 // pred_check_branch
      %116 = sbr.rel (%p113) target = $region28
    $region27: #{swin_encoder_forward.16} parent=5 // pred_region
      %s117 = ssub.s32 %s8, 1
      %p118 = scmp.lt.s32.totalorder %s13, 1
      %s119 = scalar_select %p118, %s13, 1
      %s120 = smul.addr %s119, 4
      %s121 = smul.addr %s120, 2
      %s122 = scalar_lea.vmem %s0, %s121
      %p123 = pneg %p34
      %p124 = pneg %p31
      %p125 = pneg %p55
      %p126 = pneg %p52
      %p127 = pneg %p81
      %p128 = pneg %p78
      %p129 = scmp.lt.s32.totalorder %s13, 1
      %s130 = scalar_select %p129, %s13, 1
      %s131 = smul.addr %s130, 4
      %s132 = smul.addr %s131, 2
      %s133 = scalar_lea.vmem %s2, %s132
      %p134 = scmp.lt.s32.totalorder %s13, 1
      %s135 = scalar_select %p134, %s13, 1
      %s136 = smul.addr %s135, 4
      %s137 = smul.addr %s136, 2
      %s138 = scalar_lea.vmem %s0, %s137
      %p139 = scmp.lt.s32.totalorder %s13, 1
      %s140 = scalar_select %p139, %s13, 1
      %s141 = smul.addr %s140, 4
      %s142 = smul.addr %s141, 2
      %s143 = scalar_lea.vmem %s2, %s142
      %v145 = vld [vmem:[%s138] sm:$0x3]
      %v146 = vld [vmem:[%s138 + $0x2] sm:$0x3]
      %v147 = vld [vmem:[%s138 + $0x4] sm:$0x3]
      %v148 = vld [vmem:[%s138 + $0x6] sm:$0x3]
      %v149 = vld [vmem:[%s1] sm:$0x3]
      %v150 = vld [vmem:[%s1 + $0x2] sm:$0x3]
      %v151 = vld [vmem:[%s1 + $0x4] sm:$0x3]
      %v152 = vld [vmem:[%s1 + $0x6] sm:$0x3]
      %v153 = vunpack.c.l.bf16 %v149
      %v154 = vunpack.c.l.bf16 %v150
      %v155 = vunpack.c.l.bf16 %v151
      %v156 = vunpack.c.l.bf16 %v152
      %158 = vst [vmem:[#allocation1] ss:$4 sm:$0xff] %v145
      %v159 = vld.sshfl [vmem:[#allocation1] sm:$0xff pattern:$0x73625140]
      %161 = vrot.lane.b32.xlu0 %v159, 96
      %v162 = vpop.permute.xlu0 %161
      %vm163 = vcmask 130048
      %v164 = vsel %vm163, %v145, 0
      %v167 = vsel %vm163, %v162, 0
      %169 = vmatpush.bf16.xpose.msra.mxu0 0
      %170 = vmatpush.bf16.xpose.msra.mxu0 0
      %171 = vmatpush.bf16.xpose.msra.mxu0 0
      %172 = vmatpush.bf16.xpose.msra.mxu0 0
      %173 = vmatpush.bf16.xpose.msra.mxu0 0
      %174 = vmatpush.bf16.xpose.msra.mxu0 0
      %175 = vmatpush.bf16.xpose.msra.mxu0 0
      %176 = vmatpush.bf16.xpose.msra.mxu0 %v167
      %177 = vmatmul.bf16.gmra.mxu0 %v164
      %v178 = vpop.f32.mrf.mxu0
      %v179 = vadd.f32 %v153, %v178
      %v180 = vpop.f32.mrf.mxu0
      %181 = vdwg.mxu0
      %183 = vst [vmem:[#allocation1] ss:$4 sm:$0xff] %v146
      %v184 = vld.sshfl [vmem:[#allocation1] sm:$0xff pattern:$0x73625140]
      %186 = vrot.lane.b32.xlu0 %v184, 96
      %v187 = vpop.permute.xlu0 %186
      %v188 = vsel %vm163, %v146, 0
      %v191 = vsel %vm163, %v187, 0
      %193 = vmatpush.bf16.xpose.msra.mxu0 0
      %194 = vmatpush.bf16.xpose.msra.mxu0 0
      %195 = vmatpush.bf16.xpose.msra.mxu0 0
      %196 = vmatpush.bf16.xpose.msra.mxu0 0
      %197 = vmatpush.bf16.xpose.msra.mxu0 0
      %198 = vmatpush.bf16.xpose.msra.mxu0 0
      %199 = vmatpush.bf16.xpose.msra.mxu0 0
      %200 = vmatpush.bf16.xpose.msra.mxu0 %v191
      %201 = vmatmul.bf16.gmra.mxu0 %v188
      %v202 = vpop.f32.mrf.mxu0
      %v203 = vadd.f32 %v154, %v202
      %v204 = vpop.f32.mrf.mxu0
      %205 = vdwg.mxu0
      %207 = vst [vmem:[#allocation1] ss:$4 sm:$0xff] %v147
      %v208 = vld.sshfl [vmem:[#allocation1] sm:$0xff pattern:$0x73625140]
      %210 = vrot.lane.b32.xlu0 %v208, 96
      %v211 = vpop.permute.xlu0 %210
      %v212 = vsel %vm163, %v147, 0
      %v215 = vsel %vm163, %v211, 0
      %217 = vmatpush.bf16.xpose.msra.mxu0 0
      %218 = vmatpush.bf16.xpose.msra.mxu0 0
      %219 = vmatpush.bf16.xpose.msra.mxu0 0
      %220 = vmatpush.bf16.xpose.msra.mxu0 0
      %221 = vmatpush.bf16.xpose.msra.mxu0 0
      %222 = vmatpush.bf16.xpose.msra.mxu0 0
      %223 = vmatpush.bf16.xpose.msra.mxu0 0
      %224 = vmatpush.bf16.xpose.msra.mxu0 %v215
      %225 = vmatmul.bf16.gmra.mxu0 %v212
      %v226 = vpop.f32.mrf.mxu0
      %v227 = vadd.f32 %v155, %v226
      %v228 = vpop.f32.mrf.mxu0
      %229 = vdwg.mxu0
      %231 = vst [vmem:[#allocation1] ss:$4 sm:$0xff] %v148
      %v232 = vld.sshfl [vmem:[#allocation1] sm:$0xff pattern:$0x73625140]
      %234 = vrot.lane.b32.xlu0 %v232, 96
      %v235 = vpop.permute.xlu0 %234
      %v236 = vsel %vm163, %v148, 0
      %v239 = vsel %vm163, %v235, 0
      %241 = vmatpush.bf16.xpose.msra.mxu0 0
      %242 = vmatpush.bf16.xpose.msra.mxu0 0
      %243 = vmatpush.bf16.xpose.msra.mxu0 0
      %244 = vmatpush.bf16.xpose.msra.mxu0 0
      %245 = vmatpush.bf16.xpose.msra.mxu0 0
      %246 = vmatpush.bf16.xpose.msra.mxu0 0
      %247 = vmatpush.bf16.xpose.msra.mxu0 0
      %248 = vmatpush.bf16.xpose.msra.mxu0 %v239
      %249 = vmatmul.bf16.gmra.mxu0 %v236
      %v250 = vpop.f32.mrf.mxu0
      %v251 = vadd.f32 %v156, %v250
      %v252 = vpop.f32.mrf.mxu0
      %253 = vdwg.mxu0
      %vm254 = vcmask 27648
      %v255 = vsel %vm254, %v179, -inf
      %256 = vmax.xlane.f32.xlu0 %v255
      %v257 = vpop.xlane.xlu0 %256
      %v258 = vsel %vm254, %v203, -inf
      %259 = vmax.xlane.f32.xlu0 %v258
      %v260 = vpop.xlane.xlu0 %259
      %v261 = vsel %vm254, %v227, -inf
      %262 = vmax.xlane.f32.xlu0 %v261
      %v263 = vpop.xlane.xlu0 %262
      %v264 = vsel %vm254, %v251, -inf
      %265 = vmax.xlane.f32.xlu0 %v264
      %v266 = vpop.xlane.xlu0 %265
      %v267 = vsub.f32 %v179, %v257
      %v268 = vsub.f32 %v203, %v260
      %v269 = vsub.f32 %v227, %v263
      %v270 = vsub.f32 %v251, %v266
      %v271 = vmul.f32 %v267, 1.442695
      %v272 = vpow.pop %v271
      %v273 = vmul.f32 %v268, 1.442695
      %v274 = vpow.pop %v273
      %v275 = vmul.f32 %v269, 1.442695
      %v276 = vpow.pop %v275
      %v277 = vmul.f32 %v270, 1.442695
      %v278 = vpow.pop %v277
      %v279 = vsel %vm254, %v272, 0.0
      %280 = vadd.xlane.f32.xlu0 %v279
      %v281 = vpop.xlane.xlu0 %280
      %v282 = vsel %vm254, %v274, 0.0
      %283 = vadd.xlane.f32.xlu0 %v282
      %v284 = vpop.xlane.xlu0 %283
      %v285 = vsel %vm254, %v276, 0.0
      %286 = vadd.xlane.f32.xlu0 %v285
      %v287 = vpop.xlane.xlu0 %286
      %v288 = vsel %vm254, %v278, 0.0
      %289 = vadd.xlane.f32.xlu0 %v288
      %v290 = vpop.xlane.xlu0 %289
      %v291 = vrcp.pop %v281
      %v292 = vrcp.pop %v284
      %v293 = vrcp.pop %v287
      %v294 = vrcp.pop %v290
      %v295 = vmul.f32 %v272, %v291
      %v296 = vmul.f32 %v274, %v292
      %v297 = vmul.f32 %v276, %v293
      %v298 = vmul.f32 %v278, %v294
      %v299 = vpack.c.bf16 %v295, %v295
      %v300 = vpack.c.bf16 %v296, %v296
      %v301 = vpack.c.bf16 %v297, %v297
      %v302 = vpack.c.bf16 %v298, %v298
      %303 = vst [vmem:[#allocation1] ss:$4 sm:$0xff] %v145
      %v304 = vld.sshfl [vmem:[#allocation1] sm:$0xff pattern:$0x73625140]
      %306 = vrot.lane.b32.xlu0 %v304, 64
      %v307 = vpop.permute.xlu0 %306
      %vm308 = vcmask 31744
      %v310 = vsel %vm308, %v299, 0
      %vm312 = vcmask 1041408
      %v314 = vsel %vm312, %v307, 0
      %316 = vmatpush.bf16.msra.mxu0 0
      %317 = vmatpush.bf16.msra.mxu0 0
      %318 = vmatpush.bf16.msra.mxu0 0
      %319 = vmatpush.bf16.msra.mxu0 0
      %320 = vmatpush.bf16.msra.mxu0 0
      %321 = vmatpush.bf16.msra.mxu0 0
      %322 = vmatpush.bf16.msra.mxu0 0
      %323 = vmatpush.bf16.msra.mxu0 %v314
      %324 = vmatmul.bf16.gmra.mxu0 %v310
      %v325 = vpop.f32.mrf.mxu0
      %v326 = vadd.f32 0.0, %v325
      %v327 = vpop.f32.mrf.mxu0
      %328 = vdwg.mxu0
      %329 = vst [vmem:[#allocation1] ss:$4 sm:$0xff] %v146
      %v330 = vld.sshfl [vmem:[#allocation1] sm:$0xff pattern:$0x73625140]
      %332 = vrot.lane.b32.xlu0 %v330, 64
      %v333 = vpop.permute.xlu0 %332
      %v335 = vsel %vm308, %v300, 0
      %v338 = vsel %vm312, %v333, 0
      %340 = vmatpush.bf16.msra.mxu0 0
      %341 = vmatpush.bf16.msra.mxu0 0
      %342 = vmatpush.bf16.msra.mxu0 0
      %343 = vmatpush.bf16.msra.mxu0 0
      %344 = vmatpush.bf16.msra.mxu0 0
      %345 = vmatpush.bf16.msra.mxu0 0
      %346 = vmatpush.bf16.msra.mxu0 0
      %347 = vmatpush.bf16.msra.mxu0 %v338
      %348 = vmatmul.bf16.gmra.mxu0 %v335
      %v349 = vpop.f32.mrf.mxu0
      %v350 = vadd.f32 0.0, %v349
      %v351 = vpop.f32.mrf.mxu0
      %352 = vdwg.mxu0
      %353 = vst [vmem:[#allocation1] ss:$4 sm:$0xff] %v147
      %v354 = vld.sshfl [vmem:[#allocation1] sm:$0xff pattern:$0x73625140]
      %356 = vrot.lane.b32.xlu0 %v354, 64
      %v357 = vpop.permute.xlu0 %356
      %v359 = vsel %vm308, %v301, 0
      %v362 = vsel %vm312, %v357, 0
      %364 = vmatpush.bf16.msra.mxu0 0
      %365 = vmatpush.bf16.msra.mxu0 0
      %366 = vmatpush.bf16.msra.mxu0 0
      %367 = vmatpush.bf16.msra.mxu0 0
      %368 = vmatpush.bf16.msra.mxu0 0
      %369 = vmatpush.bf16.msra.mxu0 0
      %370 = vmatpush.bf16.msra.mxu0 0
      %371 = vmatpush.bf16.msra.mxu0 %v362
      %372 = vmatmul.bf16.gmra.mxu0 %v359
      %v373 = vpop.f32.mrf.mxu0
      %v374 = vadd.f32 0.0, %v373
      %v375 = vpop.f32.mrf.mxu0
      %376 = vdwg.mxu0
      %377 = vst [vmem:[#allocation1] ss:$4 sm:$0xff] %v148
      %v378 = vld.sshfl [vmem:[#allocation1] sm:$0xff pattern:$0x73625140]
      %380 = vrot.lane.b32.xlu0 %v378, 64
      %v381 = vpop.permute.xlu0 %380
      %v383 = vsel %vm308, %v302, 0
      %v386 = vsel %vm312, %v381, 0
      %388 = vmatpush.bf16.msra.mxu0 0
      %389 = vmatpush.bf16.msra.mxu0 0
      %390 = vmatpush.bf16.msra.mxu0 0
      %391 = vmatpush.bf16.msra.mxu0 0
      %392 = vmatpush.bf16.msra.mxu0 0
      %393 = vmatpush.bf16.msra.mxu0 0
      %394 = vmatpush.bf16.msra.mxu0 0
      %395 = vmatpush.bf16.msra.mxu0 %v386
      %396 = vmatmul.bf16.gmra.mxu0 %v383
      %v397 = vpop.f32.mrf.mxu0
      %v398 = vadd.f32 0.0, %v397
      %v399 = vpop.f32.mrf.mxu0
      %400 = vdwg.mxu0
      %s401 = scalar_lea.vmem %s1, 8
      %v402 = vld [vmem:[%s401] sm:$0x3]
      %v403 = vld [vmem:[%s401 + $0x2] sm:$0x3]
      %v404 = vld [vmem:[%s401 + $0x4] sm:$0x3]
      %v405 = vld [vmem:[%s401 + $0x6] sm:$0x3]
      %v406 = vunpack.c.l.bf16 %v402
      %v407 = vunpack.c.l.bf16 %v403
      %v408 = vunpack.c.l.bf16 %v404
      %v409 = vunpack.c.l.bf16 %v405
      %410 = vst [vmem:[#allocation1] ss:$4 sm:$0xff] %v145
      %v411 = vld.sshfl [vmem:[#allocation1] sm:$0xff pattern:$0x73625140]
      %413 = vrot.lane.b32.xlu0 %v411, 112
      %v414 = vpop.permute.xlu0 %413
      %415 = vst [vmem:[#allocation1] ss:$4 sm:$0xff] %v145
      %v416 = vld.sshfl [vmem:[#allocation1] sm:$0xff pattern:$0x73625140]
      %418 = vrot.lane.b32.xlu0 %v416, 80
      %v419 = vpop.permute.xlu0 %418
      %v421 = vsel %vm163, %v414, 0
      %v424 = vsel %vm163, %v419, 0
      %426 = vmatpush.bf16.xpose.msra.mxu0 0
      %427 = vmatpush.bf16.xpose.msra.mxu0 0
      %428 = vmatpush.bf16.xpose.msra.mxu0 0
      %429 = vmatpush.bf16.xpose.msra.mxu0 0
      %430 = vmatpush.bf16.xpose.msra.mxu0 0
      %431 = vmatpush.bf16.xpose.msra.mxu0 0
      %432 = vmatpush.bf16.xpose.msra.mxu0 0
      %433 = vmatpush.bf16.xpose.msra.mxu0 %v424
      %434 = vmatmul.bf16.gmra.mxu0 %v421
      %v435 = vpop.f32.mrf.mxu0
      %v436 = vadd.f32 %v406, %v435
      %v437 = vpop.f32.mrf.mxu0
      %438 = vdwg.mxu0
      %439 = vst [vmem:[#allocation1] ss:$4 sm:$0xff] %v146
      %v440 = vld.sshfl [vmem:[#allocation1] sm:$0xff pattern:$0x73625140]
      %442 = vrot.lane.b32.xlu0 %v440, 112
      %v443 = vpop.permute.xlu0 %442
      %444 = vst [vmem:[#allocation1] ss:$4 sm:$0xff] %v146
      %v445 = vld.sshfl [vmem:[#allocation1] sm:$0xff pattern:$0x73625140]
      %447 = vrot.lane.b32.xlu0 %v445, 80
      %v448 = vpop.permute.xlu0 %447
      %v450 = vsel %vm163, %v443, 0
      %v453 = vsel %vm163, %v448, 0
      %455 = vmatpush.bf16.xpose.msra.mxu0 0
      %456 = vmatpush.bf16.xpose.msra.mxu0 0
      %457 = vmatpush.bf16.xpose.msra.mxu0 0
      %458 = vmatpush.bf16.xpose.msra.mxu0 0
      %459 = vmatpush.bf16.xpose.msra.mxu0 0
      %460 = vmatpush.bf16.xpose.msra.mxu0 0
      %461 = vmatpush.bf16.xpose.msra.mxu0 0
      %462 = vmatpush.bf16.xpose.msra.mxu0 %v453
      %463 = vmatmul.bf16.gmra.mxu0 %v450
      %v464 = vpop.f32.mrf.mxu0
      %v465 = vadd.f32 %v407, %v464
      %v466 = vpop.f32.mrf.mxu0
      %467 = vdwg.mxu0
      %468 = vst [vmem:[#allocation1] ss:$4 sm:$0xff] %v147
      %v469 = vld.sshfl [vmem:[#allocation1] sm:$0xff pattern:$0x73625140]
      %471 = vrot.lane.b32.xlu0 %v469, 112
      %v472 = vpop.permute.xlu0 %471
      %473 = vst [vmem:[#allocation1] ss:$4 sm:$0xff] %v147
      %v474 = vld.sshfl [vmem:[#allocation1] sm:$0xff pattern:$0x73625140]
      %476 = vrot.lane.b32.xlu0 %v474, 80
      %v477 = vpop.permute.xlu0 %476
      %v479 = vsel %vm163, %v472, 0
      %v482 = vsel %vm163, %v477, 0
      %484 = vmatpush.bf16.xpose.msra.mxu0 0
      %485 = vmatpush.bf16.xpose.msra.mxu0 0
      %486 = vmatpush.bf16.xpose.msra.mxu0 0
      %487 = vmatpush.bf16.xpose.msra.mxu0 0
      %488 = vmatpush.bf16.xpose.msra.mxu0 0
      %489 = vmatpush.bf16.xpose.msra.mxu0 0
      %490 = vmatpush.bf16.xpose.msra.mxu0 0
      %491 = vmatpush.bf16.xpose.msra.mxu0 %v482
      %492 = vmatmul.bf16.gmra.mxu0 %v479
      %v493 = vpop.f32.mrf.mxu0
      %v494 = vadd.f32 %v408, %v493
      %v495 = vpop.f32.mrf.mxu0
      %496 = vdwg.mxu0
      %497 = vst [vmem:[#allocation1] ss:$4 sm:$0xff] %v148
      %v498 = vld.sshfl [vmem:[#allocation1] sm:$0xff pattern:$0x73625140]
      %500 = vrot.lane.b32.xlu0 %v498, 112
      %v501 = vpop.permute.xlu0 %500
      %502 = vst [vmem:[#allocation1] ss:$4 sm:$0xff] %v148
      %v503 = vld.sshfl [vmem:[#allocation1] sm:$0xff pattern:$0x73625140]
      %505 = vrot.lane.b32.xlu0 %v503, 80
      %v506 = vpop.permute.xlu0 %505
      %v508 = vsel %vm163, %v501, 0
      %v511 = vsel %vm163, %v506, 0
      %513 = vmatpush.bf16.xpose.msra.mxu0 0
      %514 = vmatpush.bf16.xpose.msra.mxu0 0
      %515 = vmatpush.bf16.xpose.msra.mxu0 0
      %516 = vmatpush.bf16.xpose.msra.mxu0 0
      %517 = vmatpush.bf16.xpose.msra.mxu0 0
      %518 = vmatpush.bf16.xpose.msra.mxu0 0
      %519 = vmatpush.bf16.xpose.msra.mxu0 0
      %520 = vmatpush.bf16.xpose.msra.mxu0 %v511
      %521 = vmatmul.bf16.gmra.mxu0 %v508
      %v522 = vpop.f32.mrf.mxu0
      %v523 = vadd.f32 %v409, %v522
      %v524 = vpop.f32.mrf.mxu0
      %525 = vdwg.mxu0
      %v526 = vsel %vm254, %v436, -inf
      %527 = vmax.xlane.f32.xlu0 %v526
      %v528 = vpop.xlane.xlu0 %527
      %v529 = vsel %vm254, %v465, -inf
      %530 = vmax.xlane.f32.xlu0 %v529
      %v531 = vpop.xlane.xlu0 %530
      %v532 = vsel %vm254, %v494, -inf
      %533 = vmax.xlane.f32.xlu0 %v532
      %v534 = vpop.xlane.xlu0 %533
      %v535 = vsel %vm254, %v523, -inf
      %536 = vmax.xlane.f32.xlu0 %v535
      %v537 = vpop.xlane.xlu0 %536
      %v538 = vsub.f32 %v436, %v528
      %v539 = vsub.f32 %v465, %v531
      %v540 = vsub.f32 %v494, %v534
      %v541 = vsub.f32 %v523, %v537
      %v542 = vmul.f32 %v538, 1.442695
      %v543 = vpow.pop %v542
      %v544 = vmul.f32 %v539, 1.442695
      %v545 = vpow.pop %v544
      %v546 = vmul.f32 %v540, 1.442695
      %v547 = vpow.pop %v546
      %v548 = vmul.f32 %v541, 1.442695
      %v549 = vpow.pop %v548
      %v550 = vsel %vm254, %v543, 0.0
      %551 = vadd.xlane.f32.xlu0 %v550
      %v552 = vpop.xlane.xlu0 %551
      %v553 = vsel %vm254, %v545, 0.0
      %554 = vadd.xlane.f32.xlu0 %v553
      %v555 = vpop.xlane.xlu0 %554
      %v556 = vsel %vm254, %v547, 0.0
      %557 = vadd.xlane.f32.xlu0 %v556
      %v558 = vpop.xlane.xlu0 %557
      %v559 = vsel %vm254, %v549, 0.0
      %560 = vadd.xlane.f32.xlu0 %v559
      %v561 = vpop.xlane.xlu0 %560
      %v562 = vrcp.pop %v552
      %v563 = vrcp.pop %v555
      %v564 = vrcp.pop %v558
      %v565 = vrcp.pop %v561
      %v566 = vmul.f32 %v543, %v562
      %v567 = vmul.f32 %v545, %v563
      %v568 = vmul.f32 %v547, %v564
      %v569 = vmul.f32 %v549, %v565
      %v570 = vpack.c.bf16 %v566, %v566
      %v571 = vpack.c.bf16 %v567, %v567
      %v572 = vpack.c.bf16 %v568, %v568
      %v573 = vpack.c.bf16 %v569, %v569
      %574 = vst [vmem:[#allocation1] ss:$4 sm:$0xff] %v145
      %v575 = vld.sshfl [vmem:[#allocation1] sm:$0xff pattern:$0x73625140]
      %577 = vrot.lane.b32.xlu0 %v575, 48
      %v578 = vpop.permute.xlu0 %577
      %v580 = vsel %vm308, %v570, 0
      %v583 = vsel %vm312, %v578, 0
      %585 = vmatpush.bf16.msra.mxu0 0
      %586 = vmatpush.bf16.msra.mxu0 0
      %587 = vmatpush.bf16.msra.mxu0 0
      %588 = vmatpush.bf16.msra.mxu0 0
      %589 = vmatpush.bf16.msra.mxu0 0
      %590 = vmatpush.bf16.msra.mxu0 0
      %591 = vmatpush.bf16.msra.mxu0 0
      %592 = vmatpush.bf16.msra.mxu0 %v583
      %593 = vmatmul.bf16.gmra.mxu0 %v580
      %v594 = vpop.f32.mrf.mxu0
      %v595 = vadd.f32 0.0, %v594
      %v596 = vpop.f32.mrf.mxu0
      %597 = vdwg.mxu0
      %598 = vst [vmem:[#allocation1] ss:$4 sm:$0xff] %v146
      %v599 = vld.sshfl [vmem:[#allocation1] sm:$0xff pattern:$0x73625140]
      %601 = vrot.lane.b32.xlu0 %v599, 48
      %v602 = vpop.permute.xlu0 %601
      %v604 = vsel %vm308, %v571, 0
      %v607 = vsel %vm312, %v602, 0
      %609 = vmatpush.bf16.msra.mxu0 0
      %610 = vmatpush.bf16.msra.mxu0 0
      %611 = vmatpush.bf16.msra.mxu0 0
      %612 = vmatpush.bf16.msra.mxu0 0
      %613 = vmatpush.bf16.msra.mxu0 0
      %614 = vmatpush.bf16.msra.mxu0 0
      %615 = vmatpush.bf16.msra.mxu0 0
      %616 = vmatpush.bf16.msra.mxu0 %v607
      %617 = vmatmul.bf16.gmra.mxu0 %v604
      %v618 = vpop.f32.mrf.mxu0
      %v619 = vadd.f32 0.0, %v618
      %v620 = vpop.f32.mrf.mxu0
      %621 = vdwg.mxu0
      %622 = vst [vmem:[#allocation1] ss:$4 sm:$0xff] %v147
      %v623 = vld.sshfl [vmem:[#allocation1] sm:$0xff pattern:$0x73625140]
      %625 = vrot.lane.b32.xlu0 %v623, 48
      %v626 = vpop.permute.xlu0 %625
      %v628 = vsel %vm308, %v572, 0
      %v631 = vsel %vm312, %v626, 0
      %633 = vmatpush.bf16.msra.mxu0 0
      %634 = vmatpush.bf16.msra.mxu0 0
      %635 = vmatpush.bf16.msra.mxu0 0
      %636 = vmatpush.bf16.msra.mxu0 0
      %637 = vmatpush.bf16.msra.mxu0 0
      %638 = vmatpush.bf16.msra.mxu0 0
      %639 = vmatpush.bf16.msra.mxu0 0
      %640 = vmatpush.bf16.msra.mxu0 %v631
      %641 = vmatmul.bf16.gmra.mxu0 %v628
      %v642 = vpop.f32.mrf.mxu0
      %v643 = vadd.f32 0.0, %v642
      %v644 = vpop.f32.mrf.mxu0
      %645 = vdwg.mxu0
      %646 = vst [vmem:[#allocation1] ss:$4 sm:$0xff] %v148
      %v647 = vld.sshfl [vmem:[#allocation1] sm:$0xff pattern:$0x73625140]
      %649 = vrot.lane.b32.xlu0 %v647, 48
      %v650 = vpop.permute.xlu0 %649
      %v652 = vsel %vm308, %v573, 0
      %v655 = vsel %vm312, %v650, 0
      %657 = vmatpush.bf16.msra.mxu0 0
      %658 = vmatpush.bf16.msra.mxu0 0
      %659 = vmatpush.bf16.msra.mxu0 0
      %660 = vmatpush.bf16.msra.mxu0 0
      %661 = vmatpush.bf16.msra.mxu0 0
      %662 = vmatpush.bf16.msra.mxu0 0
      %663 = vmatpush.bf16.msra.mxu0 0
      %664 = vmatpush.bf16.msra.mxu0 %v655
      %665 = vmatmul.bf16.gmra.mxu0 %v652
      %v666 = vpop.f32.mrf.mxu0
      %v667 = vadd.f32 0.0, %v666
      %v668 = vpop.f32.mrf.mxu0
      %669 = vdwg.mxu0
      %674 = vrot.lane.b32.xlu0 %v595, 16
      %v675 = vpop.permute.xlu0 %674
      %676 = vrot.lane.b32.xlu0 %v619, 16
      %v677 = vpop.permute.xlu0 %676
      %678 = vrot.lane.b32.xlu0 %v643, 16
      %v679 = vpop.permute.xlu0 %678
      %680 = vrot.lane.b32.xlu0 %v667, 16
      %v681 = vpop.permute.xlu0 %680
      %v686 = vsel %vm163, %v326, %v675
      %v687 = vsel %vm163, %v350, %v677
      %v688 = vsel %vm163, %v374, %v679
      %v689 = vsel %vm163, %v398, %v681
      %v690 = vpack.c.bf16 %v686, %v686
      %v691 = vpack.c.bf16 %v687, %v687
      %v692 = vpack.c.bf16 %v688, %v688
      %v693 = vpack.c.bf16 %v689, %v689
      %vm694 = vcmask 254976
      %695 = vst.msk [vmem:[%s143] sm:$0x3] %vm694, %v690
      %696 = vst.msk [vmem:[%s143 + $0x2] sm:$0x3] %vm694, %v691
      %697 = vst.msk [vmem:[%s143 + $0x4] sm:$0x3] %vm694, %v692
      %698 = vst.msk [vmem:[%s143 + $0x6] sm:$0x3] %vm694, %v693
      %p699 = scmp.lt.s32.totalorder %s13, 1
      %s700 = scalar_select %p699, %s13, 1
      %s701 = smul.addr %s700, 4
      %s702 = smul.addr %s701, 2
      %s703 = scalar_lea.vmem %s2, %s702
      // Predicated region
      $region29: #{swin_encoder_forward.16} parent=27 // pred_check
        %p704 = pneg %p78
      $region30: #{swin_encoder_forward.16} parent=27 // pred_check_branch
        %706 = sbr.rel (%p704) target = $region32
      $region31: #{swin_encoder_forward.16} parent=27 // pred_region
        _
      $region32: #{swin_encoder_forward.16} parent=27 // pred_fallthru
        _
    $region28: #{swin_encoder_forward.16} parent=5 // pred_fallthru
      _
    %p707 = scmp.le.s32.totalorder 2, %s8
    // Predicated region
    $region33: #{swin_encoder_forward.16} parent=5 // pred_check
      %p708 = pneg %p707
    $region34: #{swin_encoder_forward.16} parent=5 // pred_check_branch
      %710 = sbr.rel (%p708) target = $region36
    $region35: #{swin_encoder_forward.16} parent=5 // pred_region
      %s711 = ssub.s32 %s8, 2
      // Predicated region
      $region37: #{swin_encoder_forward.16} parent=35 // pred_check
        %p712 = pneg %p84
      $region38: #{swin_encoder_forward.16} parent=35 // pred_check_branch
        %714 = sbr.rel (%p712) target = $region40
      $region39: #{swin_encoder_forward.16} parent=35 // pred_region
        %p715 = scmp.lt.s32.totalorder %s14, 1
        %s716 = scalar_select %p715, %s14, 1
        %s717 = smul.addr %s716, 4
        %s718 = smul.addr %s717, 2
        %s719 = scalar_lea.vmem %s2, %s718
      $region40: #{swin_encoder_forward.16} parent=35 // pred_fallthru
        _
    $region36: #{swin_encoder_forward.16} parent=5 // pred_fallthru
      _
  $region6: #{swin_encoder_forward.16} parent=0 // loop_footer
    %s12 = sadd.s32 1, %s8
  $region7: #{swin_encoder_forward.16} parent=0 // loop_footer_branch
    %7 = sbr.rel target = $region3
  $region8: #{swin_encoder_forward.16} parent=0 // loop_exit
    _

// kernel: swin_encoder_forward.22
$region0: #{swin_encoder_forward.22}
  #allocation0 [shape = 'u32[]', space=smem, size = 0x4, offset = 0x4, fixed_abs, tag = 'smem constant byte address 0x4 - core index']
  #allocation1 [shape = 'u32[72,128]{1,0:T(1,128)}', space=vmem, size = 0x9000, scoped, tag = 'internal scratch']
  %s0 = inlined_call_operand.vmem [shape: f32[8,64], index: 0, kind: input, shape index: {}]
  %s1 = inlined_call_operand.vmem [shape: f32[1,64], index: 1, kind: input, shape index: {}]
  %s2 = inlined_call_operand.vmem [shape: f32[1,64], index: 2, kind: input, shape index: {}]
  %s3 = inlined_call_operand.vmem [shape: bf16[64,192], index: 3, kind: input, shape index: {}]
  %s4 = inlined_call_operand.vmem [shape: f32[1,192], index: 4, kind: input, shape index: {}]
  %s5 = inlined_call_operand.vmem [shape: bf16[8,192], index: 5, kind: output, shape index: {}]
  %s6 = sld [smem:[#allocation0]]
  $region30: #{swin_encoder_forward.22} parent=0
    _
  %s8 = ssub.s32 1, %s6
  %s9 = scalar_select 0, %s8, %s6
  // Predicated region
  $region2: #{swin_encoder_forward.22} parent=0 // pred_check
    _
  $region3: #{swin_encoder_forward.22} parent=0 // pred_check_branch
    %11 = sbr.rel (0) target = $region5
  $region4: #{swin_encoder_forward.22} parent=0 // pred_region
    _
  $region5: #{swin_encoder_forward.22} parent=0 // pred_fallthru
    _
  // Predicated region
  $region6: #{swin_encoder_forward.22} parent=0 // pred_check
    _
  $region7: #{swin_encoder_forward.22} parent=0 // pred_check_branch
    %13 = sbr.rel (0) target = $region9
  $region8: #{swin_encoder_forward.22} parent=0 // pred_region
    _
  $region9: #{swin_encoder_forward.22} parent=0 // pred_fallthru
    _
  // Predicated region
  $region10: #{swin_encoder_forward.22} parent=0 // pred_check
    _
  $region11: #{swin_encoder_forward.22} parent=0 // pred_check_branch
    %15 = sbr.rel (0) target = $region13
  $region12: #{swin_encoder_forward.22} parent=0 // pred_region
    _
  $region13: #{swin_encoder_forward.22} parent=0 // pred_fallthru
    _
  // Predicated region
  $region14: #{swin_encoder_forward.22} parent=0 // pred_check
    _
  $region15: #{swin_encoder_forward.22} parent=0 // pred_check_branch
    %17 = sbr.rel (0) target = $region17
  $region16: #{swin_encoder_forward.22} parent=0 // pred_region
    _
  $region17: #{swin_encoder_forward.22} parent=0 // pred_fallthru
    _
  // Predicated region
  $region18: #{swin_encoder_forward.22} parent=0 // pred_check
    _
  $region19: #{swin_encoder_forward.22} parent=0 // pred_check_branch
    %19 = sbr.rel (0) target = $region21
  $region20: #{swin_encoder_forward.22} parent=0 // pred_region
    _
  $region21: #{swin_encoder_forward.22} parent=0 // pred_fallthru
    _
  %v21 = vld [vmem:[%s0] sm:$0xff]
  %vm22 = vcmask 523264
  %v23 = vsel %vm22, %v21, 0.0
  %24 = vadd.xlane.f32.xlu0 %v23
  %v25 = vpop.xlane.xlu0 %24
  %v26 = vrcp.pop 64.0
  %v27 = vmul.f32 64.0, %v26
  %v28 = vsub.f32 1.0, %v27
  %v29 = vmul.f32 %v26, %v28
  %v30 = vadd.f32 %v26, %v29
  %vm31 = vweird.f32 %v26
  %v32 = vsel %vm31, %v26, %v30
  %v33 = vmul.f32 %v25, %v32
  %v34 = vsub.f32 %v21, %v33
  %v35 = vmul.f32 %v34, %v34
  %v36 = vsel %vm22, %v35, 0.0
  %37 = vadd.xlane.f32.xlu0 %v36
  %v38 = vpop.xlane.xlu0 %37
  %v39 = vmul.f32 %v38, %v32
  %v40 = vadd.f32 %v39, 1e-05
  %v41 = vrsqrt.pop %v40
  %v42 = vmul.f32 %v41, %v40
  %v43 = vmul.f32 %v42, %v41
  %v44 = vmul.f32 0.5, %v43
  %v45 = vsub.f32 1.5, %v44
  %v46 = vmul.f32 %v41, %v45
  %vm47 = vweird.f32 %v40
  %vm48 = vweird.f32 %v41
  %vm49 = vmor %vm47, %vm48
  %v50 = vsel %vm49, %v41, %v46
  %v51 = vmul.f32 %v34, %v50
  %v52 = vld [vmem:[%s1] sm:$0x1]
  %v54 = vperm.slane %v52, 0
  %v56 = vmul.f32 %v51, %v54
  %v57 = vld [vmem:[%s2] sm:$0x1]
  %v59 = vperm.slane %v57, 0
  %v61 = vadd.f32 %v56, %v59
  %v62 = vpack.c.bf16 %v61, %v61
  %v63 = vld [vmem:[%s3] sm:$0xff]
  %v64 = vld [vmem:[%s3 + $0x8] sm:$0xff]
  %v65 = vld [vmem:[%s3 + $0x10] sm:$0xff]
  %v66 = vld [vmem:[%s3 + $0x18] sm:$0xff]
  %v67 = vld [vmem:[%s3 + $0x20] sm:$0xff]
  %v68 = vld [vmem:[%s3 + $0x28] sm:$0xff]
  %v69 = vld [vmem:[%s3 + $0x30] sm:$0xff]
  %v70 = vld [vmem:[%s3 + $0x38] sm:$0xff]
  %v71 = vld [vmem:[%s4] sm:$0x3]
  %v73 = vperm.slane %v71, 0
  %v74 = vperm.slane %v71, 1
  %v85 = vunpack.c.l.b16 %v63
  %v86 = vunpack.c.h.b16 %v63
  %v87 = vunpack.c.l.b16 %v64
  %v88 = vunpack.c.h.b16 %v64
  %v89 = vunpack.c.l.b16 %v65
  %v90 = vunpack.c.h.b16 %v65
  %v91 = vunpack.c.l.b16 %v66
  %v92 = vunpack.c.h.b16 %v66
  %v93 = vunpack.c.l.b16 %v67
  %v94 = vunpack.c.h.b16 %v67
  %v95 = vunpack.c.l.b16 %v68
  %v96 = vunpack.c.h.b16 %v68
  %v97 = vunpack.c.l.b16 %v69
  %v98 = vunpack.c.h.b16 %v69
  %v99 = vunpack.c.l.b16 %v70
  %v100 = vunpack.c.h.b16 %v70
  %v101 = vpack.c.b16 %v87, %v85
  %v102 = vpack.c.b16 %v88, %v86
  %v103 = vpack.c.b16 %v91, %v89
  %v104 = vpack.c.b16 %v92, %v90
  %v105 = vpack.c.b16 %v95, %v93
  %v106 = vpack.c.b16 %v96, %v94
  %v107 = vpack.c.b16 %v99, %v97
  %v108 = vpack.c.b16 %v100, %v98
  %v118 = vsel %vm22, %v62, 0
  %120 = vmatpush.bf16.msra.mxu0 0
  %121 = vmatpush.bf16.msra.mxu0 0
  %122 = vmatpush.bf16.msra.mxu0 0
  %123 = vmatpush.bf16.msra.mxu0 0
  %124 = vmatpush.bf16.msra.mxu0 %v107
  %125 = vmatpush.bf16.msra.mxu0 %v105
  %126 = vmatpush.bf16.msra.mxu0 %v103
  %127 = vmatpush.bf16.msra.mxu0 %v101
  %128 = vmatmul.bf16.gmra.mxu0 %v118
  %v129 = vpop.f32.mrf.mxu0
  %v130 = vadd.f32 %v73, %v129
  %v131 = vpop.f32.mrf.mxu0
  %132 = vdwg.mxu0
  %133 = vmatpush.bf16.msra.mxu0 0
  %134 = vmatpush.bf16.msra.mxu0 0
  %135 = vmatpush.bf16.msra.mxu0 0
  %136 = vmatpush.bf16.msra.mxu0 0
  %137 = vmatpush.bf16.msra.mxu0 %v108
  %138 = vmatpush.bf16.msra.mxu0 %v106
  %139 = vmatpush.bf16.msra.mxu0 %v104
  %140 = vmatpush.bf16.msra.mxu0 %v102
  %141 = vmatmul.bf16.gmra.mxu0 %v118
  %v142 = vpop.f32.mrf.mxu0
  %v143 = vadd.f32 %v74, %v142
  %v144 = vpop.f32.mrf.mxu0
  %145 = vdwg.mxu0
  %v146 = vpack.c.bf16 %v143, %v130
  %vm147 = vcmask 1043456
  %vm148 = vcmask 523268
  %vm149 = vmor %vm148, %vm147
  %150 = vst.msk [vmem:[%s5] sm:$0xff] %vm149, %v146
  // Predicated region
  $region22: #{swin_encoder_forward.22} parent=0 // pred_check
    _
  $region23: #{swin_encoder_forward.22} parent=0 // pred_check_branch
    %152 = sbr.rel (0) target = $region25
  $region24: #{swin_encoder_forward.22} parent=0 // pred_region
    _
  $region25: #{swin_encoder_forward.22} parent=0 // pred_fallthru
    _
  // Predicated region
  $region26: #{swin_encoder_forward.22} parent=0 // pred_check
    _
  $region27: #{swin_encoder_forward.22} parent=0 // pred_check_branch
    %154 = sbr.rel (0) target = $region29
  $region28: #{swin_encoder_forward.22} parent=0 // pred_region
    _
  $region29: #{swin_encoder_forward.22} parent=0 // pred_fallthru
    _

// kernel: swin_encoder_forward.21
$region0: #{swin_encoder_forward.21}
  #allocation0 [shape = 'u32[]', space=smem, size = 0x4, offset = 0x4, fixed_abs, tag = 'smem constant byte address 0x4 - core index']
  #allocation1 [shape = 'u32[72,128]{1,0:T(1,128)}', space=vmem, size = 0x9000, scoped, tag = 'internal scratch']
  %s0 = inlined_call_operand.vmem [shape: f32[8,128], index: 0, kind: input, shape index: {}]
  %s1 = inlined_call_operand.vmem [shape: f32[1,128], index: 1, kind: input, shape index: {}]
  %s2 = inlined_call_operand.vmem [shape: f32[1,128], index: 2, kind: input, shape index: {}]
  %s3 = inlined_call_operand.vmem [shape: bf16[128,64], index: 3, kind: input, shape index: {}]
  %s4 = inlined_call_operand.vmem [shape: f32[1,64], index: 4, kind: input, shape index: {}]
  %s5 = inlined_call_operand.vmem [shape: f32[8,64], index: 5, kind: output, shape index: {}]
  %s6 = sld [smem:[#allocation0]]
  $region30: #{swin_encoder_forward.21} parent=0
    _
  %s8 = ssub.s32 1, %s6
  %s9 = scalar_select 0, %s8, %s6
  // Predicated region
  $region2: #{swin_encoder_forward.21} parent=0 // pred_check
    _
  $region3: #{swin_encoder_forward.21} parent=0 // pred_check_branch
    %11 = sbr.rel (0) target = $region5
  $region4: #{swin_encoder_forward.21} parent=0 // pred_region
    _
  $region5: #{swin_encoder_forward.21} parent=0 // pred_fallthru
    _
  // Predicated region
  $region6: #{swin_encoder_forward.21} parent=0 // pred_check
    _
  $region7: #{swin_encoder_forward.21} parent=0 // pred_check_branch
    %13 = sbr.rel (0) target = $region9
  $region8: #{swin_encoder_forward.21} parent=0 // pred_region
    _
  $region9: #{swin_encoder_forward.21} parent=0 // pred_fallthru
    _
  // Predicated region
  $region10: #{swin_encoder_forward.21} parent=0 // pred_check
    _
  $region11: #{swin_encoder_forward.21} parent=0 // pred_check_branch
    %15 = sbr.rel (0) target = $region13
  $region12: #{swin_encoder_forward.21} parent=0 // pred_region
    _
  $region13: #{swin_encoder_forward.21} parent=0 // pred_fallthru
    _
  // Predicated region
  $region14: #{swin_encoder_forward.21} parent=0 // pred_check
    _
  $region15: #{swin_encoder_forward.21} parent=0 // pred_check_branch
    %17 = sbr.rel (0) target = $region17
  $region16: #{swin_encoder_forward.21} parent=0 // pred_region
    _
  $region17: #{swin_encoder_forward.21} parent=0 // pred_fallthru
    _
  // Predicated region
  $region18: #{swin_encoder_forward.21} parent=0 // pred_check
    _
  $region19: #{swin_encoder_forward.21} parent=0 // pred_check_branch
    %19 = sbr.rel (0) target = $region21
  $region20: #{swin_encoder_forward.21} parent=0 // pred_region
    _
  $region21: #{swin_encoder_forward.21} parent=0 // pred_fallthru
    _
  %v20 = vld [vmem:[%s0] sm:$0xff]
  %21 = vadd.xlane.f32.xlu0 %v20
  %v22 = vpop.xlane.xlu0 %21
  %v23 = vrcp.pop 128.0
  %v24 = vmul.f32 128.0, %v23
  %v25 = vsub.f32 1.0, %v24
  %v26 = vmul.f32 %v23, %v25
  %v27 = vadd.f32 %v23, %v26
  %vm28 = vweird.f32 %v23
  %v29 = vsel %vm28, %v23, %v27
  %v30 = vmul.f32 %v22, %v29
  %v31 = vsub.f32 %v20, %v30
  %v32 = vmul.f32 %v31, %v31
  %33 = vadd.xlane.f32.xlu0 %v32
  %v34 = vpop.xlane.xlu0 %33
  %v35 = vmul.f32 %v34, %v29
  %v36 = vadd.f32 %v35, 1e-05
  %v37 = vrsqrt.pop %v36
  %v38 = vmul.f32 %v37, %v36
  %v39 = vmul.f32 %v38, %v37
  %v40 = vmul.f32 0.5, %v39
  %v41 = vsub.f32 1.5, %v40
  %v42 = vmul.f32 %v37, %v41
  %vm43 = vweird.f32 %v36
  %vm44 = vweird.f32 %v37
  %vm45 = vmor %vm43, %vm44
  %v46 = vsel %vm45, %v37, %v42
  %v47 = vmul.f32 %v31, %v46
  %v48 = vld [vmem:[%s1] sm:$0x1]
  %v50 = vperm.slane %v48, 0
  %v52 = vmul.f32 %v47, %v50
  %v53 = vld [vmem:[%s2] sm:$0x1]
  %v55 = vperm.slane %v53, 0
  %v57 = vadd.f32 %v52, %v55
  %v58 = vpack.c.bf16 %v57, %v57
  %v59 = vld [vmem:[%s3] sm:$0xf]
  %v60 = vld [vmem:[%s3 + $0x4] sm:$0xf]
  %v61 = vld [vmem:[%s3 + $0x8] sm:$0xf]
  %v62 = vld [vmem:[%s3 + $0xc] sm:$0xf]
  %v63 = vld [vmem:[%s3 + $0x10] sm:$0xf]
  %v64 = vld [vmem:[%s3 + $0x14] sm:$0xf]
  %v65 = vld [vmem:[%s3 + $0x18] sm:$0xf]
  %v66 = vld [vmem:[%s3 + $0x1c] sm:$0xf]
  %v67 = vld [vmem:[%s3 + $0x20] sm:$0xf]
  %v68 = vld [vmem:[%s3 + $0x24] sm:$0xf]
  %v69 = vld [vmem:[%s3 + $0x28] sm:$0xf]
  %v70 = vld [vmem:[%s3 + $0x2c] sm:$0xf]
  %v71 = vld [vmem:[%s3 + $0x30] sm:$0xf]
  %v72 = vld [vmem:[%s3 + $0x34] sm:$0xf]
  %v73 = vld [vmem:[%s3 + $0x38] sm:$0xf]
  %v74 = vld [vmem:[%s3 + $0x3c] sm:$0xf]
  %v75 = vld [vmem:[%s4] sm:$0x1]
  %v77 = vperm.slane %v75, 0
  %v95 = vunpack.c.l.b16 %v59
  %v96 = vunpack.c.l.b16 %v60
  %v97 = vunpack.c.l.b16 %v61
  %v98 = vunpack.c.l.b16 %v62
  %v99 = vunpack.c.l.b16 %v63
  %v100 = vunpack.c.l.b16 %v64
  %v101 = vunpack.c.l.b16 %v65
  %v102 = vunpack.c.l.b16 %v66
  %v103 = vunpack.c.l.b16 %v67
  %v104 = vunpack.c.l.b16 %v68
  %v105 = vunpack.c.l.b16 %v69
  %v106 = vunpack.c.l.b16 %v70
  %v107 = vunpack.c.l.b16 %v71
  %v108 = vunpack.c.l.b16 %v72
  %v109 = vunpack.c.l.b16 %v73
  %v110 = vunpack.c.l.b16 %v74
  %v111 = vpack.c.b16 %v96, %v95
  %v112 = vpack.c.b16 %v98, %v97
  %v113 = vpack.c.b16 %v100, %v99
  %v114 = vpack.c.b16 %v102, %v101
  %v115 = vpack.c.b16 %v104, %v103
  %v116 = vpack.c.b16 %v106, %v105
  %v117 = vpack.c.b16 %v108, %v107
  %v118 = vpack.c.b16 %v110, %v109
  %127 = vmatpush.bf16.msra.mxu0 %v118
  %128 = vmatpush.bf16.msra.mxu0 %v117
  %129 = vmatpush.bf16.msra.mxu0 %v116
  %130 = vmatpush.bf16.msra.mxu0 %v115
  %131 = vmatpush.bf16.msra.mxu0 %v114
  %132 = vmatpush.bf16.msra.mxu0 %v113
  %133 = vmatpush.bf16.msra.mxu0 %v112
  %134 = vmatpush.bf16.msra.mxu0 %v111
  %135 = vmatmul.bf16.gmra.mxu0 %v58
  %v136 = vpop.f32.mrf.mxu0
  %v137 = vadd.f32 %v77, %v136
  %v138 = vpop.f32.mrf.mxu0
  %139 = vdwg.mxu0
  %vm140 = vcmask 523264
  %141 = vst.msk [vmem:[%s5] sm:$0xff] %vm140, %v137
  // Predicated region
  $region22: #{swin_encoder_forward.21} parent=0 // pred_check
    _
  $region23: #{swin_encoder_forward.21} parent=0 // pred_check_branch
    %143 = sbr.rel (0) target = $region25
  $region24: #{swin_encoder_forward.21} parent=0 // pred_region
    _
  $region25: #{swin_encoder_forward.21} parent=0 // pred_fallthru
    _
  // Predicated region
  $region26: #{swin_encoder_forward.21} parent=0 // pred_check
    _
  $region27: #{swin_encoder_forward.21} parent=0 // pred_check_branch
    %145 = sbr.rel (0) target = $region29
  $region28: #{swin_encoder_forward.21} parent=0 // pred_region
    _
  $region29: #{swin_encoder_forward.21} parent=0 // pred_fallthru
    _

// kernel: swin_encoder_forward.24
$region0: #{swin_encoder_forward.24}
  #allocation0 [shape = 'u32[]', space=smem, size = 0x4, offset = 0x4, fixed_abs, tag = 'smem constant byte address 0x4 - core index']
  #allocation1 [shape = 'u32[72,128]{1,0:T(1,128)}', space=vmem, size = 0x9000, scoped, tag = 'internal scratch']
  %s0 = inlined_call_operand.vmem [shape: f32[8,64], index: 0, kind: input, shape index: {}]
  %s1 = inlined_call_operand.vmem [shape: bf16[8,64], index: 1, kind: input, shape index: {}]
  %s2 = inlined_call_operand.vmem [shape: bf16[64,64], index: 2, kind: input, shape index: {}]
  %s3 = inlined_call_operand.vmem [shape: f32[1,64], index: 3, kind: input, shape index: {}, may-alias: {3,5,9}]
  %s4 = inlined_call_operand.vmem [shape: f32[1,64], index: 4, kind: input, shape index: {}]
  %s5 = inlined_call_operand.vmem [shape: f32[1,64], index: 5, kind: input, shape index: {}, may-alias: {3,5,9}]
  %s6 = inlined_call_operand.vmem [shape: bf16[64,128], index: 6, kind: input, shape index: {}]
  %s7 = inlined_call_operand.vmem [shape: f32[1,128], index: 7, kind: input, shape index: {}]
  %s8 = inlined_call_operand.vmem [shape: bf16[128,64], index: 8, kind: input, shape index: {}]
  %s9 = inlined_call_operand.vmem [shape: f32[1,64], index: 9, kind: input, shape index: {}, may-alias: {3,5,9}]
  %s10 = inlined_call_operand.vmem [shape: f32[8,64], index: 10, kind: output, shape index: {}]
  %s11 = sld [smem:[#allocation0]]
  $region50: #{swin_encoder_forward.24} parent=0
    _
  %s13 = ssub.s32 1, %s11
  %s14 = scalar_select 0, %s13, %s11
  // Predicated region
  $region2: #{swin_encoder_forward.24} parent=0 // pred_check
    _
  $region3: #{swin_encoder_forward.24} parent=0 // pred_check_branch
    %16 = sbr.rel (0) target = $region5
  $region4: #{swin_encoder_forward.24} parent=0 // pred_region
    _
  $region5: #{swin_encoder_forward.24} parent=0 // pred_fallthru
    _
  // Predicated region
  $region6: #{swin_encoder_forward.24} parent=0 // pred_check
    _
  $region7: #{swin_encoder_forward.24} parent=0 // pred_check_branch
    %18 = sbr.rel (0) target = $region9
  $region8: #{swin_encoder_forward.24} parent=0 // pred_region
    _
  $region9: #{swin_encoder_forward.24} parent=0 // pred_fallthru
    _
  // Predicated region
  $region10: #{swin_encoder_forward.24} parent=0 // pred_check
    _
  $region11: #{swin_encoder_forward.24} parent=0 // pred_check_branch
    %20 = sbr.rel (0) target = $region13
  $region12: #{swin_encoder_forward.24} parent=0 // pred_region
    _
  $region13: #{swin_encoder_forward.24} parent=0 // pred_fallthru
    _
  // Predicated region
  $region14: #{swin_encoder_forward.24} parent=0 // pred_check
    _
  $region15: #{swin_encoder_forward.24} parent=0 // pred_check_branch
    %22 = sbr.rel (0) target = $region17
  $region16: #{swin_encoder_forward.24} parent=0 // pred_region
    _
  $region17: #{swin_encoder_forward.24} parent=0 // pred_fallthru
    _
  // Predicated region
  $region18: #{swin_encoder_forward.24} parent=0 // pred_check
    _
  $region19: #{swin_encoder_forward.24} parent=0 // pred_check_branch
    %24 = sbr.rel (0) target = $region21
  $region20: #{swin_encoder_forward.24} parent=0 // pred_region
    _
  $region21: #{swin_encoder_forward.24} parent=0 // pred_fallthru
    _
  // Predicated region
  $region22: #{swin_encoder_forward.24} parent=0 // pred_check
    _
  $region23: #{swin_encoder_forward.24} parent=0 // pred_check_branch
    %26 = sbr.rel (0) target = $region25
  $region24: #{swin_encoder_forward.24} parent=0 // pred_region
    _
  $region25: #{swin_encoder_forward.24} parent=0 // pred_fallthru
    _
  // Predicated region
  $region26: #{swin_encoder_forward.24} parent=0 // pred_check
    _
  $region27: #{swin_encoder_forward.24} parent=0 // pred_check_branch
    %28 = sbr.rel (0) target = $region29
  $region28: #{swin_encoder_forward.24} parent=0 // pred_region
    _
  $region29: #{swin_encoder_forward.24} parent=0 // pred_fallthru
    _
  // Predicated region
  $region30: #{swin_encoder_forward.24} parent=0 // pred_check
    _
  $region31: #{swin_encoder_forward.24} parent=0 // pred_check_branch
    %30 = sbr.rel (0) target = $region33
  $region32: #{swin_encoder_forward.24} parent=0 // pred_region
    _
  $region33: #{swin_encoder_forward.24} parent=0 // pred_fallthru
    _
  // Predicated region
  $region34: #{swin_encoder_forward.24} parent=0 // pred_check
    _
  $region35: #{swin_encoder_forward.24} parent=0 // pred_check_branch
    %32 = sbr.rel (0) target = $region37
  $region36: #{swin_encoder_forward.24} parent=0 // pred_region
    _
  $region37: #{swin_encoder_forward.24} parent=0 // pred_fallthru
    _
  // Predicated region
  $region38: #{swin_encoder_forward.24} parent=0 // pred_check
    _
  $region39: #{swin_encoder_forward.24} parent=0 // pred_check_branch
    %34 = sbr.rel (0) target = $region41
  $region40: #{swin_encoder_forward.24} parent=0 // pred_region
    _
  $region41: #{swin_encoder_forward.24} parent=0 // pred_fallthru
    _
  %v36 = vld [vmem:[%s1] sm:$0xf]
  %v37 = vld [vmem:[%s2] sm:$0xf]
  %v38 = vld [vmem:[%s2 + $0x4] sm:$0xf]
  %v39 = vld [vmem:[%s2 + $0x8] sm:$0xf]
  %v40 = vld [vmem:[%s2 + $0xc] sm:$0xf]
  %v41 = vld [vmem:[%s2 + $0x10] sm:$0xf]
  %v42 = vld [vmem:[%s2 + $0x14] sm:$0xf]
  %v43 = vld [vmem:[%s2 + $0x18] sm:$0xf]
  %v44 = vld [vmem:[%s2 + $0x1c] sm:$0xf]
  %v45 = vld [vmem:[%s3] sm:$0x1]
  %v47 = vperm.slane %v45, 0
  %v57 = vunpack.c.l.b16 %v37
  %v58 = vunpack.c.l.b16 %v38
  %v59 = vunpack.c.l.b16 %v39
  %v60 = vunpack.c.l.b16 %v40
  %v61 = vunpack.c.l.b16 %v41
  %v62 = vunpack.c.l.b16 %v42
  %v63 = vunpack.c.l.b16 %v43
  %v64 = vunpack.c.l.b16 %v44
  %v65 = vpack.c.b16 %v58, %v57
  %v66 = vpack.c.b16 %v60, %v59
  %v67 = vpack.c.b16 %v62, %v61
  %v68 = vpack.c.b16 %v64, %v63
  %vm73 = vcmask 523264
  %v75 = vsel %vm73, %v36, 0
  %77 = vmatpush.bf16.msra.mxu0 0
  %78 = vmatpush.bf16.msra.mxu0 0
  %79 = vmatpush.bf16.msra.mxu0 0
  %80 = vmatpush.bf16.msra.mxu0 0
  %81 = vmatpush.bf16.msra.mxu0 %v68
  %82 = vmatpush.bf16.msra.mxu0 %v67
  %83 = vmatpush.bf16.msra.mxu0 %v66
  %84 = vmatpush.bf16.msra.mxu0 %v65
  %85 = vmatmul.bf16.gmra.mxu0 %v75
  %v86 = vpop.f32.mrf.mxu0
  %v87 = vadd.f32 %v47, %v86
  %v88 = vpop.f32.mrf.mxu0
  %89 = vdwg.mxu0
  %v90 = vld [vmem:[%s0] sm:$0xff]
  %v91 = vadd.f32 %v90, %v87
  %v92 = vsel %vm73, %v91, 0.0
  %93 = vadd.xlane.f32.xlu0 %v92
  %v94 = vpop.xlane.xlu0 %93
  %v95 = vrcp.pop 64.0
  %v96 = vmul.f32 64.0, %v95
  %v97 = vsub.f32 1.0, %v96
  %v98 = vmul.f32 %v95, %v97
  %v99 = vadd.f32 %v95, %v98
  %vm100 = vweird.f32 %v95
  %v101 = vsel %vm100, %v95, %v99
  %v102 = vmul.f32 %v94, %v101
  %v103 = vsub.f32 %v91, %v102
  %v104 = vmul.f32 %v103, %v103
  %v105 = vsel %vm73, %v104, 0.0
  %106 = vadd.xlane.f32.xlu0 %v105
  %v107 = vpop.xlane.xlu0 %106
  %v108 = vmul.f32 %v107, %v101
  %v109 = vadd.f32 %v108, 1e-05
  %v110 = vrsqrt.pop %v109
  %v111 = vmul.f32 %v110, %v109
  %v112 = vmul.f32 %v111, %v110
  %v113 = vmul.f32 0.5, %v112
  %v114 = vsub.f32 1.5, %v113
  %v115 = vmul.f32 %v110, %v114
  %vm116 = vweird.f32 %v109
  %vm117 = vweird.f32 %v110
  %vm118 = vmor %vm116, %vm117
  %v119 = vsel %vm118, %v110, %v115
  %v120 = vmul.f32 %v103, %v119
  %v121 = vld [vmem:[%s4] sm:$0x1]
  %v123 = vperm.slane %v121, 0
  %v125 = vmul.f32 %v120, %v123
  %v126 = vld [vmem:[%s5] sm:$0x1]
  %v128 = vperm.slane %v126, 0
  %v130 = vadd.f32 %v125, %v128
  %v131 = vpack.c.bf16 %v130, %v130
  %v132 = vld [vmem:[%s6] sm:$0xf]
  %v133 = vld [vmem:[%s6 + $0x4] sm:$0xf]
  %v134 = vld [vmem:[%s6 + $0x8] sm:$0xf]
  %v135 = vld [vmem:[%s6 + $0xc] sm:$0xf]
  %v136 = vld [vmem:[%s6 + $0x10] sm:$0xf]
  %v137 = vld [vmem:[%s6 + $0x14] sm:$0xf]
  %v138 = vld [vmem:[%s6 + $0x18] sm:$0xf]
  %v139 = vld [vmem:[%s6 + $0x1c] sm:$0xf]
  %v140 = vld [vmem:[%s7] sm:$0x1]
  %v142 = vperm.slane %v140, 0
  %v152 = vunpack.c.l.b16 %v132
  %v153 = vunpack.c.l.b16 %v133
  %v154 = vunpack.c.l.b16 %v134
  %v155 = vunpack.c.l.b16 %v135
  %v156 = vunpack.c.l.b16 %v136
  %v157 = vunpack.c.l.b16 %v137
  %v158 = vunpack.c.l.b16 %v138
  %v159 = vunpack.c.l.b16 %v139
  %v160 = vpack.c.b16 %v153, %v152
  %v161 = vpack.c.b16 %v155, %v154
  %v162 = vpack.c.b16 %v157, %v156
  %v163 = vpack.c.b16 %v159, %v158
  %v169 = vsel %vm73, %v131, 0
  %171 = vmatpush.bf16.msra.mxu0 0
  %172 = vmatpush.bf16.msra.mxu0 0
  %173 = vmatpush.bf16.msra.mxu0 0
  %174 = vmatpush.bf16.msra.mxu0 0
  %175 = vmatpush.bf16.msra.mxu0 %v163
  %176 = vmatpush.bf16.msra.mxu0 %v162
  %177 = vmatpush.bf16.msra.mxu0 %v161
  %178 = vmatpush.bf16.msra.mxu0 %v160
  %179 = vmatmul.bf16.gmra.mxu0 %v169
  %v180 = vpop.f32.mrf.mxu0
  %v181 = vadd.f32 %v142, %v180
  %v182 = vpop.f32.mrf.mxu0
  %183 = vdwg.mxu0
  %v184 = vmul.f32 %v181, 0.5
  %v185 = vmul.f32 %v181, 0.70710677
  %v186 = vmul.f32 %v185, %v185
  %v187 = vmin.f32 16.0, %v186
  %v188 = vmul.f32 %v187, 2.1237322e-06
  %v189 = vadd.f32 %v188, 0.00028619796
  %v190 = vmul.f32 %v187, %v189
  %v191 = vadd.f32 %v190, 0.0036580483
  %v192 = vmul.f32 %v187, %v191
  %v193 = vadd.f32 %v192, 0.05243302
  %v194 = vmul.f32 %v187, %v193
  %v195 = vadd.f32 %v194, 0.18741608
  %v196 = vmul.f32 %v187, %v195
  %v197 = vadd.f32 %v196, 1.1283791
  %v198 = vmul.f32 %v185, %v197
  %v199 = vmul.f32 %v187, 3.8918573e-05
  %v200 = vadd.f32 %v199, 0.001143296
  %v201 = vmul.f32 %v187, %v200
  %v202 = vadd.f32 %v201, 0.014752088
  %v203 = vmul.f32 %v187, %v202
  %v204 = vadd.f32 %v203, 0.112945676
  %v205 = vmul.f32 %v187, %v204
  %v206 = vadd.f32 %v205, 0.4994258
  %v207 = vmul.f32 %v187, %v206
  %v208 = vadd.f32 %v207, 1.0
  %v209 = vrcp.pop %v208
  %v210 = vmul.f32 %v208, %v209
  %v211 = vsub.f32 1.0, %v210
  %v212 = vmul.f32 %v209, %v211
  %v213 = vadd.f32 %v209, %v212
  %vm214 = vweird.f32 %v208
  %vm215 = vweird.f32 %v209
  %vm216 = vmor %vm214, %vm215
  %v217 = vsel %vm216, %v209, %v213
  %v218 = vand.u32 2147483647, %v208
  %vm219 = vcmp.eq.f32.partialorder %v218, 8.507059e+37
  %v220 = vand.u32 %v208, 2147483648
  %v221 = vor.u32 1.1754944e-38, %v220
  %v222 = vsel %vm219, %v221, %v217
  %v223 = vmul.f32 %v198, %v222
  %v224 = vmin.f32 %v223, 1.0
  %v225 = vmax.f32 %v224, -1.0
  %v226 = vadd.f32 %v225, 1.0
  %v227 = vmul.f32 %v184, %v226
  %v228 = vpack.c.bf16 %v227, %v227
  %v229 = vld [vmem:[%s8] sm:$0xf]
  %v230 = vld [vmem:[%s8 + $0x4] sm:$0xf]
  %v231 = vld [vmem:[%s8 + $0x8] sm:$0xf]
  %v232 = vld [vmem:[%s8 + $0xc] sm:$0xf]
  %v233 = vld [vmem:[%s8 + $0x10] sm:$0xf]
  %v234 = vld [vmem:[%s8 + $0x14] sm:$0xf]
  %v235 = vld [vmem:[%s8 + $0x18] sm:$0xf]
  %v236 = vld [vmem:[%s8 + $0x1c] sm:$0xf]
  %v237 = vld [vmem:[%s8 + $0x20] sm:$0xf]
  %v238 = vld [vmem:[%s8 + $0x24] sm:$0xf]
  %v239 = vld [vmem:[%s8 + $0x28] sm:$0xf]
  %v240 = vld [vmem:[%s8 + $0x2c] sm:$0xf]
  %v241 = vld [vmem:[%s8 + $0x30] sm:$0xf]
  %v242 = vld [vmem:[%s8 + $0x34] sm:$0xf]
  %v243 = vld [vmem:[%s8 + $0x38] sm:$0xf]
  %v244 = vld [vmem:[%s8 + $0x3c] sm:$0xf]
  %v245 = vld [vmem:[%s9] sm:$0x1]
  %v247 = vperm.slane %v245, 0
  %v265 = vunpack.c.l.b16 %v229
  %v266 = vunpack.c.l.b16 %v230
  %v267 = vunpack.c.l.b16 %v231
  %v268 = vunpack.c.l.b16 %v232
  %v269 = vunpack.c.l.b16 %v233
  %v270 = vunpack.c.l.b16 %v234
  %v271 = vunpack.c.l.b16 %v235
  %v272 = vunpack.c.l.b16 %v236
  %v273 = vunpack.c.l.b16 %v237
  %v274 = vunpack.c.l.b16 %v238
  %v275 = vunpack.c.l.b16 %v239
  %v276 = vunpack.c.l.b16 %v240
  %v277 = vunpack.c.l.b16 %v241
  %v278 = vunpack.c.l.b16 %v242
  %v279 = vunpack.c.l.b16 %v243
  %v280 = vunpack.c.l.b16 %v244
  %v281 = vpack.c.b16 %v266, %v265
  %v282 = vpack.c.b16 %v268, %v267
  %v283 = vpack.c.b16 %v270, %v269
  %v284 = vpack.c.b16 %v272, %v271
  %v285 = vpack.c.b16 %v274, %v273
  %v286 = vpack.c.b16 %v276, %v275
  %v287 = vpack.c.b16 %v278, %v277
  %v288 = vpack.c.b16 %v280, %v279
  %297 = vmatpush.bf16.msra.mxu0 %v288
  %298 = vmatpush.bf16.msra.mxu0 %v287
  %299 = vmatpush.bf16.msra.mxu0 %v286
  %300 = vmatpush.bf16.msra.mxu0 %v285
  %301 = vmatpush.bf16.msra.mxu0 %v284
  %302 = vmatpush.bf16.msra.mxu0 %v283
  %303 = vmatpush.bf16.msra.mxu0 %v282
  %304 = vmatpush.bf16.msra.mxu0 %v281
  %305 = vmatmul.bf16.gmra.mxu0 %v228
  %v306 = vpop.f32.mrf.mxu0
  %v307 = vadd.f32 %v247, %v306
  %v308 = vpop.f32.mrf.mxu0
  %309 = vdwg.mxu0
  %v310 = vadd.f32 %v91, %v307
  %311 = vst.msk [vmem:[%s10] sm:$0xff] %vm73, %v310
  // Predicated region
  $region42: #{swin_encoder_forward.24} parent=0 // pred_check
    _
  $region43: #{swin_encoder_forward.24} parent=0 // pred_check_branch
    %313 = sbr.rel (0) target = $region45
  $region44: #{swin_encoder_forward.24} parent=0 // pred_region
    _
  $region45: #{swin_encoder_forward.24} parent=0 // pred_fallthru
    _
  // Predicated region
  $region46: #{swin_encoder_forward.24} parent=0 // pred_check
    _
  $region47: #{swin_encoder_forward.24} parent=0 // pred_check_branch
    %315 = sbr.rel (0) target = $region49
  $region48: #{swin_encoder_forward.24} parent=0 // pred_region
    _
  $region49: #{swin_encoder_forward.24} parent=0 // pred_fallthru
    _

// kernel: swin_encoder_forward.23
$region0: #{swin_encoder_forward.23}
  #allocation0 [shape = 'u32[]', space=smem, size = 0x4, offset = 0x4, fixed_abs, tag = 'smem constant byte address 0x4 - core index']
  #allocation1 [shape = 'u32[72,128]{1,0:T(1,128)}', space=vmem, size = 0x9000, scoped, tag = 'internal scratch']
  %s0 = inlined_call_operand.vmem [shape: bf16[2,1,4,192], index: 0, kind: input, shape index: {}]
  %s1 = inlined_call_operand.vmem [shape: bf16[4,1,4,4], index: 1, kind: input, shape index: {}]
  %s2 = inlined_call_operand.vmem [shape: bf16[2,1,4,64], index: 2, kind: output, shape index: {}]
  %s3 = sld [smem:[#allocation0]]
  $region41: #{swin_encoder_forward.23} parent=0
    _
  %s5 = ssub.s32 1, %s3
  %s6 = scalar_select 0, %s5, %s3
  loop: start=0, step=1, limit=4
  $region2: #{swin_encoder_forward.23} parent=0 // loop_pre_header
    _
  $region3: #{swin_encoder_forward.23} parent=0 // loop_header
    %s8 = sphi 0, %s12
    %p9 = scmp.ge.s32.totalorder %s8, 4
    %s18 = sphi 0, %s20
    %s21 = sphi 0, %s18
    %s22 = sphi 0, %s21
    %s38 = sphi 0, %s22
    %s42 = sphi 0, %s42
    %s44 = sphi 0, %s42
    %s45 = sphi 0, %s44
    %s59 = sphi 0, %s45
    %s65 = sphi 0, %s67
    %s68 = sphi 0, %s65
    %s69 = sphi 0, %s68
    %s85 = sphi 0, %s69
  $region4: #{swin_encoder_forward.23} parent=0 // loop_header_branch
    %11 = sbr.rel (%p9) target = $region8
  $region5: #{swin_encoder_forward.23} parent=0 // loop_body
    %s13 = ssub.s32 %s8, 1
    %s14 = ssub.s32 %s8, 2
    %s15 = sadd.s32 %s8, 1
    %s16 = ssub.s32 %s8, %s15
    %p17 = scmp.eq.s32.totalorder %s16, 0
    %s19 = sadd.s32 %s18, 1
    %s20 = scalar_select %p17, %s18, %s19
    %p23 = pneg %p17
    %p24 = scmp.eq.s32.totalorder %s8, 1
    %p25 = por %p23, %p24
    %p26 = scmp.ne.s32.totalorder %s18, %s21
    %p27 = scmp.eq.s32.totalorder %s8, 0
    %p28 = por %p26, %p27
    %p29 = scmp.ne.s32.totalorder %s18, %s21
    %p30 = scmp.eq.s32.totalorder %s13, 1
    %p31 = por %p29, %p30
    %p32 = scmp.ne.s32.totalorder %s21, %s22
    %p33 = scmp.eq.s32.totalorder %s13, 0
    %p34 = por %p32, %p33
    %p35 = scmp.ne.s32.totalorder %s21, %s22
    %p36 = scmp.eq.s32.totalorder %s14, 1
    %p37 = por %p35, %p36
    %p39 = scmp.ne.s32.totalorder %s22, %s38
    %p40 = scmp.eq.s32.totalorder %s14, 0
    %p41 = por %p39, %p40
    %s43 = sadd.s32 %s42, 1
    %p46 = scmp.eq.s32.totalorder %s8, 1
    %p47 = scmp.ne.s32.totalorder %s42, %s44
    %p48 = scmp.eq.s32.totalorder %s8, 0
    %p49 = por %p47, %p48
    %p50 = scmp.ne.s32.totalorder %s42, %s44
    %p51 = scmp.eq.s32.totalorder %s13, 1
    %p52 = por %p50, %p51
    %p53 = scmp.ne.s32.totalorder %s44, %s45
    %p54 = scmp.eq.s32.totalorder %s13, 0
    %p55 = por %p53, %p54
    %p56 = scmp.ne.s32.totalorder %s44, %s45
    %p57 = scmp.eq.s32.totalorder %s14, 1
    %p58 = por %p56, %p57
    %p60 = scmp.ne.s32.totalorder %s45, %s59
    %p61 = scmp.eq.s32.totalorder %s14, 0
    %p62 = por %p60, %p61
    %s63 = ssub.s32 %s8, %s15
    %p64 = scmp.eq.s32.totalorder %s63, 0
    %s66 = sadd.s32 %s65, 1
    %s67 = scalar_select %p64, %s65, %s66
    %p70 = pneg %p64
    %p71 = scmp.eq.s32.totalorder %s8, 1
    %p72 = por %p70, %p71
    %p73 = scmp.ne.s32.totalorder %s65, %s68
    %p74 = scmp.eq.s32.totalorder %s8, 0
    %p75 = por %p73, %p74
    %p76 = scmp.ne.s32.totalorder %s65, %s68
    %p77 = scmp.eq.s32.totalorder %s13, 1
    %p78 = por %p76, %p77
    %p79 = scmp.ne.s32.totalorder %s68, %s69
    %p80 = scmp.eq.s32.totalorder %s13, 0
    %p81 = por %p79, %p80
    %p82 = scmp.ne.s32.totalorder %s68, %s69
    %p83 = scmp.eq.s32.totalorder %s14, 1
    %p84 = por %p82, %p83
    %p86 = scmp.ne.s32.totalorder %s69, %s85
    %p87 = scmp.eq.s32.totalorder %s14, 0
    %p88 = por %p86, %p87
    %p89 = scmp.le.s32.totalorder 1, %s8
    %p90 = scmp.lt.s32.totalorder %s8, 3
    %p91 = pnand %p89, %p90
    %p92 = pneg %p91
    // Predicated region
    $region9: #{swin_encoder_forward.23} parent=5 // pred_check
      _
    $region10: #{swin_encoder_forward.23} parent=5 // pred_check_branch
      %94 = sbr.rel (%p91) target = $region12
    $region11: #{swin_encoder_forward.23} parent=5 // pred_region
      %s95 = ssub.s32 %s8, 1
      // Predicated region
      $region13: #{swin_encoder_forward.23} parent=11 // pred_check
        %p96 = pneg %p55
      $region14: #{swin_encoder_forward.23} parent=11 // pred_check_branch
        %98 = sbr.rel (%p96) target = $region16
      $region15: #{swin_encoder_forward.23} parent=11 // pred_region
        _
      $region16: #{swin_encoder_forward.23} parent=11 // pred_fallthru
        _
    $region12: #{swin_encoder_forward.23} parent=5 // pred_fallthru
      _
    %p99 = scmp.lt.s32.totalorder %s8, 2
    // Predicated region
    $region17: #{swin_encoder_forward.23} parent=5 // pred_check
      %p100 = pneg %p99
    $region18: #{swin_encoder_forward.23} parent=5 // pred_check_branch
      %102 = sbr.rel (%p100) target = $region20
    $region19: #{swin_encoder_forward.23} parent=5 // pred_region
      // Predicated region
      $region21: #{swin_encoder_forward.23} parent=19 // pred_check
        %p103 = pneg %p28
      $region22: #{swin_encoder_forward.23} parent=19 // pred_check_branch
        %105 = sbr.rel (%p103) target = $region24
      $region23: #{swin_encoder_forward.23} parent=19 // pred_region
        %p106 = scmp.lt.s32.totalorder %s8, 1
        %s107 = scalar_select %p106, %s8, 1
        %s108 = smul.addr %s107, 2
        %s109 = smul.addr %s108, 2
        %s110 = scalar_lea.vmem %s0, %s109
      $region24: #{swin_encoder_forward.23} parent=19 // pred_fallthru
        _
    $region20: #{swin_encoder_forward.23} parent=5 // pred_fallthru
      _
    %p111 = scmp.le.s32.totalorder 1, %s8
    %p112 = scmp.lt.s32.totalorder %s8, 3
    %p113 = pnand %p111, %p112
    %p114 = pneg %p113
    // Predicated region
    $region25: #{swin_encoder_forward.23} parent=5 // pred_check
      _
    $region26: #{swin_encoder_forward.23} parent=5 // pred_check_branch
      %116 = sbr.rel (%p113) target = $region28
    $region27: #{swin_encoder_forward.23} parent=5 // pred_region
      %s117 = ssub.s32 %s8, 1
      %p118 = scmp.lt.s32.totalorder %s13, 1
      %s119 = scalar_select %p118, %s13, 1
      %s120 = smul.addr %s119, 2
      %s121 = smul.addr %s120, 2
      %s122 = scalar_lea.vmem %s0, %s121
      %p123 = pneg %p34
      %p124 = pneg %p31
      %p125 = pneg %p55
      %p126 = pneg %p52
      %p127 = pneg %p81
      %p128 = pneg %p78
      %p129 = scmp.lt.s32.totalorder %s13, 1
      %s130 = scalar_select %p129, %s13, 1
      %s131 = smul.addr %s130, 2
      %s132 = scalar_lea.vmem %s2, %s131
      %p133 = scmp.lt.s32.totalorder %s13, 1
      %s134 = scalar_select %p133, %s13, 1
      %s135 = smul.addr %s134, 2
      %s136 = smul.addr %s135, 2
      %s137 = scalar_lea.vmem %s0, %s136
      %p138 = scmp.lt.s32.totalorder %s13, 1
      %s139 = scalar_select %p138, %s13, 1
      %s140 = smul.addr %s139, 2
      %s141 = scalar_lea.vmem %s2, %s140
      %v143 = vld [vmem:[%s137] sm:$0xf]
      %v144 = vld [vmem:[%s1] sm:$0x3]
      %v145 = vunpack.c.l.bf16 %v144
      %147 = vst [vmem:[#allocation1] ss:$4 sm:$0xff] %v143
      %v148 = vld.sshfl [vmem:[#allocation1] sm:$0xff pattern:$0x73625140]
      %150 = vrot.lane.b32.xlu0 %v148, 64
      %v151 = vpop.permute.xlu0 %150
      %vm152 = vcmask 130048
      %v153 = vsel %vm152, %v143, 0
      %v156 = vsel %vm152, %v151, 0
      %158 = vmatpush.bf16.xpose.msra.mxu0 0
      %159 = vmatpush.bf16.xpose.msra.mxu0 0
      %160 = vmatpush.bf16.xpose.msra.mxu0 0
      %161 = vmatpush.bf16.xpose.msra.mxu0 0
      %162 = vmatpush.bf16.xpose.msra.mxu0 0
      %163 = vmatpush.bf16.xpose.msra.mxu0 0
      %164 = vmatpush.bf16.xpose.msra.mxu0 0
      %165 = vmatpush.bf16.xpose.msra.mxu0 %v156
      %166 = vmatmul.bf16.gmra.mxu0 %v153
      %v167 = vpop.f32.mrf.mxu0
      %v168 = vadd.f32 %v145, %v167
      %v169 = vpop.f32.mrf.mxu0
      %170 = vdwg.mxu0
      %vm171 = vcmask 27648
      %v172 = vsel %vm171, %v168, -inf
      %173 = vmax.xlane.f32.xlu0 %v172
      %v174 = vpop.xlane.xlu0 %173
      %v175 = vsub.f32 %v168, %v174
      %v176 = vmul.f32 %v175, 1.442695
      %v177 = vpow.pop %v176
      %v178 = vsel %vm171, %v177, 0.0
      %179 = vadd.xlane.f32.xlu0 %v178
      %v180 = vpop.xlane.xlu0 %179
      %v181 = vrcp.pop %v180
      %v182 = vmul.f32 %v177, %v181
      %v183 = vpack.c.bf16 %v182, %v182
      %v185 = vrot.slane %v143, 2
      %vm186 = vcmask 31744
      %v188 = vsel %vm186, %v183, 0
      %vm190 = vcmask 1041408
      %v192 = vsel %vm190, %v185, 0
      %194 = vmatpush.bf16.msra.mxu0 0
      %195 = vmatpush.bf16.msra.mxu0 0
      %196 = vmatpush.bf16.msra.mxu0 0
      %197 = vmatpush.bf16.msra.mxu0 0
      %198 = vmatpush.bf16.msra.mxu0 0
      %199 = vmatpush.bf16.msra.mxu0 0
      %200 = vmatpush.bf16.msra.mxu0 0
      %201 = vmatpush.bf16.msra.mxu0 %v192
      %202 = vmatmul.bf16.gmra.mxu0 %v188
      %v203 = vpop.f32.mrf.mxu0
      %v204 = vadd.f32 0.0, %v203
      %v205 = vpop.f32.mrf.mxu0
      %206 = vdwg.mxu0
      %s207 = scalar_lea.vmem %s1, 2
      %v208 = vld [vmem:[%s207] sm:$0x3]
      %v209 = vunpack.c.l.bf16 %v208
      %210 = vst [vmem:[#allocation1] ss:$4 sm:$0xff] %v143
      %v211 = vld.sshfl [vmem:[#allocation1] sm:$0xff pattern:$0x73625140]
      %213 = vrot.lane.b32.xlu0 %v211, 112
      %v214 = vpop.permute.xlu0 %213
      %215 = vst [vmem:[#allocation1] ss:$4 sm:$0xff] %v143
      %v216 = vld.sshfl [vmem:[#allocation1] sm:$0xff pattern:$0x73625140]
      %218 = vrot.lane.b32.xlu0 %v216, 48
      %v219 = vpop.permute.xlu0 %218
      %v221 = vsel %vm152, %v214, 0
      %v224 = vsel %vm152, %v219, 0
      %226 = vmatpush.bf16.xpose.msra.mxu0 0
      %227 = vmatpush.bf16.xpose.msra.mxu0 0
      %228 = vmatpush.bf16.xpose.msra.mxu0 0
      %229 = vmatpush.bf16.xpose.msra.mxu0 0
      %230 = vmatpush.bf16.xpose.msra.mxu0 0
      %231 = vmatpush.bf16.xpose.msra.mxu0 0
      %232 = vmatpush.bf16.xpose.msra.mxu0 0
      %233 = vmatpush.bf16.xpose.msra.mxu0 %v224
      %234 = vmatmul.bf16.gmra.mxu0 %v221
      %v235 = vpop.f32.mrf.mxu0
      %v236 = vadd.f32 %v209, %v235
      %v237 = vpop.f32.mrf.mxu0
      %238 = vdwg.mxu0
      %v239 = vsel %vm171, %v236, -inf
      %240 = vmax.xlane.f32.xlu0 %v239
      %v241 = vpop.xlane.xlu0 %240
      %v242 = vsub.f32 %v236, %v241
      %v243 = vmul.f32 %v242, 1.442695
      %v244 = vpow.pop %v243
      %v245 = vsel %vm171, %v244, 0.0
      %246 = vadd.xlane.f32.xlu0 %v245
      %v247 = vpop.xlane.xlu0 %246
      %v248 = vrcp.pop %v247
      %v249 = vmul.f32 %v244, %v248
      %v250 = vpack.c.bf16 %v249, %v249
      %251 = vrot.lane.b32.xlu0 %v143, 112
      %v252 = vpop.permute.xlu0 %251
      %v253 = vrot.slane %v252, 2
      %v255 = vsel %vm186, %v250, 0
      %v258 = vsel %vm190, %v253, 0
      %260 = vmatpush.bf16.msra.mxu0 0
      %261 = vmatpush.bf16.msra.mxu0 0
      %262 = vmatpush.bf16.msra.mxu0 0
      %263 = vmatpush.bf16.msra.mxu0 0
      %264 = vmatpush.bf16.msra.mxu0 0
      %265 = vmatpush.bf16.msra.mxu0 0
      %266 = vmatpush.bf16.msra.mxu0 0
      %267 = vmatpush.bf16.msra.mxu0 %v258
      %268 = vmatmul.bf16.gmra.mxu0 %v255
      %v269 = vpop.f32.mrf.mxu0
      %v270 = vadd.f32 0.0, %v269
      %v271 = vpop.f32.mrf.mxu0
      %272 = vdwg.mxu0
      %s273 = scalar_lea.vmem %s1, 4
      %v274 = vld [vmem:[%s273] sm:$0x3]
      %v275 = vunpack.c.l.bf16 %v274
      %276 = vst [vmem:[#allocation1] ss:$4 sm:$0xff] %v143
      %v277 = vld.sshfl [vmem:[#allocation1] sm:$0xff pattern:$0x73625140]
      %279 = vrot.lane.b32.xlu0 %v277, 96
      %v280 = vpop.permute.xlu0 %279
      %281 = vst [vmem:[#allocation1] ss:$4 sm:$0xff] %v143
      %v282 = vld.sshfl [vmem:[#allocation1] sm:$0xff pattern:$0x73625140]
      %284 = vrot.lane.b32.xlu0 %v282, 32
      %v285 = vpop.permute.xlu0 %284
      %v287 = vsel %vm152, %v280, 0
      %v290 = vsel %vm152, %v285, 0
      %292 = vmatpush.bf16.xpose.msra.mxu0 0
      %293 = vmatpush.bf16.xpose.msra.mxu0 0
      %294 = vmatpush.bf16.xpose.msra.mxu0 0
      %295 = vmatpush.bf16.xpose.msra.mxu0 0
      %296 = vmatpush.bf16.xpose.msra.mxu0 0
      %297 = vmatpush.bf16.xpose.msra.mxu0 0
      %298 = vmatpush.bf16.xpose.msra.mxu0 0
      %299 = vmatpush.bf16.xpose.msra.mxu0 %v290
      %300 = vmatmul.bf16.gmra.mxu0 %v287
      %v301 = vpop.f32.mrf.mxu0
      %v302 = vadd.f32 %v275, %v301
      %v303 = vpop.f32.mrf.mxu0
      %304 = vdwg.mxu0
      %v305 = vsel %vm171, %v302, -inf
      %306 = vmax.xlane.f32.xlu0 %v305
      %v307 = vpop.xlane.xlu0 %306
      %v308 = vsub.f32 %v302, %v307
      %v309 = vmul.f32 %v308, 1.442695
      %v310 = vpow.pop %v309
      %v311 = vsel %vm171, %v310, 0.0
      %312 = vadd.xlane.f32.xlu0 %v311
      %v313 = vpop.xlane.xlu0 %312
      %v314 = vrcp.pop %v313
      %v315 = vmul.f32 %v310, %v314
      %v316 = vpack.c.bf16 %v315, %v315
      %317 = vrot.lane.b32.xlu0 %v143, 96
      %v318 = vpop.permute.xlu0 %317
      %v319 = vrot.slane %v318, 2
      %v321 = vsel %vm186, %v316, 0
      %v324 = vsel %vm190, %v319, 0
      %326 = vmatpush.bf16.msra.mxu0 0
      %327 = vmatpush.bf16.msra.mxu0 0
      %328 = vmatpush.bf16.msra.mxu0 0
      %329 = vmatpush.bf16.msra.mxu0 0
      %330 = vmatpush.bf16.msra.mxu0 0
      %331 = vmatpush.bf16.msra.mxu0 0
      %332 = vmatpush.bf16.msra.mxu0 0
      %333 = vmatpush.bf16.msra.mxu0 %v324
      %334 = vmatmul.bf16.gmra.mxu0 %v321
      %v335 = vpop.f32.mrf.mxu0
      %v336 = vadd.f32 0.0, %v335
      %v337 = vpop.f32.mrf.mxu0
      %338 = vdwg.mxu0
      %s339 = scalar_lea.vmem %s1, 6
      %v340 = vld [vmem:[%s339] sm:$0x3]
      %v341 = vunpack.c.l.bf16 %v340
      %342 = vst [vmem:[#allocation1] ss:$4 sm:$0xff] %v143
      %v343 = vld.sshfl [vmem:[#allocation1] sm:$0xff pattern:$0x73625140]
      %345 = vrot.lane.b32.xlu0 %v343, 80
      %v346 = vpop.permute.xlu0 %345
      %347 = vst [vmem:[#allocation1] ss:$4 sm:$0xff] %v143
      %v348 = vld.sshfl [vmem:[#allocation1] sm:$0xff pattern:$0x73625140]
      %350 = vrot.lane.b32.xlu0 %v348, 16
      %v351 = vpop.permute.xlu0 %350
      %v353 = vsel %vm152, %v346, 0
      %v356 = vsel %vm152, %v351, 0
      %358 = vmatpush.bf16.xpose.msra.mxu0 0
      %359 = vmatpush.bf16.xpose.msra.mxu0 0
      %360 = vmatpush.bf16.xpose.msra.mxu0 0
      %361 = vmatpush.bf16.xpose.msra.mxu0 0
      %362 = vmatpush.bf16.xpose.msra.mxu0 0
      %363 = vmatpush.bf16.xpose.msra.mxu0 0
      %364 = vmatpush.bf16.xpose.msra.mxu0 0
      %365 = vmatpush.bf16.xpose.msra.mxu0 %v356
      %366 = vmatmul.bf16.gmra.mxu0 %v353
      %v367 = vpop.f32.mrf.mxu0
      %v368 = vadd.f32 %v341, %v367
      %v369 = vpop.f32.mrf.mxu0
      %370 = vdwg.mxu0
      %v371 = vsel %vm171, %v368, -inf
      %372 = vmax.xlane.f32.xlu0 %v371
      %v373 = vpop.xlane.xlu0 %372
      %v374 = vsub.f32 %v368, %v373
      %v375 = vmul.f32 %v374, 1.442695
      %v376 = vpow.pop %v375
      %v377 = vsel %vm171, %v376, 0.0
      %378 = vadd.xlane.f32.xlu0 %v377
      %v379 = vpop.xlane.xlu0 %378
      %v380 = vrcp.pop %v379
      %v381 = vmul.f32 %v376, %v380
      %v382 = vpack.c.bf16 %v381, %v381
      %383 = vrot.lane.b32.xlu0 %v143, 80
      %v384 = vpop.permute.xlu0 %383
      %v385 = vrot.slane %v384, 2
      %v387 = vsel %vm186, %v382, 0
      %v390 = vsel %vm190, %v385, 0
      %392 = vmatpush.bf16.msra.mxu0 0
      %393 = vmatpush.bf16.msra.mxu0 0
      %394 = vmatpush.bf16.msra.mxu0 0
      %395 = vmatpush.bf16.msra.mxu0 0
      %396 = vmatpush.bf16.msra.mxu0 0
      %397 = vmatpush.bf16.msra.mxu0 0
      %398 = vmatpush.bf16.msra.mxu0 0
      %399 = vmatpush.bf16.msra.mxu0 %v390
      %400 = vmatmul.bf16.gmra.mxu0 %v387
      %v401 = vpop.f32.mrf.mxu0
      %v402 = vadd.f32 0.0, %v401
      %v403 = vpop.f32.mrf.mxu0
      %404 = vdwg.mxu0
      %406 = vrot.lane.b32.xlu0 %v270, 16
      %v407 = vpop.permute.xlu0 %406
      %410 = vrot.lane.b32.xlu0 %v336, 32
      %v411 = vpop.permute.xlu0 %410
      %414 = vrot.lane.b32.xlu0 %v402, 48
      %v415 = vpop.permute.xlu0 %414
      %v417 = vsel %vm152, %v204, %v407
      %vm418 = vcmask 261120
      %v419 = vsel %vm418, %v417, %v411
      %vm420 = vcmask 392192
      %v421 = vsel %vm420, %v419, %v415
      %v422 = vpack.c.bf16 %v421, %v421
      %vm423 = vcmask 517120
      %424 = vst.msk [vmem:[%s141] sm:$0x3] %vm423, %v422
      %p425 = scmp.lt.s32.totalorder %s13, 1
      %s426 = scalar_select %p425, %s13, 1
      %s427 = smul.addr %s426, 2
      %s428 = scalar_lea.vmem %s2, %s427
      // Predicated region
      $region29: #{swin_encoder_forward.23} parent=27 // pred_check
        %p429 = pneg %p78
      $region30: #{swin_encoder_forward.23} parent=27 // pred_check_branch
        %431 = sbr.rel (%p429) target = $region32
      $region31: #{swin_encoder_forward.23} parent=27 // pred_region
        _
      $region32: #{swin_encoder_forward.23} parent=27 // pred_fallthru
        _
    $region28: #{swin_encoder_forward.23} parent=5 // pred_fallthru
      _
    %p432 = scmp.le.s32.totalorder 2, %s8
    // Predicated region
    $region33: #{swin_encoder_forward.23} parent=5 // pred_check
      %p433 = pneg %p432
    $region34: #{swin_encoder_forward.23} parent=5 // pred_check_branch
      %435 = sbr.rel (%p433) target = $region36
    $region35: #{swin_encoder_forward.23} parent=5 // pred_region
      %s436 = ssub.s32 %s8, 2
      // Predicated region
      $region37: #{swin_encoder_forward.23} parent=35 // pred_check
        %p437 = pneg %p84
      $region38: #{swin_encoder_forward.23} parent=35 // pred_check_branch
        %439 = sbr.rel (%p437) target = $region40
      $region39: #{swin_encoder_forward.23} parent=35 // pred_region
        %p440 = scmp.lt.s32.totalorder %s14, 1
        %s441 = scalar_select %p440, %s14, 1
        %s442 = smul.addr %s441, 2
        %s443 = scalar_lea.vmem %s2, %s442
      $region40: #{swin_encoder_forward.23} parent=35 // pred_fallthru
        _
    $region36: #{swin_encoder_forward.23} parent=5 // pred_fallthru
      _
  $region6: #{swin_encoder_forward.23} parent=0 // loop_footer
    %s12 = sadd.s32 1, %s8
  $region7: #{swin_encoder_forward.23} parent=0 // loop_footer_branch
    %7 = sbr.rel target = $region3
  $region8: #{swin_encoder_forward.23} parent=0 // loop_exit
    _

// kernel: swin_encoder_forward.27
$region0: #{swin_encoder_forward.27}
  #allocation0 [shape = 'u32[]', space=smem, size = 0x4, offset = 0x4, fixed_abs, tag = 'smem constant byte address 0x4 - core index']
  #allocation1 [shape = 'u32[72,128]{1,0:T(1,128)}', space=vmem, size = 0x9000, scoped, tag = 'internal scratch']
  %s0 = inlined_call_operand.vmem [shape: f32[8,64], index: 0, kind: input, shape index: {}]
  %s1 = inlined_call_operand.vmem [shape: bf16[8,64], index: 1, kind: input, shape index: {}]
  %s2 = inlined_call_operand.vmem [shape: bf16[64,64], index: 2, kind: input, shape index: {}]
  %s3 = inlined_call_operand.vmem [shape: f32[1,64], index: 3, kind: input, shape index: {}, may-alias: {3,5,9}]
  %s4 = inlined_call_operand.vmem [shape: f32[1,64], index: 4, kind: input, shape index: {}]
  %s5 = inlined_call_operand.vmem [shape: f32[1,64], index: 5, kind: input, shape index: {}, may-alias: {3,5,9}]
  %s6 = inlined_call_operand.vmem [shape: bf16[64,128], index: 6, kind: input, shape index: {}]
  %s7 = inlined_call_operand.vmem [shape: f32[1,128], index: 7, kind: input, shape index: {}]
  %s8 = inlined_call_operand.vmem [shape: bf16[128,64], index: 8, kind: input, shape index: {}]
  %s9 = inlined_call_operand.vmem [shape: f32[1,64], index: 9, kind: input, shape index: {}, may-alias: {3,5,9}]
  %s10 = inlined_call_operand.hbm [shape: f32[8,64], index: 10, kind: output, shape index: {}]
  %s11 = sld [smem:[#allocation0]]
  $region50: #{swin_encoder_forward.27} parent=0
    _
  %s13 = ssub.s32 1, %s11
  %s14 = scalar_select 0, %s13, %s11
  $region1: #{swin_encoder_forward.27} parent=0
    #allocation2 [shape = 'u8[4096]{0}', space=vmem, size = 0x1000, scoped, tag = 'output window, operand 0, single buffered']
    #allocation3 [shape = 's32[1]{0}', space=sflag, size = 0x4, scoped, tag = 'scoped memory for swin_encoder_forward.27']
    %15 = vsyncpa [#allocation3], 0
    // Predicated region
    $region2: #{swin_encoder_forward.27} parent=1 // pred_check
      _
    $region3: #{swin_encoder_forward.27} parent=1 // pred_check_branch
      %17 = sbr.rel (0) target = $region5
    $region4: #{swin_encoder_forward.27} parent=1 // pred_region
      _
    $region5: #{swin_encoder_forward.27} parent=1 // pred_fallthru
      _
    // Predicated region
    $region6: #{swin_encoder_forward.27} parent=1 // pred_check
      _
    $region7: #{swin_encoder_forward.27} parent=1 // pred_check_branch
      %19 = sbr.rel (0) target = $region9
    $region8: #{swin_encoder_forward.27} parent=1 // pred_region
      _
    $region9: #{swin_encoder_forward.27} parent=1 // pred_fallthru
      _
    // Predicated region
    $region10: #{swin_encoder_forward.27} parent=1 // pred_check
      _
    $region11: #{swin_encoder_forward.27} parent=1 // pred_check_branch
      %21 = sbr.rel (0) target = $region13
    $region12: #{swin_encoder_forward.27} parent=1 // pred_region
      _
    $region13: #{swin_encoder_forward.27} parent=1 // pred_fallthru
      _
    // Predicated region
    $region14: #{swin_encoder_forward.27} parent=1 // pred_check
      _
    $region15: #{swin_encoder_forward.27} parent=1 // pred_check_branch
      %23 = sbr.rel (0) target = $region17
    $region16: #{swin_encoder_forward.27} parent=1 // pred_region
      _
    $region17: #{swin_encoder_forward.27} parent=1 // pred_fallthru
      _
    // Predicated region
    $region18: #{swin_encoder_forward.27} parent=1 // pred_check
      _
    $region19: #{swin_encoder_forward.27} parent=1 // pred_check_branch
      %25 = sbr.rel (0) target = $region21
    $region20: #{swin_encoder_forward.27} parent=1 // pred_region
      _
    $region21: #{swin_encoder_forward.27} parent=1 // pred_fallthru
      _
    // Predicated region
    $region22: #{swin_encoder_forward.27} parent=1 // pred_check
      _
    $region23: #{swin_encoder_forward.27} parent=1 // pred_check_branch
      %27 = sbr.rel (0) target = $region25
    $region24: #{swin_encoder_forward.27} parent=1 // pred_region
      _
    $region25: #{swin_encoder_forward.27} parent=1 // pred_fallthru
      _
    // Predicated region
    $region26: #{swin_encoder_forward.27} parent=1 // pred_check
      _
    $region27: #{swin_encoder_forward.27} parent=1 // pred_check_branch
      %29 = sbr.rel (0) target = $region29
    $region28: #{swin_encoder_forward.27} parent=1 // pred_region
      _
    $region29: #{swin_encoder_forward.27} parent=1 // pred_fallthru
      _
    // Predicated region
    $region30: #{swin_encoder_forward.27} parent=1 // pred_check
      _
    $region31: #{swin_encoder_forward.27} parent=1 // pred_check_branch
      %31 = sbr.rel (0) target = $region33
    $region32: #{swin_encoder_forward.27} parent=1 // pred_region
      _
    $region33: #{swin_encoder_forward.27} parent=1 // pred_fallthru
      _
    // Predicated region
    $region34: #{swin_encoder_forward.27} parent=1 // pred_check
      _
    $region35: #{swin_encoder_forward.27} parent=1 // pred_check_branch
      %33 = sbr.rel (0) target = $region37
    $region36: #{swin_encoder_forward.27} parent=1 // pred_region
      _
    $region37: #{swin_encoder_forward.27} parent=1 // pred_fallthru
      _
    // Predicated region
    $region38: #{swin_encoder_forward.27} parent=1 // pred_check
      _
    $region39: #{swin_encoder_forward.27} parent=1 // pred_check_branch
      %35 = sbr.rel (0) target = $region41
    $region40: #{swin_encoder_forward.27} parent=1 // pred_region
      _
    $region41: #{swin_encoder_forward.27} parent=1 // pred_fallthru
      _
    %v37 = vld [vmem:[%s1] sm:$0xf]
    %v38 = vld [vmem:[%s2] sm:$0xf]
    %v39 = vld [vmem:[%s2 + $0x4] sm:$0xf]
    %v40 = vld [vmem:[%s2 + $0x8] sm:$0xf]
    %v41 = vld [vmem:[%s2 + $0xc] sm:$0xf]
    %v42 = vld [vmem:[%s2 + $0x10] sm:$0xf]
    %v43 = vld [vmem:[%s2 + $0x14] sm:$0xf]
    %v44 = vld [vmem:[%s2 + $0x18] sm:$0xf]
    %v45 = vld [vmem:[%s2 + $0x1c] sm:$0xf]
    %v46 = vld [vmem:[%s3] sm:$0x1]
    %v48 = vperm.slane %v46, 0
    %v58 = vunpack.c.l.b16 %v38
    %v59 = vunpack.c.l.b16 %v39
    %v60 = vunpack.c.l.b16 %v40
    %v61 = vunpack.c.l.b16 %v41
    %v62 = vunpack.c.l.b16 %v42
    %v63 = vunpack.c.l.b16 %v43
    %v64 = vunpack.c.l.b16 %v44
    %v65 = vunpack.c.l.b16 %v45
    %v66 = vpack.c.b16 %v59, %v58
    %v67 = vpack.c.b16 %v61, %v60
    %v68 = vpack.c.b16 %v63, %v62
    %v69 = vpack.c.b16 %v65, %v64
    %vm74 = vcmask 523264
    %v76 = vsel %vm74, %v37, 0
    %78 = vmatpush.bf16.msra.mxu0 0
    %79 = vmatpush.bf16.msra.mxu0 0
    %80 = vmatpush.bf16.msra.mxu0 0
    %81 = vmatpush.bf16.msra.mxu0 0
    %82 = vmatpush.bf16.msra.mxu0 %v69
    %83 = vmatpush.bf16.msra.mxu0 %v68
    %84 = vmatpush.bf16.msra.mxu0 %v67
    %85 = vmatpush.bf16.msra.mxu0 %v66
    %86 = vmatmul.bf16.gmra.mxu0 %v76
    %v87 = vpop.f32.mrf.mxu0
    %v88 = vadd.f32 %v48, %v87
    %v89 = vpop.f32.mrf.mxu0
    %90 = vdwg.mxu0
    %v91 = vld [vmem:[%s0] sm:$0xff]
    %v92 = vadd.f32 %v91, %v88
    %v93 = vsel %vm74, %v92, 0.0
    %94 = vadd.xlane.f32.xlu0 %v93
    %v95 = vpop.xlane.xlu0 %94
    %v96 = vrcp.pop 64.0
    %v97 = vmul.f32 64.0, %v96
    %v98 = vsub.f32 1.0, %v97
    %v99 = vmul.f32 %v96, %v98
    %v100 = vadd.f32 %v96, %v99
    %vm101 = vweird.f32 %v96
    %v102 = vsel %vm101, %v96, %v100
    %v103 = vmul.f32 %v95, %v102
    %v104 = vsub.f32 %v92, %v103
    %v105 = vmul.f32 %v104, %v104
    %v106 = vsel %vm74, %v105, 0.0
    %107 = vadd.xlane.f32.xlu0 %v106
    %v108 = vpop.xlane.xlu0 %107
    %v109 = vmul.f32 %v108, %v102
    %v110 = vadd.f32 %v109, 1e-05
    %v111 = vrsqrt.pop %v110
    %v112 = vmul.f32 %v111, %v110
    %v113 = vmul.f32 %v112, %v111
    %v114 = vmul.f32 0.5, %v113
    %v115 = vsub.f32 1.5, %v114
    %v116 = vmul.f32 %v111, %v115
    %vm117 = vweird.f32 %v110
    %vm118 = vweird.f32 %v111
    %vm119 = vmor %vm117, %vm118
    %v120 = vsel %vm119, %v111, %v116
    %v121 = vmul.f32 %v104, %v120
    %v122 = vld [vmem:[%s4] sm:$0x1]
    %v124 = vperm.slane %v122, 0
    %v126 = vmul.f32 %v121, %v124
    %v127 = vld [vmem:[%s5] sm:$0x1]
    %v129 = vperm.slane %v127, 0
    %v131 = vadd.f32 %v126, %v129
    %v132 = vpack.c.bf16 %v131, %v131
    %v133 = vld [vmem:[%s6] sm:$0xf]
    %v134 = vld [vmem:[%s6 + $0x4] sm:$0xf]
    %v135 = vld [vmem:[%s6 + $0x8] sm:$0xf]
    %v136 = vld [vmem:[%s6 + $0xc] sm:$0xf]
    %v137 = vld [vmem:[%s6 + $0x10] sm:$0xf]
    %v138 = vld [vmem:[%s6 + $0x14] sm:$0xf]
    %v139 = vld [vmem:[%s6 + $0x18] sm:$0xf]
    %v140 = vld [vmem:[%s6 + $0x1c] sm:$0xf]
    %v141 = vld [vmem:[%s7] sm:$0x1]
    %v143 = vperm.slane %v141, 0
    %v153 = vunpack.c.l.b16 %v133
    %v154 = vunpack.c.l.b16 %v134
    %v155 = vunpack.c.l.b16 %v135
    %v156 = vunpack.c.l.b16 %v136
    %v157 = vunpack.c.l.b16 %v137
    %v158 = vunpack.c.l.b16 %v138
    %v159 = vunpack.c.l.b16 %v139
    %v160 = vunpack.c.l.b16 %v140
    %v161 = vpack.c.b16 %v154, %v153
    %v162 = vpack.c.b16 %v156, %v155
    %v163 = vpack.c.b16 %v158, %v157
    %v164 = vpack.c.b16 %v160, %v159
    %v170 = vsel %vm74, %v132, 0
    %172 = vmatpush.bf16.msra.mxu0 0
    %173 = vmatpush.bf16.msra.mxu0 0
    %174 = vmatpush.bf16.msra.mxu0 0
    %175 = vmatpush.bf16.msra.mxu0 0
    %176 = vmatpush.bf16.msra.mxu0 %v164
    %177 = vmatpush.bf16.msra.mxu0 %v163
    %178 = vmatpush.bf16.msra.mxu0 %v162
    %179 = vmatpush.bf16.msra.mxu0 %v161
    %180 = vmatmul.bf16.gmra.mxu0 %v170
    %v181 = vpop.f32.mrf.mxu0
    %v182 = vadd.f32 %v143, %v181
    %v183 = vpop.f32.mrf.mxu0
    %184 = vdwg.mxu0
    %v185 = vmul.f32 %v182, 0.5
    %v186 = vmul.f32 %v182, 0.70710677
    %v187 = vmul.f32 %v186, %v186
    %v188 = vmin.f32 16.0, %v187
    %v189 = vmul.f32 %v188, 2.1237322e-06
    %v190 = vadd.f32 %v189, 0.00028619796
    %v191 = vmul.f32 %v188, %v190
    %v192 = vadd.f32 %v191, 0.0036580483
    %v193 = vmul.f32 %v188, %v192
    %v194 = vadd.f32 %v193, 0.05243302
    %v195 = vmul.f32 %v188, %v194
    %v196 = vadd.f32 %v195, 0.18741608
    %v197 = vmul.f32 %v188, %v196
    %v198 = vadd.f32 %v197, 1.1283791
    %v199 = vmul.f32 %v186, %v198
    %v200 = vmul.f32 %v188, 3.8918573e-05
    %v201 = vadd.f32 %v200, 0.001143296
    %v202 = vmul.f32 %v188, %v201
    %v203 = vadd.f32 %v202, 0.014752088
    %v204 = vmul.f32 %v188, %v203
    %v205 = vadd.f32 %v204, 0.112945676
    %v206 = vmul.f32 %v188, %v205
    %v207 = vadd.f32 %v206, 0.4994258
    %v208 = vmul.f32 %v188, %v207
    %v209 = vadd.f32 %v208, 1.0
    %v210 = vrcp.pop %v209
    %v211 = vmul.f32 %v209, %v210
    %v212 = vsub.f32 1.0, %v211
    %v213 = vmul.f32 %v210, %v212
    %v214 = vadd.f32 %v210, %v213
    %vm215 = vweird.f32 %v209
    %vm216 = vweird.f32 %v210
    %vm217 = vmor %vm215, %vm216
    %v218 = vsel %vm217, %v210, %v214
    %v219 = vand.u32 2147483647, %v209
    %vm220 = vcmp.eq.f32.partialorder %v219, 8.507059e+37
    %v221 = vand.u32 %v209, 2147483648
    %v222 = vor.u32 1.1754944e-38, %v221
    %v223 = vsel %vm220, %v222, %v218
    %v224 = vmul.f32 %v199, %v223
    %v225 = vmin.f32 %v224, 1.0
    %v226 = vmax.f32 %v225, -1.0
    %v227 = vadd.f32 %v226, 1.0
    %v228 = vmul.f32 %v185, %v227
    %v229 = vpack.c.bf16 %v228, %v228
    %v230 = vld [vmem:[%s8] sm:$0xf]
    %v231 = vld [vmem:[%s8 + $0x4] sm:$0xf]
    %v232 = vld [vmem:[%s8 + $0x8] sm:$0xf]
    %v233 = vld [vmem:[%s8 + $0xc] sm:$0xf]
    %v234 = vld [vmem:[%s8 + $0x10] sm:$0xf]
    %v235 = vld [vmem:[%s8 + $0x14] sm:$0xf]
    %v236 = vld [vmem:[%s8 + $0x18] sm:$0xf]
    %v237 = vld [vmem:[%s8 + $0x1c] sm:$0xf]
    %v238 = vld [vmem:[%s8 + $0x20] sm:$0xf]
    %v239 = vld [vmem:[%s8 + $0x24] sm:$0xf]
    %v240 = vld [vmem:[%s8 + $0x28] sm:$0xf]
    %v241 = vld [vmem:[%s8 + $0x2c] sm:$0xf]
    %v242 = vld [vmem:[%s8 + $0x30] sm:$0xf]
    %v243 = vld [vmem:[%s8 + $0x34] sm:$0xf]
    %v244 = vld [vmem:[%s8 + $0x38] sm:$0xf]
    %v245 = vld [vmem:[%s8 + $0x3c] sm:$0xf]
    %v246 = vld [vmem:[%s9] sm:$0x1]
    %v248 = vperm.slane %v246, 0
    %v266 = vunpack.c.l.b16 %v230
    %v267 = vunpack.c.l.b16 %v231
    %v268 = vunpack.c.l.b16 %v232
    %v269 = vunpack.c.l.b16 %v233
    %v270 = vunpack.c.l.b16 %v234
    %v271 = vunpack.c.l.b16 %v235
    %v272 = vunpack.c.l.b16 %v236
    %v273 = vunpack.c.l.b16 %v237
    %v274 = vunpack.c.l.b16 %v238
    %v275 = vunpack.c.l.b16 %v239
    %v276 = vunpack.c.l.b16 %v240
    %v277 = vunpack.c.l.b16 %v241
    %v278 = vunpack.c.l.b16 %v242
    %v279 = vunpack.c.l.b16 %v243
    %v280 = vunpack.c.l.b16 %v244
    %v281 = vunpack.c.l.b16 %v245
    %v282 = vpack.c.b16 %v267, %v266
    %v283 = vpack.c.b16 %v269, %v268
    %v284 = vpack.c.b16 %v271, %v270
    %v285 = vpack.c.b16 %v273, %v272
    %v286 = vpack.c.b16 %v275, %v274
    %v287 = vpack.c.b16 %v277, %v276
    %v288 = vpack.c.b16 %v279, %v278
    %v289 = vpack.c.b16 %v281, %v280
    %298 = vmatpush.bf16.msra.mxu0 %v289
    %299 = vmatpush.bf16.msra.mxu0 %v288
    %300 = vmatpush.bf16.msra.mxu0 %v287
    %301 = vmatpush.bf16.msra.mxu0 %v286
    %302 = vmatpush.bf16.msra.mxu0 %v285
    %303 = vmatpush.bf16.msra.mxu0 %v284
    %304 = vmatpush.bf16.msra.mxu0 %v283
    %305 = vmatpush.bf16.msra.mxu0 %v282
    %306 = vmatmul.bf16.gmra.mxu0 %v229
    %v307 = vpop.f32.mrf.mxu0
    %v308 = vadd.f32 %v248, %v307
    %v309 = vpop.f32.mrf.mxu0
    %310 = vdwg.mxu0
    %v311 = vadd.f32 %v92, %v308
    %312 = vst.msk [vmem:[#allocation2] sm:$0xff] %vm74, %v311
    // Predicated region
    $region42: #{swin_encoder_forward.27} parent=1 // pred_check
      _
    $region43: #{swin_encoder_forward.27} parent=1 // pred_check_branch
      %314 = sbr.rel (0) target = $region45
    $region44: #{swin_encoder_forward.27} parent=1 // pred_region
      %316 = vsyncadd [#allocation3], 0
      %s318 = sshll.u32 [#allocation2], 4
      %s319 = int_to_ptr.vmem [resolvable:$true] %s318
      %s320 = sshll.u32 %s10, 4
      %s321 = int_to_ptr.hbm [resolvable:$true] %s320
      %323 = dma.vmem_to_hbm [thread:$0]  %s319, 128, %s321, [#allocation3]
    $region45: #{swin_encoder_forward.27} parent=1 // pred_fallthru
      _
    // Predicated region
    $region46: #{swin_encoder_forward.27} parent=1 // pred_check
      _
    $region47: #{swin_encoder_forward.27} parent=1 // pred_check_branch
      %325 = sbr.rel (0) target = $region49
    $region48: #{swin_encoder_forward.27} parent=1 // pred_region
      %327 = dma.done [#allocation3], 128
    $region49: #{swin_encoder_forward.27} parent=1 // pred_fallthru
      _
    %328 = vsyncpa [#allocation3], 1

</llo_original>
